<compile_context>
chip_gen: v6e
topology: v6e:2x2x1
jax: 0.10.0
libtpu: 0.0.40
codegen_flags: <defaults>
</compile_context>

<pallas_src>
import functools

import jax
import jax.numpy as jnp
import numpy as np
from jax.experimental import pallas as pl
from jax.experimental.pallas import tpu as pltpu

BN_EPS = 1e-5
MATMUL_DTYPE = jnp.float32   # set to jnp.bfloat16 on v6e/v7x for large channel counts


def convrelu_kernel(x_ref, m_ref, w1_ref, b1_ref, g1_ref, be1_ref,
                    w2_ref, b2_ref, g2_ref, be2_ref,
                    o_ref, *, N, H, W):
    """All refs are lane-dense:
       x_ref  : (Cin_p,  N*H*W)         activations, channels on sublanes
       m_ref  : (8, N*H*W) f32          boundary masks for the 8 non-center taps
       w*_ref : (9, Cout_p, Cin_p)      tap-major packed 3x3 weights (MATMUL_DTYPE)
       b/g/be : (C_p, 1)                per-channel column vectors
       o_ref  : (Cout_p, N*H*W)
    """
    NHW = N * H * W
    inv_nhw = jnp.float32(1.0 / NHW)

    m_all = m_ref[...]                              # (8, NHW), loaded once

    # Static tap table: (tap index, lane shift, mask row).  Center tap needs no mask.
    taps = []
    mrow = 0
    for ky in range(3):
        dy = ky - 1
        for kx in range(3):
            dx = kx - 1
            s = (-(dy * W + dx)) % NHW
            if dy == 0 and dx == 0:
                taps.append((ky * 3 + kx, 0, None))
            else:
                taps.append((ky * 3 + kx, s, mrow))
                mrow += 1

    def conv(act, w_ref):
        # Per-tap accumulation: roll (XLU) -> mask (VPU) -> dot (MXU) -> add.
        # No (9*Cin_p, NHW) slab ever materializes in VMEM.
        acc = None
        for (t, s, mr) in taps:
            if mr is None:
                tap = act
            else:
                tap = pltpu.roll(act, shift=s, axis=1) * m_all[mr:mr + 1, :]
            if MATMUL_DTYPE != jnp.float32:
                tap = tap.astype(MATMUL_DTYPE)
            part = jnp.dot(w_ref[t], tap, preferred_element_type=jnp.float32)
            acc = part if acc is None else acc + part
        return acc

    def bn_relu(acc, b_ref, g_ref, be_ref):
        # One-pass batch stats (biased variance) over N,H,W == lane dim.
        h = acc + b_ref[...]
        s = jnp.sum(h, axis=1, keepdims=True)
        ss = jnp.sum(h * h, axis=1, keepdims=True)
        mu = s * inv_nhw
        var = ss * inv_nhw - mu * mu
        inv_std = jax.lax.rsqrt(var + BN_EPS)
        return jnp.maximum(g_ref[...] * (h - mu) * inv_std + be_ref[...], 0.0)

    h1 = bn_relu(conv(x_ref[...], w1_ref), b1_ref, g1_ref, be1_ref)
    o_ref[...] = bn_relu(conv(h1, w2_ref), b2_ref, g2_ref, be2_ref)


def _rup8(c):
    return (c + 7) // 8 * 8


def _boundary_masks(N, H, W):
    """(8, N*H*W) f32 masks for the 8 non-center taps (host-side, static)."""
    NHW = N * H * W
    lane = np.arange(NHW)
    h_idx = (lane // W) % H
    w_idx = lane % W
    rows = []
    for ky in range(3):
        dy = ky - 1
        for kx in range(3):
            dx = kx - 1
            if dy == 0 and dx == 0:
                continue
            m = ((h_idx + dy >= 0) & (h_idx + dy < H) &
                 (w_idx + dx >= 0) & (w_idx + dx < W))
            rows.append(m.astype(np.float32))
    return jnp.asarray(np.stack(rows, axis=0))


def conv_relu_forward(x_nchw, params):
    """ConvReLU forward. Input/output are NCHW float32 (PyTorch convention)."""
    w1, b1, g1, be1, w2, b2, g2, be2 = params
    N, Cin, H, W = x_nchw.shape
    Cmid = w1.shape[0]
    Cout = w2.shape[0]
    NHW = N * H * W
    Cin_p, Cmid_p, Cout_p = _rup8(Cin), _rup8(Cmid), _rup8(Cout)

    # --- glue (XLA side): NCHW -> lane-dense (C_p, N*H*W), pack weights -------
    x_cd = jnp.transpose(x_nchw.astype(jnp.float32), (1, 0, 2, 3)).reshape(Cin, NHW)
    x_cd = jnp.pad(x_cd, ((0, Cin_p - Cin), (0, 0)))

    masks = _boundary_masks(N, H, W)                      # (8, NHW) f32

    def prep_w(w, o, c, o_p, c_p):
        w = jnp.pad(w.astype(jnp.float32),
                    ((0, o_p - o), (0, c_p - c), (0, 0), (0, 0)))
        # (O_p, C_p, 3, 3) -> (3, 3, O_p, C_p) -> (9, O_p, C_p)  [tap-major]
        return jnp.transpose(w, (2, 3, 0, 1)).reshape(9, o_p, c_p).astype(MATMUL_DTYPE)

    def prep_c(v, c, c_p):
        return jnp.pad(v.astype(jnp.float32), (0, c_p - c)).reshape(c_p, 1)

    w1_t = prep_w(w1, Cmid, Cin, Cmid_p, Cin_p)
    w2_t = prep_w(w2, Cout, Cmid, Cout_p, Cmid_p)

    kern = functools.partial(convrelu_kernel, N=N, H=H, W=W)

    out_cd = pl.pallas_call(
        kern,
        out_shape=jax.ShapeDtypeStruct((Cout_p, NHW), jnp.float32),
        in_specs=[pl.BlockSpec(memory_space=pltpu.MemorySpace.VMEM)] * 10,
        out_specs=pl.BlockSpec(memory_space=pltpu.MemorySpace.VMEM),
    )(x_cd, masks, w1_t,
      prep_c(b1, Cmid, Cmid_p), prep_c(g1, Cmid, Cmid_p), prep_c(be1, Cmid, Cmid_p),
      w2_t,
      prep_c(b2, Cout, Cout_p), prep_c(g2, Cout, Cout_p), prep_c(be2, Cout, Cout_p))

    # lane-dense (Cout_p, NHW) -> NCHW
    out = out_cd[:Cout].reshape(Cout, N, H, W)
    return jnp.transpose(out, (1, 0, 2, 3))


# ---------------------------- pure-JAX reference --------------------------------
def _ref_forward(x, params):
    w1, b1, g1, be1, w2, b2, g2, be2 = params

    def conv_bn_relu(h, w, b, g, be):
        h = jax.lax.conv_general_dilated(
            h, w, window_strides=(1, 1), padding=((1, 1), (1, 1)),
            dimension_numbers=("NCHW", "OIHW", "NCHW"))
        h = h + b[None, :, None, None]
        mu = jnp.mean(h, axis=(0, 2, 3), keepdims=True)
        var = jnp.mean((h - mu) ** 2, axis=(0, 2, 3), keepdims=True)
        h = g[None, :, None, None] * (h - mu) * jax.lax.rsqrt(var + BN_EPS) \
            + be[None, :, None, None]
        return jnp.maximum(h, 0.0)

    h = conv_bn_relu(x, w1, b1, g1, be1)
    return conv_bn_relu(h, w2, b2, g2, be2)


if __name__ == "__main__":
    in_ch, out_ch = 4, 8
    mid_ch = out_ch  # PyTorch default: mid_ch = out_ch when not given
    N, H, W = 2, 16, 16

    key = jax.random.PRNGKey(0)
    kx, kw1, kb1, kw2, kb2 = jax.random.split(key, 5)

    x = jax.random.normal(kx, (N, in_ch, H, W), jnp.float32)

    # deterministic parameter init (shapes match nn.Conv2d / nn.BatchNorm2d)
    w1 = jax.random.normal(kw1, (mid_ch, in_ch, 3, 3), jnp.float32) * 0.1
    b1 = jax.random.normal(kb1, (mid_ch,), jnp.float32) * 0.1
    w2 = jax.random.normal(kw2, (out_ch, mid_ch, 3, 3), jnp.float32) * 0.1
    b2 = jax.random.normal(kb2, (out_ch,), jnp.float32) * 0.1
    g1 = jnp.ones((mid_ch,), jnp.float32)    # BatchNorm weight init = 1
    be1 = jnp.zeros((mid_ch,), jnp.float32)  # BatchNorm bias init = 0
    g2 = jnp.ones((out_ch,), jnp.float32)
    be2 = jnp.zeros((out_ch,), jnp.float32)

    params = (w1, b1, g1, be1, w2, b2, g2, be2)

    out = conv_relu_forward(x, params)
    out = jax.block_until_ready(out)

    ref = _ref_forward(x, params)
    np.testing.assert_allclose(np.asarray(out), np.asarray(ref),
                               rtol=2e-3, atol=2e-3)

    print("KERNEL_OK")
</pallas_src>

<mosaic_0001>
module attributes {stable_mosaic.version = 11 : i64} {
  func.func @convrelu_kernel(%arg0: memref<8x512xf32, #tpu.memory_space<vmem>>, %arg1: memref<8x512xf32, #tpu.memory_space<vmem>>, %arg2: memref<9x8x8xf32, #tpu.memory_space<vmem>>, %arg3: memref<8x1xf32, #tpu.memory_space<vmem>>, %arg4: memref<8x1xf32, #tpu.memory_space<vmem>>, %arg5: memref<8x1xf32, #tpu.memory_space<vmem>>, %arg6: memref<9x8x8xf32, #tpu.memory_space<vmem>>, %arg7: memref<8x1xf32, #tpu.memory_space<vmem>>, %arg8: memref<8x1xf32, #tpu.memory_space<vmem>>, %arg9: memref<8x1xf32, #tpu.memory_space<vmem>>, %arg10: memref<8x512xf32, #tpu.memory_space<vmem>>) attributes {dimension_semantics = [], scalar_prefetch = 0 : i64, scratch_operands = 0 : i64, tpu.core_type = #tpu.core_type<tc>} {
    %c0 = arith.constant 0 : index
    %c0_0 = arith.constant 0 : index
    %0 = vector.load %arg1[%c0, %c0_0] : memref<8x512xf32, #tpu.memory_space<vmem>>, vector<8x512xf32>
    %c0_1 = arith.constant 0 : index
    %c0_2 = arith.constant 0 : index
    %1 = vector.load %arg0[%c0_1, %c0_2] : memref<8x512xf32, #tpu.memory_space<vmem>>, vector<8x512xf32>
    %c17_i32 = arith.constant 17 : i32
    %2 = tpu.dynamic_rotate %1 by %c17_i32 dim 1 : vector<8x512xf32>, i32 -> vector<8x512xf32>
    %3 = vector.extract_strided_slice %0 {offsets = [0, 0], sizes = [1, 512], strides = [1, 1]} : vector<8x512xf32> to vector<1x512xf32>
    %4 = vector.broadcast %3 : vector<1x512xf32> to vector<8x512xf32>
    %5 = arith.mulf %2, %4 : vector<8x512xf32>
    %c0_3 = arith.constant 0 : index
    %c0_4 = arith.constant 0 : index
    %c0_5 = arith.constant 0 : index
    %6 = vector.load %arg2[%c0_3, %c0_4, %c0_5] : memref<9x8x8xf32, #tpu.memory_space<vmem>>, vector<1x8x8xf32>
    %7 = vector.shape_cast %6 : vector<1x8x8xf32> to vector<8x8xf32>
    %cst = arith.constant dense<0.000000e+00> : vector<8x512xf32>
    %8 = tpu.matmul %7, %5, %cst {dimension_numbers = #tpu.dot_dimension_numbers<[1], [0], [0], [1], [0, 0, 1, 1], [], []>} : vector<8x8xf32>, vector<8x512xf32>, vector<8x512xf32> -> vector<8x512xf32>
    %c16_i32 = arith.constant 16 : i32
    %9 = tpu.dynamic_rotate %1 by %c16_i32 dim 1 : vector<8x512xf32>, i32 -> vector<8x512xf32>
    %10 = vector.extract_strided_slice %0 {offsets = [1, 0], sizes = [1, 512], strides = [1, 1]} : vector<8x512xf32> to vector<1x512xf32>
    %11 = vector.broadcast %10 : vector<1x512xf32> to vector<8x512xf32>
    %12 = arith.mulf %9, %11 : vector<8x512xf32>
    %c1 = arith.constant 1 : index
    %c0_6 = arith.constant 0 : index
    %c0_7 = arith.constant 0 : index
    %13 = vector.load %arg2[%c1, %c0_6, %c0_7] : memref<9x8x8xf32, #tpu.memory_space<vmem>>, vector<1x8x8xf32>
    %14 = vector.shape_cast %13 : vector<1x8x8xf32> to vector<8x8xf32>
    %cst_8 = arith.constant dense<0.000000e+00> : vector<8x512xf32>
    %15 = tpu.matmul %14, %12, %cst_8 {dimension_numbers = #tpu.dot_dimension_numbers<[1], [0], [0], [1], [0, 0, 1, 1], [], []>} : vector<8x8xf32>, vector<8x512xf32>, vector<8x512xf32> -> vector<8x512xf32>
    %16 = arith.addf %8, %15 : vector<8x512xf32>
    %c15_i32 = arith.constant 15 : i32
    %17 = tpu.dynamic_rotate %1 by %c15_i32 dim 1 : vector<8x512xf32>, i32 -> vector<8x512xf32>
    %18 = vector.extract_strided_slice %0 {offsets = [2, 0], sizes = [1, 512], strides = [1, 1]} : vector<8x512xf32> to vector<1x512xf32>
    %19 = vector.broadcast %18 : vector<1x512xf32> to vector<8x512xf32>
    %20 = arith.mulf %17, %19 : vector<8x512xf32>
    %c2 = arith.constant 2 : index
    %c0_9 = arith.constant 0 : index
    %c0_10 = arith.constant 0 : index
    %21 = vector.load %arg2[%c2, %c0_9, %c0_10] : memref<9x8x8xf32, #tpu.memory_space<vmem>>, vector<1x8x8xf32>
    %22 = vector.shape_cast %21 : vector<1x8x8xf32> to vector<8x8xf32>
    %cst_11 = arith.constant dense<0.000000e+00> : vector<8x512xf32>
    %23 = tpu.matmul %22, %20, %cst_11 {dimension_numbers = #tpu.dot_dimension_numbers<[1], [0], [0], [1], [0, 0, 1, 1], [], []>} : vector<8x8xf32>, vector<8x512xf32>, vector<8x512xf32> -> vector<8x512xf32>
    %24 = arith.addf %16, %23 : vector<8x512xf32>
    %c1_i32 = arith.constant 1 : i32
    %25 = tpu.dynamic_rotate %1 by %c1_i32 dim 1 : vector<8x512xf32>, i32 -> vector<8x512xf32>
    %26 = vector.extract_strided_slice %0 {offsets = [3, 0], sizes = [1, 512], strides = [1, 1]} : vector<8x512xf32> to vector<1x512xf32>
    %27 = vector.broadcast %26 : vector<1x512xf32> to vector<8x512xf32>
    %28 = arith.mulf %25, %27 : vector<8x512xf32>
    %c3 = arith.constant 3 : index
    %c0_12 = arith.constant 0 : index
    %c0_13 = arith.constant 0 : index
    %29 = vector.load %arg2[%c3, %c0_12, %c0_13] : memref<9x8x8xf32, #tpu.memory_space<vmem>>, vector<1x8x8xf32>
    %30 = vector.shape_cast %29 : vector<1x8x8xf32> to vector<8x8xf32>
    %cst_14 = arith.constant dense<0.000000e+00> : vector<8x512xf32>
    %31 = tpu.matmul %30, %28, %cst_14 {dimension_numbers = #tpu.dot_dimension_numbers<[1], [0], [0], [1], [0, 0, 1, 1], [], []>} : vector<8x8xf32>, vector<8x512xf32>, vector<8x512xf32> -> vector<8x512xf32>
    %32 = arith.addf %24, %31 : vector<8x512xf32>
    %c4 = arith.constant 4 : index
    %c0_15 = arith.constant 0 : index
    %c0_16 = arith.constant 0 : index
    %33 = vector.load %arg2[%c4, %c0_15, %c0_16] : memref<9x8x8xf32, #tpu.memory_space<vmem>>, vector<1x8x8xf32>
    %34 = vector.shape_cast %33 : vector<1x8x8xf32> to vector<8x8xf32>
    %cst_17 = arith.constant dense<0.000000e+00> : vector<8x512xf32>
    %35 = tpu.matmul %34, %1, %cst_17 {dimension_numbers = #tpu.dot_dimension_numbers<[1], [0], [0], [1], [0, 0, 1, 1], [], []>} : vector<8x8xf32>, vector<8x512xf32>, vector<8x512xf32> -> vector<8x512xf32>
    %36 = arith.addf %32, %35 : vector<8x512xf32>
    %c511_i32 = arith.constant 511 : i32
    %37 = tpu.dynamic_rotate %1 by %c511_i32 dim 1 : vector<8x512xf32>, i32 -> vector<8x512xf32>
    %38 = vector.extract_strided_slice %0 {offsets = [4, 0], sizes = [1, 512], strides = [1, 1]} : vector<8x512xf32> to vector<1x512xf32>
    %39 = vector.broadcast %38 : vector<1x512xf32> to vector<8x512xf32>
    %40 = arith.mulf %37, %39 : vector<8x512xf32>
    %c5 = arith.constant 5 : index
    %c0_18 = arith.constant 0 : index
    %c0_19 = arith.constant 0 : index
    %41 = vector.load %arg2[%c5, %c0_18, %c0_19] : memref<9x8x8xf32, #tpu.memory_space<vmem>>, vector<1x8x8xf32>
    %42 = vector.shape_cast %41 : vector<1x8x8xf32> to vector<8x8xf32>
    %cst_20 = arith.constant dense<0.000000e+00> : vector<8x512xf32>
    %43 = tpu.matmul %42, %40, %cst_20 {dimension_numbers = #tpu.dot_dimension_numbers<[1], [0], [0], [1], [0, 0, 1, 1], [], []>} : vector<8x8xf32>, vector<8x512xf32>, vector<8x512xf32> -> vector<8x512xf32>
    %44 = arith.addf %36, %43 : vector<8x512xf32>
    %c497_i32 = arith.constant 497 : i32
    %45 = tpu.dynamic_rotate %1 by %c497_i32 dim 1 : vector<8x512xf32>, i32 -> vector<8x512xf32>
    %46 = vector.extract_strided_slice %0 {offsets = [5, 0], sizes = [1, 512], strides = [1, 1]} : vector<8x512xf32> to vector<1x512xf32>
    %47 = vector.broadcast %46 : vector<1x512xf32> to vector<8x512xf32>
    %48 = arith.mulf %45, %47 : vector<8x512xf32>
    %c6 = arith.constant 6 : index
    %c0_21 = arith.constant 0 : index
    %c0_22 = arith.constant 0 : index
    %49 = vector.load %arg2[%c6, %c0_21, %c0_22] : memref<9x8x8xf32, #tpu.memory_space<vmem>>, vector<1x8x8xf32>
    %50 = vector.shape_cast %49 : vector<1x8x8xf32> to vector<8x8xf32>
    %cst_23 = arith.constant dense<0.000000e+00> : vector<8x512xf32>
    %51 = tpu.matmul %50, %48, %cst_23 {dimension_numbers = #tpu.dot_dimension_numbers<[1], [0], [0], [1], [0, 0, 1, 1], [], []>} : vector<8x8xf32>, vector<8x512xf32>, vector<8x512xf32> -> vector<8x512xf32>
    %52 = arith.addf %44, %51 : vector<8x512xf32>
    %c496_i32 = arith.constant 496 : i32
    %53 = tpu.dynamic_rotate %1 by %c496_i32 dim 1 : vector<8x512xf32>, i32 -> vector<8x512xf32>
    %54 = vector.extract_strided_slice %0 {offsets = [6, 0], sizes = [1, 512], strides = [1, 1]} : vector<8x512xf32> to vector<1x512xf32>
    %55 = vector.broadcast %54 : vector<1x512xf32> to vector<8x512xf32>
    %56 = arith.mulf %53, %55 : vector<8x512xf32>
    %c7 = arith.constant 7 : index
    %c0_24 = arith.constant 0 : index
    %c0_25 = arith.constant 0 : index
    %57 = vector.load %arg2[%c7, %c0_24, %c0_25] : memref<9x8x8xf32, #tpu.memory_space<vmem>>, vector<1x8x8xf32>
    %58 = vector.shape_cast %57 : vector<1x8x8xf32> to vector<8x8xf32>
    %cst_26 = arith.constant dense<0.000000e+00> : vector<8x512xf32>
    %59 = tpu.matmul %58, %56, %cst_26 {dimension_numbers = #tpu.dot_dimension_numbers<[1], [0], [0], [1], [0, 0, 1, 1], [], []>} : vector<8x8xf32>, vector<8x512xf32>, vector<8x512xf32> -> vector<8x512xf32>
    %60 = arith.addf %52, %59 : vector<8x512xf32>
    %c495_i32 = arith.constant 495 : i32
    %61 = tpu.dynamic_rotate %1 by %c495_i32 dim 1 : vector<8x512xf32>, i32 -> vector<8x512xf32>
    %62 = vector.extract_strided_slice %0 {offsets = [7, 0], sizes = [1, 512], strides = [1, 1]} : vector<8x512xf32> to vector<1x512xf32>
    %63 = vector.broadcast %62 : vector<1x512xf32> to vector<8x512xf32>
    %64 = arith.mulf %61, %63 : vector<8x512xf32>
    %c8 = arith.constant 8 : index
    %c0_27 = arith.constant 0 : index
    %c0_28 = arith.constant 0 : index
    %65 = vector.load %arg2[%c8, %c0_27, %c0_28] : memref<9x8x8xf32, #tpu.memory_space<vmem>>, vector<1x8x8xf32>
    %66 = vector.shape_cast %65 : vector<1x8x8xf32> to vector<8x8xf32>
    %cst_29 = arith.constant dense<0.000000e+00> : vector<8x512xf32>
    %67 = tpu.matmul %66, %64, %cst_29 {dimension_numbers = #tpu.dot_dimension_numbers<[1], [0], [0], [1], [0, 0, 1, 1], [], []>} : vector<8x8xf32>, vector<8x512xf32>, vector<8x512xf32> -> vector<8x512xf32>
    %68 = arith.addf %60, %67 : vector<8x512xf32>
    %c0_30 = arith.constant 0 : index
    %c0_31 = arith.constant 0 : index
    %69 = vector.load %arg3[%c0_30, %c0_31] : memref<8x1xf32, #tpu.memory_space<vmem>>, vector<8x1xf32>
    %70 = vector.broadcast %69 : vector<8x1xf32> to vector<8x512xf32>
    %71 = arith.addf %68, %70 : vector<8x512xf32>
    %cst_32 = arith.constant dense<0.000000e+00> : vector<8xf32>
    %72 = vector.multi_reduction <add>, %71, %cst_32 [1] : vector<8x512xf32> to vector<8xf32>
    %73 = vector.shape_cast %72 : vector<8xf32> to vector<8x1xf32>
    %74 = arith.mulf %71, %71 : vector<8x512xf32>
    %cst_33 = arith.constant dense<0.000000e+00> : vector<8xf32>
    %75 = vector.multi_reduction <add>, %74, %cst_33 [1] : vector<8x512xf32> to vector<8xf32>
    %76 = vector.shape_cast %75 : vector<8xf32> to vector<8x1xf32>
    %cst_34 = arith.constant 0.001953125 : f32
    %77 = vector.broadcast %cst_34 : f32 to vector<8x1xf32>
    %78 = arith.mulf %73, %77 : vector<8x1xf32>
    %cst_35 = arith.constant 0.001953125 : f32
    %79 = vector.broadcast %cst_35 : f32 to vector<8x1xf32>
    %80 = arith.mulf %76, %79 : vector<8x1xf32>
    %81 = arith.mulf %78, %78 : vector<8x1xf32>
    %82 = arith.subf %80, %81 : vector<8x1xf32>
    %cst_36 = arith.constant 9.99999974E-6 : f32
    %83 = vector.broadcast %cst_36 : f32 to vector<8x1xf32>
    %84 = arith.addf %82, %83 : vector<8x1xf32>
    %85 = math.rsqrt %84 : vector<8x1xf32>
    %c0_37 = arith.constant 0 : index
    %c0_38 = arith.constant 0 : index
    %86 = vector.load %arg4[%c0_37, %c0_38] : memref<8x1xf32, #tpu.memory_space<vmem>>, vector<8x1xf32>
    %87 = vector.broadcast %78 : vector<8x1xf32> to vector<8x512xf32>
    %88 = arith.subf %71, %87 : vector<8x512xf32>
    %89 = vector.broadcast %86 : vector<8x1xf32> to vector<8x512xf32>
    %90 = arith.mulf %89, %88 : vector<8x512xf32>
    %91 = vector.broadcast %85 : vector<8x1xf32> to vector<8x512xf32>
    %92 = arith.mulf %90, %91 : vector<8x512xf32>
    %c0_39 = arith.constant 0 : index
    %c0_40 = arith.constant 0 : index
    %93 = vector.load %arg5[%c0_39, %c0_40] : memref<8x1xf32, #tpu.memory_space<vmem>>, vector<8x1xf32>
    %94 = vector.broadcast %93 : vector<8x1xf32> to vector<8x512xf32>
    %95 = arith.addf %92, %94 : vector<8x512xf32>
    %cst_41 = arith.constant 0.000000e+00 : f32
    %96 = vector.broadcast %cst_41 : f32 to vector<8x512xf32>
    %97 = arith.maximumf %95, %96 : vector<8x512xf32>
    %c17_i32_42 = arith.constant 17 : i32
    %98 = tpu.dynamic_rotate %97 by %c17_i32_42 dim 1 : vector<8x512xf32>, i32 -> vector<8x512xf32>
    %99 = vector.extract_strided_slice %0 {offsets = [0, 0], sizes = [1, 512], strides = [1, 1]} : vector<8x512xf32> to vector<1x512xf32>
    %100 = vector.broadcast %99 : vector<1x512xf32> to vector<8x512xf32>
    %101 = arith.mulf %98, %100 : vector<8x512xf32>
    %c0_43 = arith.constant 0 : index
    %c0_44 = arith.constant 0 : index
    %c0_45 = arith.constant 0 : index
    %102 = vector.load %arg6[%c0_43, %c0_44, %c0_45] : memref<9x8x8xf32, #tpu.memory_space<vmem>>, vector<1x8x8xf32>
    %103 = vector.shape_cast %102 : vector<1x8x8xf32> to vector<8x8xf32>
    %cst_46 = arith.constant dense<0.000000e+00> : vector<8x512xf32>
    %104 = tpu.matmul %103, %101, %cst_46 {dimension_numbers = #tpu.dot_dimension_numbers<[1], [0], [0], [1], [0, 0, 1, 1], [], []>} : vector<8x8xf32>, vector<8x512xf32>, vector<8x512xf32> -> vector<8x512xf32>
    %c16_i32_47 = arith.constant 16 : i32
    %105 = tpu.dynamic_rotate %97 by %c16_i32_47 dim 1 : vector<8x512xf32>, i32 -> vector<8x512xf32>
    %106 = vector.extract_strided_slice %0 {offsets = [1, 0], sizes = [1, 512], strides = [1, 1]} : vector<8x512xf32> to vector<1x512xf32>
    %107 = vector.broadcast %106 : vector<1x512xf32> to vector<8x512xf32>
    %108 = arith.mulf %105, %107 : vector<8x512xf32>
    %c1_48 = arith.constant 1 : index
    %c0_49 = arith.constant 0 : index
    %c0_50 = arith.constant 0 : index
    %109 = vector.load %arg6[%c1_48, %c0_49, %c0_50] : memref<9x8x8xf32, #tpu.memory_space<vmem>>, vector<1x8x8xf32>
    %110 = vector.shape_cast %109 : vector<1x8x8xf32> to vector<8x8xf32>
    %cst_51 = arith.constant dense<0.000000e+00> : vector<8x512xf32>
    %111 = tpu.matmul %110, %108, %cst_51 {dimension_numbers = #tpu.dot_dimension_numbers<[1], [0], [0], [1], [0, 0, 1, 1], [], []>} : vector<8x8xf32>, vector<8x512xf32>, vector<8x512xf32> -> vector<8x512xf32>
    %112 = arith.addf %104, %111 : vector<8x512xf32>
    %c15_i32_52 = arith.constant 15 : i32
    %113 = tpu.dynamic_rotate %97 by %c15_i32_52 dim 1 : vector<8x512xf32>, i32 -> vector<8x512xf32>
    %114 = vector.extract_strided_slice %0 {offsets = [2, 0], sizes = [1, 512], strides = [1, 1]} : vector<8x512xf32> to vector<1x512xf32>
    %115 = vector.broadcast %114 : vector<1x512xf32> to vector<8x512xf32>
    %116 = arith.mulf %113, %115 : vector<8x512xf32>
    %c2_53 = arith.constant 2 : index
    %c0_54 = arith.constant 0 : index
    %c0_55 = arith.constant 0 : index
    %117 = vector.load %arg6[%c2_53, %c0_54, %c0_55] : memref<9x8x8xf32, #tpu.memory_space<vmem>>, vector<1x8x8xf32>
    %118 = vector.shape_cast %117 : vector<1x8x8xf32> to vector<8x8xf32>
    %cst_56 = arith.constant dense<0.000000e+00> : vector<8x512xf32>
    %119 = tpu.matmul %118, %116, %cst_56 {dimension_numbers = #tpu.dot_dimension_numbers<[1], [0], [0], [1], [0, 0, 1, 1], [], []>} : vector<8x8xf32>, vector<8x512xf32>, vector<8x512xf32> -> vector<8x512xf32>
    %120 = arith.addf %112, %119 : vector<8x512xf32>
    %c1_i32_57 = arith.constant 1 : i32
    %121 = tpu.dynamic_rotate %97 by %c1_i32_57 dim 1 : vector<8x512xf32>, i32 -> vector<8x512xf32>
    %122 = vector.extract_strided_slice %0 {offsets = [3, 0], sizes = [1, 512], strides = [1, 1]} : vector<8x512xf32> to vector<1x512xf32>
    %123 = vector.broadcast %122 : vector<1x512xf32> to vector<8x512xf32>
    %124 = arith.mulf %121, %123 : vector<8x512xf32>
    %c3_58 = arith.constant 3 : index
    %c0_59 = arith.constant 0 : index
    %c0_60 = arith.constant 0 : index
    %125 = vector.load %arg6[%c3_58, %c0_59, %c0_60] : memref<9x8x8xf32, #tpu.memory_space<vmem>>, vector<1x8x8xf32>
    %126 = vector.shape_cast %125 : vector<1x8x8xf32> to vector<8x8xf32>
    %cst_61 = arith.constant dense<0.000000e+00> : vector<8x512xf32>
    %127 = tpu.matmul %126, %124, %cst_61 {dimension_numbers = #tpu.dot_dimension_numbers<[1], [0], [0], [1], [0, 0, 1, 1], [], []>} : vector<8x8xf32>, vector<8x512xf32>, vector<8x512xf32> -> vector<8x512xf32>
    %128 = arith.addf %120, %127 : vector<8x512xf32>
    %c4_62 = arith.constant 4 : index
    %c0_63 = arith.constant 0 : index
    %c0_64 = arith.constant 0 : index
    %129 = vector.load %arg6[%c4_62, %c0_63, %c0_64] : memref<9x8x8xf32, #tpu.memory_space<vmem>>, vector<1x8x8xf32>
    %130 = vector.shape_cast %129 : vector<1x8x8xf32> to vector<8x8xf32>
    %cst_65 = arith.constant dense<0.000000e+00> : vector<8x512xf32>
    %131 = tpu.matmul %130, %97, %cst_65 {dimension_numbers = #tpu.dot_dimension_numbers<[1], [0], [0], [1], [0, 0, 1, 1], [], []>} : vector<8x8xf32>, vector<8x512xf32>, vector<8x512xf32> -> vector<8x512xf32>
    %132 = arith.addf %128, %131 : vector<8x512xf32>
    %c511_i32_66 = arith.constant 511 : i32
    %133 = tpu.dynamic_rotate %97 by %c511_i32_66 dim 1 : vector<8x512xf32>, i32 -> vector<8x512xf32>
    %134 = vector.extract_strided_slice %0 {offsets = [4, 0], sizes = [1, 512], strides = [1, 1]} : vector<8x512xf32> to vector<1x512xf32>
    %135 = vector.broadcast %134 : vector<1x512xf32> to vector<8x512xf32>
    %136 = arith.mulf %133, %135 : vector<8x512xf32>
    %c5_67 = arith.constant 5 : index
    %c0_68 = arith.constant 0 : index
    %c0_69 = arith.constant 0 : index
    %137 = vector.load %arg6[%c5_67, %c0_68, %c0_69] : memref<9x8x8xf32, #tpu.memory_space<vmem>>, vector<1x8x8xf32>
    %138 = vector.shape_cast %137 : vector<1x8x8xf32> to vector<8x8xf32>
    %cst_70 = arith.constant dense<0.000000e+00> : vector<8x512xf32>
    %139 = tpu.matmul %138, %136, %cst_70 {dimension_numbers = #tpu.dot_dimension_numbers<[1], [0], [0], [1], [0, 0, 1, 1], [], []>} : vector<8x8xf32>, vector<8x512xf32>, vector<8x512xf32> -> vector<8x512xf32>
    %140 = arith.addf %132, %139 : vector<8x512xf32>
    %c497_i32_71 = arith.constant 497 : i32
    %141 = tpu.dynamic_rotate %97 by %c497_i32_71 dim 1 : vector<8x512xf32>, i32 -> vector<8x512xf32>
    %142 = vector.extract_strided_slice %0 {offsets = [5, 0], sizes = [1, 512], strides = [1, 1]} : vector<8x512xf32> to vector<1x512xf32>
    %143 = vector.broadcast %142 : vector<1x512xf32> to vector<8x512xf32>
    %144 = arith.mulf %141, %143 : vector<8x512xf32>
    %c6_72 = arith.constant 6 : index
    %c0_73 = arith.constant 0 : index
    %c0_74 = arith.constant 0 : index
    %145 = vector.load %arg6[%c6_72, %c0_73, %c0_74] : memref<9x8x8xf32, #tpu.memory_space<vmem>>, vector<1x8x8xf32>
    %146 = vector.shape_cast %145 : vector<1x8x8xf32> to vector<8x8xf32>
    %cst_75 = arith.constant dense<0.000000e+00> : vector<8x512xf32>
    %147 = tpu.matmul %146, %144, %cst_75 {dimension_numbers = #tpu.dot_dimension_numbers<[1], [0], [0], [1], [0, 0, 1, 1], [], []>} : vector<8x8xf32>, vector<8x512xf32>, vector<8x512xf32> -> vector<8x512xf32>
    %148 = arith.addf %140, %147 : vector<8x512xf32>
    %c496_i32_76 = arith.constant 496 : i32
    %149 = tpu.dynamic_rotate %97 by %c496_i32_76 dim 1 : vector<8x512xf32>, i32 -> vector<8x512xf32>
    %150 = vector.extract_strided_slice %0 {offsets = [6, 0], sizes = [1, 512], strides = [1, 1]} : vector<8x512xf32> to vector<1x512xf32>
    %151 = vector.broadcast %150 : vector<1x512xf32> to vector<8x512xf32>
    %152 = arith.mulf %149, %151 : vector<8x512xf32>
    %c7_77 = arith.constant 7 : index
    %c0_78 = arith.constant 0 : index
    %c0_79 = arith.constant 0 : index
    %153 = vector.load %arg6[%c7_77, %c0_78, %c0_79] : memref<9x8x8xf32, #tpu.memory_space<vmem>>, vector<1x8x8xf32>
    %154 = vector.shape_cast %153 : vector<1x8x8xf32> to vector<8x8xf32>
    %cst_80 = arith.constant dense<0.000000e+00> : vector<8x512xf32>
    %155 = tpu.matmul %154, %152, %cst_80 {dimension_numbers = #tpu.dot_dimension_numbers<[1], [0], [0], [1], [0, 0, 1, 1], [], []>} : vector<8x8xf32>, vector<8x512xf32>, vector<8x512xf32> -> vector<8x512xf32>
    %156 = arith.addf %148, %155 : vector<8x512xf32>
    %c495_i32_81 = arith.constant 495 : i32
    %157 = tpu.dynamic_rotate %97 by %c495_i32_81 dim 1 : vector<8x512xf32>, i32 -> vector<8x512xf32>
    %158 = vector.extract_strided_slice %0 {offsets = [7, 0], sizes = [1, 512], strides = [1, 1]} : vector<8x512xf32> to vector<1x512xf32>
    %159 = vector.broadcast %158 : vector<1x512xf32> to vector<8x512xf32>
    %160 = arith.mulf %157, %159 : vector<8x512xf32>
    %c8_82 = arith.constant 8 : index
    %c0_83 = arith.constant 0 : index
    %c0_84 = arith.constant 0 : index
    %161 = vector.load %arg6[%c8_82, %c0_83, %c0_84] : memref<9x8x8xf32, #tpu.memory_space<vmem>>, vector<1x8x8xf32>
    %162 = vector.shape_cast %161 : vector<1x8x8xf32> to vector<8x8xf32>
    %cst_85 = arith.constant dense<0.000000e+00> : vector<8x512xf32>
    %163 = tpu.matmul %162, %160, %cst_85 {dimension_numbers = #tpu.dot_dimension_numbers<[1], [0], [0], [1], [0, 0, 1, 1], [], []>} : vector<8x8xf32>, vector<8x512xf32>, vector<8x512xf32> -> vector<8x512xf32>
    %164 = arith.addf %156, %163 : vector<8x512xf32>
    %c0_86 = arith.constant 0 : index
    %c0_87 = arith.constant 0 : index
    %165 = vector.load %arg7[%c0_86, %c0_87] : memref<8x1xf32, #tpu.memory_space<vmem>>, vector<8x1xf32>
    %166 = vector.broadcast %165 : vector<8x1xf32> to vector<8x512xf32>
    %167 = arith.addf %164, %166 : vector<8x512xf32>
    %cst_88 = arith.constant dense<0.000000e+00> : vector<8xf32>
    %168 = vector.multi_reduction <add>, %167, %cst_88 [1] : vector<8x512xf32> to vector<8xf32>
    %169 = vector.shape_cast %168 : vector<8xf32> to vector<8x1xf32>
    %170 = arith.mulf %167, %167 : vector<8x512xf32>
    %cst_89 = arith.constant dense<0.000000e+00> : vector<8xf32>
    %171 = vector.multi_reduction <add>, %170, %cst_89 [1] : vector<8x512xf32> to vector<8xf32>
    %172 = vector.shape_cast %171 : vector<8xf32> to vector<8x1xf32>
    %cst_90 = arith.constant 0.001953125 : f32
    %173 = vector.broadcast %cst_90 : f32 to vector<8x1xf32>
    %174 = arith.mulf %169, %173 : vector<8x1xf32>
    %cst_91 = arith.constant 0.001953125 : f32
    %175 = vector.broadcast %cst_91 : f32 to vector<8x1xf32>
    %176 = arith.mulf %172, %175 : vector<8x1xf32>
    %177 = arith.mulf %174, %174 : vector<8x1xf32>
    %178 = arith.subf %176, %177 : vector<8x1xf32>
    %cst_92 = arith.constant 9.99999974E-6 : f32
    %179 = vector.broadcast %cst_92 : f32 to vector<8x1xf32>
    %180 = arith.addf %178, %179 : vector<8x1xf32>
    %181 = math.rsqrt %180 : vector<8x1xf32>
    %c0_93 = arith.constant 0 : index
    %c0_94 = arith.constant 0 : index
    %182 = vector.load %arg8[%c0_93, %c0_94] : memref<8x1xf32, #tpu.memory_space<vmem>>, vector<8x1xf32>
    %183 = vector.broadcast %174 : vector<8x1xf32> to vector<8x512xf32>
    %184 = arith.subf %167, %183 : vector<8x512xf32>
    %185 = vector.broadcast %182 : vector<8x1xf32> to vector<8x512xf32>
    %186 = arith.mulf %185, %184 : vector<8x512xf32>
    %187 = vector.broadcast %181 : vector<8x1xf32> to vector<8x512xf32>
    %188 = arith.mulf %186, %187 : vector<8x512xf32>
    %c0_95 = arith.constant 0 : index
    %c0_96 = arith.constant 0 : index
    %189 = vector.load %arg9[%c0_95, %c0_96] : memref<8x1xf32, #tpu.memory_space<vmem>>, vector<8x1xf32>
    %190 = vector.broadcast %189 : vector<8x1xf32> to vector<8x512xf32>
    %191 = arith.addf %188, %190 : vector<8x512xf32>
    %cst_97 = arith.constant 0.000000e+00 : f32
    %192 = vector.broadcast %cst_97 : f32 to vector<8x512xf32>
    %193 = arith.maximumf %191, %192 : vector<8x512xf32>
    %c0_98 = arith.constant 0 : index
    %c0_99 = arith.constant 0 : index
    %194 = vector.load %arg10[%c0_98, %c0_99] : memref<8x512xf32, #tpu.memory_space<vmem>>, vector<8x512xf32>
    tpu.vector_store %arg10[%c0_98, %c0_99], %193 {strides = array<i32>} : memref<8x512xf32, #tpu.memory_space<vmem>>, vector<8x512xf32>,
    return
  }
}

</mosaic_0001>

<llo_original>
// kernel: tpu_custom_call.1
$region0: #{tpu_custom_call.1}
  #allocation0 [shape = 'u32[]', space=smem, size = 0x4, offset = 0x4, fixed_abs, tag = 'smem constant byte address 0x4 - core index']
  #allocation1 [shape = 'u32[144,128]{1,0:T(1,128)}', space=vmem, size = 0x12000, scoped, tag = 'internal scratch']
  %s0 = inlined_call_operand.vmem [shape: f32[8,512], index: 0, kind: input, shape index: {}]
  %s1 = inlined_call_operand.vmem [shape: f32[8,512], index: 1, kind: input, shape index: {}]
  %s2 = inlined_call_operand.vmem [shape: f32[9,8,8], index: 2, kind: input, shape index: {}]
  %s3 = inlined_call_operand.vmem [shape: f32[8,1], index: 3, kind: input, shape index: {}]
  %s4 = inlined_call_operand.vmem [shape: f32[8,1], index: 4, kind: input, shape index: {}]
  %s5 = inlined_call_operand.vmem [shape: f32[8,1], index: 5, kind: input, shape index: {}]
  %s6 = inlined_call_operand.vmem [shape: f32[9,8,8], index: 6, kind: input, shape index: {}]
  %s7 = inlined_call_operand.vmem [shape: f32[8,1], index: 7, kind: input, shape index: {}]
  %s8 = inlined_call_operand.vmem [shape: f32[8,1], index: 8, kind: input, shape index: {}]
  %s9 = inlined_call_operand.vmem [shape: f32[8,1], index: 9, kind: input, shape index: {}]
  %s10 = inlined_call_operand.hbm [shape: f32[8,512], index: 10, kind: output, shape index: {}]
  %s11 = sld [smem:[#allocation0]]
  $region50: #{tpu_custom_call.1} parent=0
    _
  %s13 = ssub.s32 1, %s11
  %s14 = scalar_select 0, %s13, %s11
  $region1: #{tpu_custom_call.1} parent=0
    #allocation2 [shape = 'u8[16384]{0}', space=vmem, size = 0x4000, scoped, tag = 'output window, operand 0, single buffered']
    #allocation3 [shape = 's32[1]{0}', space=sflag, size = 0x4, scoped, tag = 'scoped memory for tpu_custom_call.1']
    %15 = vsyncpa [#allocation3], 0
    // Predicated region
    $region2: #{tpu_custom_call.1} parent=1 // pred_check
      _
    $region3: #{tpu_custom_call.1} parent=1 // pred_check_branch
      %17 = sbr.rel (0) target = $region5
    $region4: #{tpu_custom_call.1} parent=1 // pred_region
      _
    $region5: #{tpu_custom_call.1} parent=1 // pred_fallthru
      _
    // Predicated region
    $region6: #{tpu_custom_call.1} parent=1 // pred_check
      _
    $region7: #{tpu_custom_call.1} parent=1 // pred_check_branch
      %19 = sbr.rel (0) target = $region9
    $region8: #{tpu_custom_call.1} parent=1 // pred_region
      _
    $region9: #{tpu_custom_call.1} parent=1 // pred_fallthru
      _
    // Predicated region
    $region10: #{tpu_custom_call.1} parent=1 // pred_check
      _
    $region11: #{tpu_custom_call.1} parent=1 // pred_check_branch
      %21 = sbr.rel (0) target = $region13
    $region12: #{tpu_custom_call.1} parent=1 // pred_region
      _
    $region13: #{tpu_custom_call.1} parent=1 // pred_fallthru
      _
    // Predicated region
    $region14: #{tpu_custom_call.1} parent=1 // pred_check
      _
    $region15: #{tpu_custom_call.1} parent=1 // pred_check_branch
      %23 = sbr.rel (0) target = $region17
    $region16: #{tpu_custom_call.1} parent=1 // pred_region
      _
    $region17: #{tpu_custom_call.1} parent=1 // pred_fallthru
      _
    // Predicated region
    $region18: #{tpu_custom_call.1} parent=1 // pred_check
      _
    $region19: #{tpu_custom_call.1} parent=1 // pred_check_branch
      %25 = sbr.rel (0) target = $region21
    $region20: #{tpu_custom_call.1} parent=1 // pred_region
      _
    $region21: #{tpu_custom_call.1} parent=1 // pred_fallthru
      _
    // Predicated region
    $region22: #{tpu_custom_call.1} parent=1 // pred_check
      _
    $region23: #{tpu_custom_call.1} parent=1 // pred_check_branch
      %27 = sbr.rel (0) target = $region25
    $region24: #{tpu_custom_call.1} parent=1 // pred_region
      _
    $region25: #{tpu_custom_call.1} parent=1 // pred_fallthru
      _
    // Predicated region
    $region26: #{tpu_custom_call.1} parent=1 // pred_check
      _
    $region27: #{tpu_custom_call.1} parent=1 // pred_check_branch
      %29 = sbr.rel (0) target = $region29
    $region28: #{tpu_custom_call.1} parent=1 // pred_region
      _
    $region29: #{tpu_custom_call.1} parent=1 // pred_fallthru
      _
    // Predicated region
    $region30: #{tpu_custom_call.1} parent=1 // pred_check
      _
    $region31: #{tpu_custom_call.1} parent=1 // pred_check_branch
      %31 = sbr.rel (0) target = $region33
    $region32: #{tpu_custom_call.1} parent=1 // pred_region
      _
    $region33: #{tpu_custom_call.1} parent=1 // pred_fallthru
      _
    // Predicated region
    $region34: #{tpu_custom_call.1} parent=1 // pred_check
      _
    $region35: #{tpu_custom_call.1} parent=1 // pred_check_branch
      %33 = sbr.rel (0) target = $region37
    $region36: #{tpu_custom_call.1} parent=1 // pred_region
      _
    $region37: #{tpu_custom_call.1} parent=1 // pred_fallthru
      _
    // Predicated region
    $region38: #{tpu_custom_call.1} parent=1 // pred_check
      _
    $region39: #{tpu_custom_call.1} parent=1 // pred_check_branch
      %35 = sbr.rel (0) target = $region41
    $region40: #{tpu_custom_call.1} parent=1 // pred_region
      _
    $region41: #{tpu_custom_call.1} parent=1 // pred_fallthru
      _
    %v36 = vld [vmem:[%s1] sm:$0xff]
    %v37 = vld [vmem:[%s1 + $0x8] sm:$0xff]
    %v38 = vld [vmem:[%s1 + $0x10] sm:$0xff]
    %v39 = vld [vmem:[%s1 + $0x18] sm:$0xff]
    %v40 = vld [vmem:[%s0] sm:$0xff]
    %v41 = vld [vmem:[%s0 + $0x8] sm:$0xff]
    %v42 = vld [vmem:[%s0 + $0x10] sm:$0xff]
    %v43 = vld [vmem:[%s0 + $0x18] sm:$0xff]
    %44 = vrot.lane.b32.xlu0 %v40, 17
    %v45 = vpop.permute.xlu0 %44
    %46 = vrot.lane.b32.xlu0 %v41, 17
    %v47 = vpop.permute.xlu0 %46
    %48 = vrot.lane.b32.xlu0 %v42, 17
    %v49 = vpop.permute.xlu0 %48
    %50 = vrot.lane.b32.xlu0 %v43, 17
    %v51 = vpop.permute.xlu0 %50
    %v52 = vlaneseq
    %v53 = vand.u32 %v52, 127
    %vm54 = vcmp.lt.s32.totalorder %v53, 17
    %v55 = vsel %vm54, %v49, %v51
    %v56 = vsel %vm54, %v47, %v49
    %v57 = vsel %vm54, %v45, %v47
    %v58 = vsel %vm54, %v51, %v45
    %v59 = vlaneseq
    %v60 = vshrl.u32 %v59, 7
    %v61 = vsub.s32 0, %v60
    %v62 = vrot.slane %v36, %v61
    %v63 = vlaneseq
    %v64 = vshrl.u32 %v63, 7
    %v65 = vsub.s32 0, %v64
    %v66 = vrot.slane %v37, %v65
    %v67 = vlaneseq
    %v68 = vshrl.u32 %v67, 7
    %v69 = vsub.s32 0, %v68
    %v70 = vrot.slane %v38, %v69
    %v71 = vlaneseq
    %v72 = vshrl.u32 %v71, 7
    %v73 = vsub.s32 0, %v72
    %v74 = vrot.slane %v39, %v73
    %v75 = vmul.f32 %v58, %v62
    %v76 = vmul.f32 %v57, %v66
    %v77 = vmul.f32 %v56, %v70
    %v78 = vmul.f32 %v55, %v74
    %v79 = vld [vmem:[%s2] sm:$0xff]
    %80 = vrot.lane.b32.xlu0 %v40, 16
    %v81 = vpop.permute.xlu0 %80
    %82 = vrot.lane.b32.xlu0 %v41, 16
    %v83 = vpop.permute.xlu0 %82
    %84 = vrot.lane.b32.xlu0 %v42, 16
    %v85 = vpop.permute.xlu0 %84
    %86 = vrot.lane.b32.xlu0 %v43, 16
    %v87 = vpop.permute.xlu0 %86
    %vm88 = vcmp.lt.s32.totalorder %v53, 16
    %v89 = vsel %vm88, %v85, %v87
    %v90 = vsel %vm88, %v83, %v85
    %v91 = vsel %vm88, %v81, %v83
    %v92 = vsel %vm88, %v87, %v81
    %v93 = vlaneseq
    %v94 = vshrl.u32 %v93, 7
    %v95 = vsub.s32 1, %v94
    %v96 = vrot.slane %v36, %v95
    %v97 = vlaneseq
    %v98 = vshrl.u32 %v97, 7
    %v99 = vsub.s32 1, %v98
    %v100 = vrot.slane %v37, %v99
    %v101 = vlaneseq
    %v102 = vshrl.u32 %v101, 7
    %v103 = vsub.s32 1, %v102
    %v104 = vrot.slane %v38, %v103
    %v105 = vlaneseq
    %v106 = vshrl.u32 %v105, 7
    %v107 = vsub.s32 1, %v106
    %v108 = vrot.slane %v39, %v107
    %v109 = vmul.f32 %v92, %v96
    %v110 = vmul.f32 %v91, %v100
    %v111 = vmul.f32 %v90, %v104
    %v112 = vmul.f32 %v89, %v108
    %s113 = scalar_lea.vmem %s2, 8
    %v114 = vld [vmem:[%s113] sm:$0xff]
    %vm115 = vcmask 64512
    %v117 = vsel %vm115, %v114, 0
    %119 = vmatprep.subr.mxu0 0.0
    %120 = vmatpush1.msra.mxu0 0.0
    %121 = vmatprep.subr.mxu0 0.0
    %122 = vmatpush1.msra.mxu0 0.0
    %123 = vmatprep.subr.mxu0 0.0
    %124 = vmatpush1.msra.mxu0 0.0
    %125 = vmatprep.subr.mxu0 0.0
    %126 = vmatpush1.msra.mxu0 0.0
    %127 = vmatprep.subr.mxu0 0.0
    %128 = vmatpush1.msra.mxu0 0.0
    %129 = vmatprep.subr.mxu0 0.0
    %130 = vmatpush1.msra.mxu0 0.0
    %131 = vmatprep.subr.mxu0 0.0
    %132 = vmatpush1.msra.mxu0 0.0
    %133 = vmatprep.subr.mxu0 0.0
    %134 = vmatpush1.msra.mxu0 0.0
    %135 = vmatprep.subr.mxu0 0.0
    %136 = vmatpush1.msra.mxu0 0.0
    %137 = vmatprep.subr.mxu0 0.0
    %138 = vmatpush1.msra.mxu0 0.0
    %139 = vmatprep.subr.mxu0 0.0
    %140 = vmatpush1.msra.mxu0 0.0
    %141 = vmatprep.subr.mxu0 0.0
    %142 = vmatpush1.msra.mxu0 0.0
    %143 = vmatprep.subr.mxu0 0.0
    %144 = vmatpush1.msra.mxu0 0.0
    %145 = vmatprep.subr.mxu0 0.0
    %146 = vmatpush1.msra.mxu0 0.0
    %147 = vmatprep.subr.mxu0 0.0
    %148 = vmatpush1.msra.mxu0 0.0
    %149 = vmatprep.subr.mxu0 %v110
    %150 = vmatpush1.msra.mxu0 %v109
    %151 = vmatprep.subr.mxu0 0.0
    %152 = vmatpush2.msra.mxu0 0.0
    %153 = vmatprep.subr.mxu0 0.0
    %154 = vmatpush2.msra.mxu0 0.0
    %155 = vmatprep.subr.mxu0 0.0
    %156 = vmatpush2.msra.mxu0 0.0
    %157 = vmatprep.subr.mxu0 0.0
    %158 = vmatpush2.msra.mxu0 0.0
    %159 = vmatprep.subr.mxu0 0.0
    %160 = vmatpush2.msra.mxu0 0.0
    %161 = vmatprep.subr.mxu0 0.0
    %162 = vmatpush2.msra.mxu0 0.0
    %163 = vmatprep.subr.mxu0 0.0
    %164 = vmatpush2.msra.mxu0 0.0
    %165 = vmatprep.subr.mxu0 0.0
    %166 = vmatpush2.msra.mxu0 0.0
    %167 = vmatprep.subr.mxu0 0.0
    %168 = vmatpush2.msra.mxu0 0.0
    %169 = vmatprep.subr.mxu0 0.0
    %170 = vmatpush2.msra.mxu0 0.0
    %171 = vmatprep.subr.mxu0 0.0
    %172 = vmatpush2.msra.mxu0 0.0
    %173 = vmatprep.subr.mxu0 0.0
    %174 = vmatpush2.msra.mxu0 0.0
    %175 = vmatprep.subr.mxu0 0.0
    %176 = vmatpush2.msra.mxu0 0.0
    %177 = vmatprep.subr.mxu0 0.0
    %178 = vmatpush2.msra.mxu0 0.0
    %179 = vmatprep.subr.mxu0 0.0
    %180 = vmatpush2.msra.mxu0 0.0
    %181 = vmatprep.subr.mxu0 0.0
    %182 = vmatpush2.msra.mxu0 0.0
    %183 = vmatprep.mubr.f32.mxu0 0.0
    %184 = vmatmul.mubr.f32.gmra.mxu0 %v117
    %v185 = vpop.f32.mrf.mxu0
    %v186 = vadd.f32 0.0, %v185
    %v187 = vpop.f32.mrf.mxu0
    %v188 = vadd.f32 0.0, %v187
    %189 = vdwg.mxu0
    %190 = vmatprep.subr.mxu0 0.0
    %191 = vmatpush1.msra.mxu0 0.0
    %192 = vmatprep.subr.mxu0 0.0
    %193 = vmatpush1.msra.mxu0 0.0
    %194 = vmatprep.subr.mxu0 0.0
    %195 = vmatpush1.msra.mxu0 0.0
    %196 = vmatprep.subr.mxu0 0.0
    %197 = vmatpush1.msra.mxu0 0.0
    %198 = vmatprep.subr.mxu0 0.0
    %199 = vmatpush1.msra.mxu0 0.0
    %200 = vmatprep.subr.mxu0 0.0
    %201 = vmatpush1.msra.mxu0 0.0
    %202 = vmatprep.subr.mxu0 0.0
    %203 = vmatpush1.msra.mxu0 0.0
    %204 = vmatprep.subr.mxu0 0.0
    %205 = vmatpush1.msra.mxu0 0.0
    %206 = vmatprep.subr.mxu0 0.0
    %207 = vmatpush1.msra.mxu0 0.0
    %208 = vmatprep.subr.mxu0 0.0
    %209 = vmatpush1.msra.mxu0 0.0
    %210 = vmatprep.subr.mxu0 0.0
    %211 = vmatpush1.msra.mxu0 0.0
    %212 = vmatprep.subr.mxu0 0.0
    %213 = vmatpush1.msra.mxu0 0.0
    %214 = vmatprep.subr.mxu0 0.0
    %215 = vmatpush1.msra.mxu0 0.0
    %216 = vmatprep.subr.mxu0 0.0
    %217 = vmatpush1.msra.mxu0 0.0
    %218 = vmatprep.subr.mxu0 0.0
    %219 = vmatpush1.msra.mxu0 0.0
    %220 = vmatprep.subr.mxu0 %v112
    %221 = vmatpush1.msra.mxu0 %v111
    %222 = vmatprep.subr.mxu0 0.0
    %223 = vmatpush2.msra.mxu0 0.0
    %224 = vmatprep.subr.mxu0 0.0
    %225 = vmatpush2.msra.mxu0 0.0
    %226 = vmatprep.subr.mxu0 0.0
    %227 = vmatpush2.msra.mxu0 0.0
    %228 = vmatprep.subr.mxu0 0.0
    %229 = vmatpush2.msra.mxu0 0.0
    %230 = vmatprep.subr.mxu0 0.0
    %231 = vmatpush2.msra.mxu0 0.0
    %232 = vmatprep.subr.mxu0 0.0
    %233 = vmatpush2.msra.mxu0 0.0
    %234 = vmatprep.subr.mxu0 0.0
    %235 = vmatpush2.msra.mxu0 0.0
    %236 = vmatprep.subr.mxu0 0.0
    %237 = vmatpush2.msra.mxu0 0.0
    %238 = vmatprep.subr.mxu0 0.0
    %239 = vmatpush2.msra.mxu0 0.0
    %240 = vmatprep.subr.mxu0 0.0
    %241 = vmatpush2.msra.mxu0 0.0
    %242 = vmatprep.subr.mxu0 0.0
    %243 = vmatpush2.msra.mxu0 0.0
    %244 = vmatprep.subr.mxu0 0.0
    %245 = vmatpush2.msra.mxu0 0.0
    %246 = vmatprep.subr.mxu0 0.0
    %247 = vmatpush2.msra.mxu0 0.0
    %248 = vmatprep.subr.mxu0 0.0
    %249 = vmatpush2.msra.mxu0 0.0
    %250 = vmatprep.subr.mxu0 0.0
    %251 = vmatpush2.msra.mxu0 0.0
    %252 = vmatprep.subr.mxu0 0.0
    %253 = vmatpush2.msra.mxu0 0.0
    %254 = vmatprep.mubr.f32.mxu0 0.0
    %255 = vmatmul.mubr.f32.gmra.mxu0 %v117
    %v256 = vpop.f32.mrf.mxu0
    %v257 = vadd.f32 0.0, %v256
    %v258 = vpop.f32.mrf.mxu0
    %v259 = vadd.f32 0.0, %v258
    %260 = vdwg.mxu0
    %v262 = vsel %vm115, %v79, 0
    %264 = vmatprep.subr.mxu0 0.0
    %265 = vmatpush1.msra.mxu0 0.0
    %266 = vmatprep.subr.mxu0 0.0
    %267 = vmatpush1.msra.mxu0 0.0
    %268 = vmatprep.subr.mxu0 0.0
    %269 = vmatpush1.msra.mxu0 0.0
    %270 = vmatprep.subr.mxu0 0.0
    %271 = vmatpush1.msra.mxu0 0.0
    %272 = vmatprep.subr.mxu0 0.0
    %273 = vmatpush1.msra.mxu0 0.0
    %274 = vmatprep.subr.mxu0 0.0
    %275 = vmatpush1.msra.mxu0 0.0
    %276 = vmatprep.subr.mxu0 0.0
    %277 = vmatpush1.msra.mxu0 0.0
    %278 = vmatprep.subr.mxu0 0.0
    %279 = vmatpush1.msra.mxu0 0.0
    %280 = vmatprep.subr.mxu0 0.0
    %281 = vmatpush1.msra.mxu0 0.0
    %282 = vmatprep.subr.mxu0 0.0
    %283 = vmatpush1.msra.mxu0 0.0
    %284 = vmatprep.subr.mxu0 0.0
    %285 = vmatpush1.msra.mxu0 0.0
    %286 = vmatprep.subr.mxu0 0.0
    %287 = vmatpush1.msra.mxu0 0.0
    %288 = vmatprep.subr.mxu0 0.0
    %289 = vmatpush1.msra.mxu0 0.0
    %290 = vmatprep.subr.mxu0 0.0
    %291 = vmatpush1.msra.mxu0 0.0
    %292 = vmatprep.subr.mxu0 0.0
    %293 = vmatpush1.msra.mxu0 0.0
    %294 = vmatprep.subr.mxu0 %v76
    %295 = vmatpush1.msra.mxu0 %v75
    %296 = vmatprep.subr.mxu0 0.0
    %297 = vmatpush2.msra.mxu0 0.0
    %298 = vmatprep.subr.mxu0 0.0
    %299 = vmatpush2.msra.mxu0 0.0
    %300 = vmatprep.subr.mxu0 0.0
    %301 = vmatpush2.msra.mxu0 0.0
    %302 = vmatprep.subr.mxu0 0.0
    %303 = vmatpush2.msra.mxu0 0.0
    %304 = vmatprep.subr.mxu0 0.0
    %305 = vmatpush2.msra.mxu0 0.0
    %306 = vmatprep.subr.mxu0 0.0
    %307 = vmatpush2.msra.mxu0 0.0
    %308 = vmatprep.subr.mxu0 0.0
    %309 = vmatpush2.msra.mxu0 0.0
    %310 = vmatprep.subr.mxu0 0.0
    %311 = vmatpush2.msra.mxu0 0.0
    %312 = vmatprep.subr.mxu0 0.0
    %313 = vmatpush2.msra.mxu0 0.0
    %314 = vmatprep.subr.mxu0 0.0
    %315 = vmatpush2.msra.mxu0 0.0
    %316 = vmatprep.subr.mxu0 0.0
    %317 = vmatpush2.msra.mxu0 0.0
    %318 = vmatprep.subr.mxu0 0.0
    %319 = vmatpush2.msra.mxu0 0.0
    %320 = vmatprep.subr.mxu0 0.0
    %321 = vmatpush2.msra.mxu0 0.0
    %322 = vmatprep.subr.mxu0 0.0
    %323 = vmatpush2.msra.mxu0 0.0
    %324 = vmatprep.subr.mxu0 0.0
    %325 = vmatpush2.msra.mxu0 0.0
    %326 = vmatprep.subr.mxu0 0.0
    %327 = vmatpush2.msra.mxu0 0.0
    %328 = vmatprep.mubr.f32.mxu0 0.0
    %329 = vmatmul.mubr.f32.gmra.mxu0 %v262
    %v330 = vpop.f32.mrf.mxu0
    %v331 = vadd.f32 %v186, %v330
    %v332 = vpop.f32.mrf.mxu0
    %v333 = vadd.f32 %v188, %v332
    %334 = vdwg.mxu0
    %335 = vmatprep.subr.mxu0 0.0
    %336 = vmatpush1.msra.mxu0 0.0
    %337 = vmatprep.subr.mxu0 0.0
    %338 = vmatpush1.msra.mxu0 0.0
    %339 = vmatprep.subr.mxu0 0.0
    %340 = vmatpush1.msra.mxu0 0.0
    %341 = vmatprep.subr.mxu0 0.0
    %342 = vmatpush1.msra.mxu0 0.0
    %343 = vmatprep.subr.mxu0 0.0
    %344 = vmatpush1.msra.mxu0 0.0
    %345 = vmatprep.subr.mxu0 0.0
    %346 = vmatpush1.msra.mxu0 0.0
    %347 = vmatprep.subr.mxu0 0.0
    %348 = vmatpush1.msra.mxu0 0.0
    %349 = vmatprep.subr.mxu0 0.0
    %350 = vmatpush1.msra.mxu0 0.0
    %351 = vmatprep.subr.mxu0 0.0
    %352 = vmatpush1.msra.mxu0 0.0
    %353 = vmatprep.subr.mxu0 0.0
    %354 = vmatpush1.msra.mxu0 0.0
    %355 = vmatprep.subr.mxu0 0.0
    %356 = vmatpush1.msra.mxu0 0.0
    %357 = vmatprep.subr.mxu0 0.0
    %358 = vmatpush1.msra.mxu0 0.0
    %359 = vmatprep.subr.mxu0 0.0
    %360 = vmatpush1.msra.mxu0 0.0
    %361 = vmatprep.subr.mxu0 0.0
    %362 = vmatpush1.msra.mxu0 0.0
    %363 = vmatprep.subr.mxu0 0.0
    %364 = vmatpush1.msra.mxu0 0.0
    %365 = vmatprep.subr.mxu0 %v78
    %366 = vmatpush1.msra.mxu0 %v77
    %367 = vmatprep.subr.mxu0 0.0
    %368 = vmatpush2.msra.mxu0 0.0
    %369 = vmatprep.subr.mxu0 0.0
    %370 = vmatpush2.msra.mxu0 0.0
    %371 = vmatprep.subr.mxu0 0.0
    %372 = vmatpush2.msra.mxu0 0.0
    %373 = vmatprep.subr.mxu0 0.0
    %374 = vmatpush2.msra.mxu0 0.0
    %375 = vmatprep.subr.mxu0 0.0
    %376 = vmatpush2.msra.mxu0 0.0
    %377 = vmatprep.subr.mxu0 0.0
    %378 = vmatpush2.msra.mxu0 0.0
    %379 = vmatprep.subr.mxu0 0.0
    %380 = vmatpush2.msra.mxu0 0.0
    %381 = vmatprep.subr.mxu0 0.0
    %382 = vmatpush2.msra.mxu0 0.0
    %383 = vmatprep.subr.mxu0 0.0
    %384 = vmatpush2.msra.mxu0 0.0
    %385 = vmatprep.subr.mxu0 0.0
    %386 = vmatpush2.msra.mxu0 0.0
    %387 = vmatprep.subr.mxu0 0.0
    %388 = vmatpush2.msra.mxu0 0.0
    %389 = vmatprep.subr.mxu0 0.0
    %390 = vmatpush2.msra.mxu0 0.0
    %391 = vmatprep.subr.mxu0 0.0
    %392 = vmatpush2.msra.mxu0 0.0
    %393 = vmatprep.subr.mxu0 0.0
    %394 = vmatpush2.msra.mxu0 0.0
    %395 = vmatprep.subr.mxu0 0.0
    %396 = vmatpush2.msra.mxu0 0.0
    %397 = vmatprep.subr.mxu0 0.0
    %398 = vmatpush2.msra.mxu0 0.0
    %399 = vmatprep.mubr.f32.mxu0 0.0
    %400 = vmatmul.mubr.f32.gmra.mxu0 %v262
    %v401 = vpop.f32.mrf.mxu0
    %v402 = vadd.f32 %v257, %v401
    %v403 = vpop.f32.mrf.mxu0
    %v404 = vadd.f32 %v259, %v403
    %405 = vdwg.mxu0
    %406 = vrot.lane.b32.xlu0 %v40, 15
    %v407 = vpop.permute.xlu0 %406
    %408 = vrot.lane.b32.xlu0 %v41, 15
    %v409 = vpop.permute.xlu0 %408
    %410 = vrot.lane.b32.xlu0 %v42, 15
    %v411 = vpop.permute.xlu0 %410
    %412 = vrot.lane.b32.xlu0 %v43, 15
    %v413 = vpop.permute.xlu0 %412
    %vm414 = vcmp.lt.s32.totalorder %v53, 15
    %v415 = vsel %vm414, %v411, %v413
    %v416 = vsel %vm414, %v409, %v411
    %v417 = vsel %vm414, %v407, %v409
    %v418 = vsel %vm414, %v413, %v407
    %v419 = vlaneseq
    %v420 = vshrl.u32 %v419, 7
    %v421 = vsub.s32 2, %v420
    %v422 = vrot.slane %v36, %v421
    %v423 = vlaneseq
    %v424 = vshrl.u32 %v423, 7
    %v425 = vsub.s32 2, %v424
    %v426 = vrot.slane %v37, %v425
    %v427 = vlaneseq
    %v428 = vshrl.u32 %v427, 7
    %v429 = vsub.s32 2, %v428
    %v430 = vrot.slane %v38, %v429
    %v431 = vlaneseq
    %v432 = vshrl.u32 %v431, 7
    %v433 = vsub.s32 2, %v432
    %v434 = vrot.slane %v39, %v433
    %v435 = vmul.f32 %v418, %v422
    %v436 = vmul.f32 %v417, %v426
    %v437 = vmul.f32 %v416, %v430
    %v438 = vmul.f32 %v415, %v434
    %s439 = scalar_lea.vmem %s2, 16
    %v440 = vld [vmem:[%s439] sm:$0xff]
    %v442 = vsel %vm115, %v440, 0
    %444 = vmatprep.subr.mxu0 0.0
    %445 = vmatpush1.msra.mxu0 0.0
    %446 = vmatprep.subr.mxu0 0.0
    %447 = vmatpush1.msra.mxu0 0.0
    %448 = vmatprep.subr.mxu0 0.0
    %449 = vmatpush1.msra.mxu0 0.0
    %450 = vmatprep.subr.mxu0 0.0
    %451 = vmatpush1.msra.mxu0 0.0
    %452 = vmatprep.subr.mxu0 0.0
    %453 = vmatpush1.msra.mxu0 0.0
    %454 = vmatprep.subr.mxu0 0.0
    %455 = vmatpush1.msra.mxu0 0.0
    %456 = vmatprep.subr.mxu0 0.0
    %457 = vmatpush1.msra.mxu0 0.0
    %458 = vmatprep.subr.mxu0 0.0
    %459 = vmatpush1.msra.mxu0 0.0
    %460 = vmatprep.subr.mxu0 0.0
    %461 = vmatpush1.msra.mxu0 0.0
    %462 = vmatprep.subr.mxu0 0.0
    %463 = vmatpush1.msra.mxu0 0.0
    %464 = vmatprep.subr.mxu0 0.0
    %465 = vmatpush1.msra.mxu0 0.0
    %466 = vmatprep.subr.mxu0 0.0
    %467 = vmatpush1.msra.mxu0 0.0
    %468 = vmatprep.subr.mxu0 0.0
    %469 = vmatpush1.msra.mxu0 0.0
    %470 = vmatprep.subr.mxu0 0.0
    %471 = vmatpush1.msra.mxu0 0.0
    %472 = vmatprep.subr.mxu0 0.0
    %473 = vmatpush1.msra.mxu0 0.0
    %474 = vmatprep.subr.mxu0 %v436
    %475 = vmatpush1.msra.mxu0 %v435
    %476 = vmatprep.subr.mxu0 0.0
    %477 = vmatpush2.msra.mxu0 0.0
    %478 = vmatprep.subr.mxu0 0.0
    %479 = vmatpush2.msra.mxu0 0.0
    %480 = vmatprep.subr.mxu0 0.0
    %481 = vmatpush2.msra.mxu0 0.0
    %482 = vmatprep.subr.mxu0 0.0
    %483 = vmatpush2.msra.mxu0 0.0
    %484 = vmatprep.subr.mxu0 0.0
    %485 = vmatpush2.msra.mxu0 0.0
    %486 = vmatprep.subr.mxu0 0.0
    %487 = vmatpush2.msra.mxu0 0.0
    %488 = vmatprep.subr.mxu0 0.0
    %489 = vmatpush2.msra.mxu0 0.0
    %490 = vmatprep.subr.mxu0 0.0
    %491 = vmatpush2.msra.mxu0 0.0
    %492 = vmatprep.subr.mxu0 0.0
    %493 = vmatpush2.msra.mxu0 0.0
    %494 = vmatprep.subr.mxu0 0.0
    %495 = vmatpush2.msra.mxu0 0.0
    %496 = vmatprep.subr.mxu0 0.0
    %497 = vmatpush2.msra.mxu0 0.0
    %498 = vmatprep.subr.mxu0 0.0
    %499 = vmatpush2.msra.mxu0 0.0
    %500 = vmatprep.subr.mxu0 0.0
    %501 = vmatpush2.msra.mxu0 0.0
    %502 = vmatprep.subr.mxu0 0.0
    %503 = vmatpush2.msra.mxu0 0.0
    %504 = vmatprep.subr.mxu0 0.0
    %505 = vmatpush2.msra.mxu0 0.0
    %506 = vmatprep.subr.mxu0 0.0
    %507 = vmatpush2.msra.mxu0 0.0
    %508 = vmatprep.mubr.f32.mxu0 0.0
    %509 = vmatmul.mubr.f32.gmra.mxu0 %v442
    %v510 = vpop.f32.mrf.mxu0
    %v511 = vadd.f32 0.0, %v510
    %v512 = vpop.f32.mrf.mxu0
    %v513 = vadd.f32 0.0, %v512
    %514 = vdwg.mxu0
    %515 = vmatprep.subr.mxu0 0.0
    %516 = vmatpush1.msra.mxu0 0.0
    %517 = vmatprep.subr.mxu0 0.0
    %518 = vmatpush1.msra.mxu0 0.0
    %519 = vmatprep.subr.mxu0 0.0
    %520 = vmatpush1.msra.mxu0 0.0
    %521 = vmatprep.subr.mxu0 0.0
    %522 = vmatpush1.msra.mxu0 0.0
    %523 = vmatprep.subr.mxu0 0.0
    %524 = vmatpush1.msra.mxu0 0.0
    %525 = vmatprep.subr.mxu0 0.0
    %526 = vmatpush1.msra.mxu0 0.0
    %527 = vmatprep.subr.mxu0 0.0
    %528 = vmatpush1.msra.mxu0 0.0
    %529 = vmatprep.subr.mxu0 0.0
    %530 = vmatpush1.msra.mxu0 0.0
    %531 = vmatprep.subr.mxu0 0.0
    %532 = vmatpush1.msra.mxu0 0.0
    %533 = vmatprep.subr.mxu0 0.0
    %534 = vmatpush1.msra.mxu0 0.0
    %535 = vmatprep.subr.mxu0 0.0
    %536 = vmatpush1.msra.mxu0 0.0
    %537 = vmatprep.subr.mxu0 0.0
    %538 = vmatpush1.msra.mxu0 0.0
    %539 = vmatprep.subr.mxu0 0.0
    %540 = vmatpush1.msra.mxu0 0.0
    %541 = vmatprep.subr.mxu0 0.0
    %542 = vmatpush1.msra.mxu0 0.0
    %543 = vmatprep.subr.mxu0 0.0
    %544 = vmatpush1.msra.mxu0 0.0
    %545 = vmatprep.subr.mxu0 %v438
    %546 = vmatpush1.msra.mxu0 %v437
    %547 = vmatprep.subr.mxu0 0.0
    %548 = vmatpush2.msra.mxu0 0.0
    %549 = vmatprep.subr.mxu0 0.0
    %550 = vmatpush2.msra.mxu0 0.0
    %551 = vmatprep.subr.mxu0 0.0
    %552 = vmatpush2.msra.mxu0 0.0
    %553 = vmatprep.subr.mxu0 0.0
    %554 = vmatpush2.msra.mxu0 0.0
    %555 = vmatprep.subr.mxu0 0.0
    %556 = vmatpush2.msra.mxu0 0.0
    %557 = vmatprep.subr.mxu0 0.0
    %558 = vmatpush2.msra.mxu0 0.0
    %559 = vmatprep.subr.mxu0 0.0
    %560 = vmatpush2.msra.mxu0 0.0
    %561 = vmatprep.subr.mxu0 0.0
    %562 = vmatpush2.msra.mxu0 0.0
    %563 = vmatprep.subr.mxu0 0.0
    %564 = vmatpush2.msra.mxu0 0.0
    %565 = vmatprep.subr.mxu0 0.0
    %566 = vmatpush2.msra.mxu0 0.0
    %567 = vmatprep.subr.mxu0 0.0
    %568 = vmatpush2.msra.mxu0 0.0
    %569 = vmatprep.subr.mxu0 0.0
    %570 = vmatpush2.msra.mxu0 0.0
    %571 = vmatprep.subr.mxu0 0.0
    %572 = vmatpush2.msra.mxu0 0.0
    %573 = vmatprep.subr.mxu0 0.0
    %574 = vmatpush2.msra.mxu0 0.0
    %575 = vmatprep.subr.mxu0 0.0
    %576 = vmatpush2.msra.mxu0 0.0
    %577 = vmatprep.subr.mxu0 0.0
    %578 = vmatpush2.msra.mxu0 0.0
    %579 = vmatprep.mubr.f32.mxu0 0.0
    %580 = vmatmul.mubr.f32.gmra.mxu0 %v442
    %v581 = vpop.f32.mrf.mxu0
    %v582 = vadd.f32 0.0, %v581
    %v583 = vpop.f32.mrf.mxu0
    %v584 = vadd.f32 0.0, %v583
    %585 = vdwg.mxu0
    %v586 = vadd.f32 %v331, %v511
    %v587 = vadd.f32 %v333, %v513
    %v588 = vadd.f32 %v402, %v582
    %v589 = vadd.f32 %v404, %v584
    %590 = vrot.lane.b32.xlu0 %v40, 1
    %v591 = vpop.permute.xlu0 %590
    %592 = vrot.lane.b32.xlu0 %v41, 1
    %v593 = vpop.permute.xlu0 %592
    %594 = vrot.lane.b32.xlu0 %v42, 1
    %v595 = vpop.permute.xlu0 %594
    %596 = vrot.lane.b32.xlu0 %v43, 1
    %v597 = vpop.permute.xlu0 %596
    %vm598 = vcmp.lt.s32.totalorder %v53, 1
    %v599 = vsel %vm598, %v595, %v597
    %v600 = vsel %vm598, %v593, %v595
    %v601 = vsel %vm598, %v591, %v593
    %v602 = vsel %vm598, %v597, %v591
    %v603 = vlaneseq
    %v604 = vshrl.u32 %v603, 7
    %v605 = vsub.s32 3, %v604
    %v606 = vrot.slane %v36, %v605
    %v607 = vlaneseq
    %v608 = vshrl.u32 %v607, 7
    %v609 = vsub.s32 3, %v608
    %v610 = vrot.slane %v37, %v609
    %v611 = vlaneseq
    %v612 = vshrl.u32 %v611, 7
    %v613 = vsub.s32 3, %v612
    %v614 = vrot.slane %v38, %v613
    %v615 = vlaneseq
    %v616 = vshrl.u32 %v615, 7
    %v617 = vsub.s32 3, %v616
    %v618 = vrot.slane %v39, %v617
    %v619 = vmul.f32 %v602, %v606
    %v620 = vmul.f32 %v601, %v610
    %v621 = vmul.f32 %v600, %v614
    %v622 = vmul.f32 %v599, %v618
    %s623 = scalar_lea.vmem %s2, 24
    %v624 = vld [vmem:[%s623] sm:$0xff]
    %v626 = vsel %vm115, %v624, 0
    %628 = vmatprep.subr.mxu0 0.0
    %629 = vmatpush1.msra.mxu0 0.0
    %630 = vmatprep.subr.mxu0 0.0
    %631 = vmatpush1.msra.mxu0 0.0
    %632 = vmatprep.subr.mxu0 0.0
    %633 = vmatpush1.msra.mxu0 0.0
    %634 = vmatprep.subr.mxu0 0.0
    %635 = vmatpush1.msra.mxu0 0.0
    %636 = vmatprep.subr.mxu0 0.0
    %637 = vmatpush1.msra.mxu0 0.0
    %638 = vmatprep.subr.mxu0 0.0
    %639 = vmatpush1.msra.mxu0 0.0
    %640 = vmatprep.subr.mxu0 0.0
    %641 = vmatpush1.msra.mxu0 0.0
    %642 = vmatprep.subr.mxu0 0.0
    %643 = vmatpush1.msra.mxu0 0.0
    %644 = vmatprep.subr.mxu0 0.0
    %645 = vmatpush1.msra.mxu0 0.0
    %646 = vmatprep.subr.mxu0 0.0
    %647 = vmatpush1.msra.mxu0 0.0
    %648 = vmatprep.subr.mxu0 0.0
    %649 = vmatpush1.msra.mxu0 0.0
    %650 = vmatprep.subr.mxu0 0.0
    %651 = vmatpush1.msra.mxu0 0.0
    %652 = vmatprep.subr.mxu0 0.0
    %653 = vmatpush1.msra.mxu0 0.0
    %654 = vmatprep.subr.mxu0 0.0
    %655 = vmatpush1.msra.mxu0 0.0
    %656 = vmatprep.subr.mxu0 0.0
    %657 = vmatpush1.msra.mxu0 0.0
    %658 = vmatprep.subr.mxu0 %v620
    %659 = vmatpush1.msra.mxu0 %v619
    %660 = vmatprep.subr.mxu0 0.0
    %661 = vmatpush2.msra.mxu0 0.0
    %662 = vmatprep.subr.mxu0 0.0
    %663 = vmatpush2.msra.mxu0 0.0
    %664 = vmatprep.subr.mxu0 0.0
    %665 = vmatpush2.msra.mxu0 0.0
    %666 = vmatprep.subr.mxu0 0.0
    %667 = vmatpush2.msra.mxu0 0.0
    %668 = vmatprep.subr.mxu0 0.0
    %669 = vmatpush2.msra.mxu0 0.0
    %670 = vmatprep.subr.mxu0 0.0
    %671 = vmatpush2.msra.mxu0 0.0
    %672 = vmatprep.subr.mxu0 0.0
    %673 = vmatpush2.msra.mxu0 0.0
    %674 = vmatprep.subr.mxu0 0.0
    %675 = vmatpush2.msra.mxu0 0.0
    %676 = vmatprep.subr.mxu0 0.0
    %677 = vmatpush2.msra.mxu0 0.0
    %678 = vmatprep.subr.mxu0 0.0
    %679 = vmatpush2.msra.mxu0 0.0
    %680 = vmatprep.subr.mxu0 0.0
    %681 = vmatpush2.msra.mxu0 0.0
    %682 = vmatprep.subr.mxu0 0.0
    %683 = vmatpush2.msra.mxu0 0.0
    %684 = vmatprep.subr.mxu0 0.0
    %685 = vmatpush2.msra.mxu0 0.0
    %686 = vmatprep.subr.mxu0 0.0
    %687 = vmatpush2.msra.mxu0 0.0
    %688 = vmatprep.subr.mxu0 0.0
    %689 = vmatpush2.msra.mxu0 0.0
    %690 = vmatprep.subr.mxu0 0.0
    %691 = vmatpush2.msra.mxu0 0.0
    %692 = vmatprep.mubr.f32.mxu0 0.0
    %693 = vmatmul.mubr.f32.gmra.mxu0 %v626
    %v694 = vpop.f32.mrf.mxu0
    %v695 = vadd.f32 0.0, %v694
    %v696 = vpop.f32.mrf.mxu0
    %v697 = vadd.f32 0.0, %v696
    %698 = vdwg.mxu0
    %699 = vmatprep.subr.mxu0 0.0
    %700 = vmatpush1.msra.mxu0 0.0
    %701 = vmatprep.subr.mxu0 0.0
    %702 = vmatpush1.msra.mxu0 0.0
    %703 = vmatprep.subr.mxu0 0.0
    %704 = vmatpush1.msra.mxu0 0.0
    %705 = vmatprep.subr.mxu0 0.0
    %706 = vmatpush1.msra.mxu0 0.0
    %707 = vmatprep.subr.mxu0 0.0
    %708 = vmatpush1.msra.mxu0 0.0
    %709 = vmatprep.subr.mxu0 0.0
    %710 = vmatpush1.msra.mxu0 0.0
    %711 = vmatprep.subr.mxu0 0.0
    %712 = vmatpush1.msra.mxu0 0.0
    %713 = vmatprep.subr.mxu0 0.0
    %714 = vmatpush1.msra.mxu0 0.0
    %715 = vmatprep.subr.mxu0 0.0
    %716 = vmatpush1.msra.mxu0 0.0
    %717 = vmatprep.subr.mxu0 0.0
    %718 = vmatpush1.msra.mxu0 0.0
    %719 = vmatprep.subr.mxu0 0.0
    %720 = vmatpush1.msra.mxu0 0.0
    %721 = vmatprep.subr.mxu0 0.0
    %722 = vmatpush1.msra.mxu0 0.0
    %723 = vmatprep.subr.mxu0 0.0
    %724 = vmatpush1.msra.mxu0 0.0
    %725 = vmatprep.subr.mxu0 0.0
    %726 = vmatpush1.msra.mxu0 0.0
    %727 = vmatprep.subr.mxu0 0.0
    %728 = vmatpush1.msra.mxu0 0.0
    %729 = vmatprep.subr.mxu0 %v622
    %730 = vmatpush1.msra.mxu0 %v621
    %731 = vmatprep.subr.mxu0 0.0
    %732 = vmatpush2.msra.mxu0 0.0
    %733 = vmatprep.subr.mxu0 0.0
    %734 = vmatpush2.msra.mxu0 0.0
    %735 = vmatprep.subr.mxu0 0.0
    %736 = vmatpush2.msra.mxu0 0.0
    %737 = vmatprep.subr.mxu0 0.0
    %738 = vmatpush2.msra.mxu0 0.0
    %739 = vmatprep.subr.mxu0 0.0
    %740 = vmatpush2.msra.mxu0 0.0
    %741 = vmatprep.subr.mxu0 0.0
    %742 = vmatpush2.msra.mxu0 0.0
    %743 = vmatprep.subr.mxu0 0.0
    %744 = vmatpush2.msra.mxu0 0.0
    %745 = vmatprep.subr.mxu0 0.0
    %746 = vmatpush2.msra.mxu0 0.0
    %747 = vmatprep.subr.mxu0 0.0
    %748 = vmatpush2.msra.mxu0 0.0
    %749 = vmatprep.subr.mxu0 0.0
    %750 = vmatpush2.msra.mxu0 0.0
    %751 = vmatprep.subr.mxu0 0.0
    %752 = vmatpush2.msra.mxu0 0.0
    %753 = vmatprep.subr.mxu0 0.0
    %754 = vmatpush2.msra.mxu0 0.0
    %755 = vmatprep.subr.mxu0 0.0
    %756 = vmatpush2.msra.mxu0 0.0
    %757 = vmatprep.subr.mxu0 0.0
    %758 = vmatpush2.msra.mxu0 0.0
    %759 = vmatprep.subr.mxu0 0.0
    %760 = vmatpush2.msra.mxu0 0.0
    %761 = vmatprep.subr.mxu0 0.0
    %762 = vmatpush2.msra.mxu0 0.0
    %763 = vmatprep.mubr.f32.mxu0 0.0
    %764 = vmatmul.mubr.f32.gmra.mxu0 %v626
    %v765 = vpop.f32.mrf.mxu0
    %v766 = vadd.f32 0.0, %v765
    %v767 = vpop.f32.mrf.mxu0
    %v768 = vadd.f32 0.0, %v767
    %769 = vdwg.mxu0
    %v770 = vadd.f32 %v586, %v695
    %v771 = vadd.f32 %v587, %v697
    %v772 = vadd.f32 %v588, %v766
    %v773 = vadd.f32 %v589, %v768
    %s774 = scalar_lea.vmem %s2, 32
    %v775 = vld [vmem:[%s774] sm:$0xff]
    %v777 = vsel %vm115, %v775, 0
    %779 = vmatprep.subr.mxu0 0.0
    %780 = vmatpush1.msra.mxu0 0.0
    %781 = vmatprep.subr.mxu0 0.0
    %782 = vmatpush1.msra.mxu0 0.0
    %783 = vmatprep.subr.mxu0 0.0
    %784 = vmatpush1.msra.mxu0 0.0
    %785 = vmatprep.subr.mxu0 0.0
    %786 = vmatpush1.msra.mxu0 0.0
    %787 = vmatprep.subr.mxu0 0.0
    %788 = vmatpush1.msra.mxu0 0.0
    %789 = vmatprep.subr.mxu0 0.0
    %790 = vmatpush1.msra.mxu0 0.0
    %791 = vmatprep.subr.mxu0 0.0
    %792 = vmatpush1.msra.mxu0 0.0
    %793 = vmatprep.subr.mxu0 0.0
    %794 = vmatpush1.msra.mxu0 0.0
    %795 = vmatprep.subr.mxu0 0.0
    %796 = vmatpush1.msra.mxu0 0.0
    %797 = vmatprep.subr.mxu0 0.0
    %798 = vmatpush1.msra.mxu0 0.0
    %799 = vmatprep.subr.mxu0 0.0
    %800 = vmatpush1.msra.mxu0 0.0
    %801 = vmatprep.subr.mxu0 0.0
    %802 = vmatpush1.msra.mxu0 0.0
    %803 = vmatprep.subr.mxu0 0.0
    %804 = vmatpush1.msra.mxu0 0.0
    %805 = vmatprep.subr.mxu0 0.0
    %806 = vmatpush1.msra.mxu0 0.0
    %807 = vmatprep.subr.mxu0 0.0
    %808 = vmatpush1.msra.mxu0 0.0
    %809 = vmatprep.subr.mxu0 %v41
    %810 = vmatpush1.msra.mxu0 %v40
    %811 = vmatprep.subr.mxu0 0.0
    %812 = vmatpush2.msra.mxu0 0.0
    %813 = vmatprep.subr.mxu0 0.0
    %814 = vmatpush2.msra.mxu0 0.0
    %815 = vmatprep.subr.mxu0 0.0
    %816 = vmatpush2.msra.mxu0 0.0
    %817 = vmatprep.subr.mxu0 0.0
    %818 = vmatpush2.msra.mxu0 0.0
    %819 = vmatprep.subr.mxu0 0.0
    %820 = vmatpush2.msra.mxu0 0.0
    %821 = vmatprep.subr.mxu0 0.0
    %822 = vmatpush2.msra.mxu0 0.0
    %823 = vmatprep.subr.mxu0 0.0
    %824 = vmatpush2.msra.mxu0 0.0
    %825 = vmatprep.subr.mxu0 0.0
    %826 = vmatpush2.msra.mxu0 0.0
    %827 = vmatprep.subr.mxu0 0.0
    %828 = vmatpush2.msra.mxu0 0.0
    %829 = vmatprep.subr.mxu0 0.0
    %830 = vmatpush2.msra.mxu0 0.0
    %831 = vmatprep.subr.mxu0 0.0
    %832 = vmatpush2.msra.mxu0 0.0
    %833 = vmatprep.subr.mxu0 0.0
    %834 = vmatpush2.msra.mxu0 0.0
    %835 = vmatprep.subr.mxu0 0.0
    %836 = vmatpush2.msra.mxu0 0.0
    %837 = vmatprep.subr.mxu0 0.0
    %838 = vmatpush2.msra.mxu0 0.0
    %839 = vmatprep.subr.mxu0 0.0
    %840 = vmatpush2.msra.mxu0 0.0
    %841 = vmatprep.subr.mxu0 0.0
    %842 = vmatpush2.msra.mxu0 0.0
    %843 = vmatprep.mubr.f32.mxu0 0.0
    %844 = vmatmul.mubr.f32.gmra.mxu0 %v777
    %v845 = vpop.f32.mrf.mxu0
    %v846 = vadd.f32 0.0, %v845
    %v847 = vpop.f32.mrf.mxu0
    %v848 = vadd.f32 0.0, %v847
    %849 = vdwg.mxu0
    %850 = vmatprep.subr.mxu0 0.0
    %851 = vmatpush1.msra.mxu0 0.0
    %852 = vmatprep.subr.mxu0 0.0
    %853 = vmatpush1.msra.mxu0 0.0
    %854 = vmatprep.subr.mxu0 0.0
    %855 = vmatpush1.msra.mxu0 0.0
    %856 = vmatprep.subr.mxu0 0.0
    %857 = vmatpush1.msra.mxu0 0.0
    %858 = vmatprep.subr.mxu0 0.0
    %859 = vmatpush1.msra.mxu0 0.0
    %860 = vmatprep.subr.mxu0 0.0
    %861 = vmatpush1.msra.mxu0 0.0
    %862 = vmatprep.subr.mxu0 0.0
    %863 = vmatpush1.msra.mxu0 0.0
    %864 = vmatprep.subr.mxu0 0.0
    %865 = vmatpush1.msra.mxu0 0.0
    %866 = vmatprep.subr.mxu0 0.0
    %867 = vmatpush1.msra.mxu0 0.0
    %868 = vmatprep.subr.mxu0 0.0
    %869 = vmatpush1.msra.mxu0 0.0
    %870 = vmatprep.subr.mxu0 0.0
    %871 = vmatpush1.msra.mxu0 0.0
    %872 = vmatprep.subr.mxu0 0.0
    %873 = vmatpush1.msra.mxu0 0.0
    %874 = vmatprep.subr.mxu0 0.0
    %875 = vmatpush1.msra.mxu0 0.0
    %876 = vmatprep.subr.mxu0 0.0
    %877 = vmatpush1.msra.mxu0 0.0
    %878 = vmatprep.subr.mxu0 0.0
    %879 = vmatpush1.msra.mxu0 0.0
    %880 = vmatprep.subr.mxu0 %v43
    %881 = vmatpush1.msra.mxu0 %v42
    %882 = vmatprep.subr.mxu0 0.0
    %883 = vmatpush2.msra.mxu0 0.0
    %884 = vmatprep.subr.mxu0 0.0
    %885 = vmatpush2.msra.mxu0 0.0
    %886 = vmatprep.subr.mxu0 0.0
    %887 = vmatpush2.msra.mxu0 0.0
    %888 = vmatprep.subr.mxu0 0.0
    %889 = vmatpush2.msra.mxu0 0.0
    %890 = vmatprep.subr.mxu0 0.0
    %891 = vmatpush2.msra.mxu0 0.0
    %892 = vmatprep.subr.mxu0 0.0
    %893 = vmatpush2.msra.mxu0 0.0
    %894 = vmatprep.subr.mxu0 0.0
    %895 = vmatpush2.msra.mxu0 0.0
    %896 = vmatprep.subr.mxu0 0.0
    %897 = vmatpush2.msra.mxu0 0.0
    %898 = vmatprep.subr.mxu0 0.0
    %899 = vmatpush2.msra.mxu0 0.0
    %900 = vmatprep.subr.mxu0 0.0
    %901 = vmatpush2.msra.mxu0 0.0
    %902 = vmatprep.subr.mxu0 0.0
    %903 = vmatpush2.msra.mxu0 0.0
    %904 = vmatprep.subr.mxu0 0.0
    %905 = vmatpush2.msra.mxu0 0.0
    %906 = vmatprep.subr.mxu0 0.0
    %907 = vmatpush2.msra.mxu0 0.0
    %908 = vmatprep.subr.mxu0 0.0
    %909 = vmatpush2.msra.mxu0 0.0
    %910 = vmatprep.subr.mxu0 0.0
    %911 = vmatpush2.msra.mxu0 0.0
    %912 = vmatprep.subr.mxu0 0.0
    %913 = vmatpush2.msra.mxu0 0.0
    %914 = vmatprep.mubr.f32.mxu0 0.0
    %915 = vmatmul.mubr.f32.gmra.mxu0 %v777
    %v916 = vpop.f32.mrf.mxu0
    %v917 = vadd.f32 0.0, %v916
    %v918 = vpop.f32.mrf.mxu0
    %v919 = vadd.f32 0.0, %v918
    %920 = vdwg.mxu0
    %v921 = vadd.f32 %v770, %v846
    %v922 = vadd.f32 %v771, %v848
    %v923 = vadd.f32 %v772, %v917
    %v924 = vadd.f32 %v773, %v919
    %925 = vrot.lane.b32.xlu0 %v40, 127
    %v926 = vpop.permute.xlu0 %925
    %927 = vrot.lane.b32.xlu0 %v41, 127
    %v928 = vpop.permute.xlu0 %927
    %929 = vrot.lane.b32.xlu0 %v42, 127
    %v930 = vpop.permute.xlu0 %929
    %931 = vrot.lane.b32.xlu0 %v43, 127
    %v932 = vpop.permute.xlu0 %931
    %vm933 = vcmp.lt.s32.totalorder %v53, 127
    %v934 = vsel %vm933, %v930, %v932
    %v935 = vsel %vm933, %v928, %v930
    %v936 = vsel %vm933, %v926, %v928
    %v937 = vsel %vm933, %v932, %v926
    %v938 = vlaneseq
    %v939 = vshrl.u32 %v938, 7
    %v940 = vsub.s32 4, %v939
    %v941 = vrot.slane %v36, %v940
    %v942 = vlaneseq
    %v943 = vshrl.u32 %v942, 7
    %v944 = vsub.s32 4, %v943
    %v945 = vrot.slane %v37, %v944
    %v946 = vlaneseq
    %v947 = vshrl.u32 %v946, 7
    %v948 = vsub.s32 4, %v947
    %v949 = vrot.slane %v38, %v948
    %v950 = vlaneseq
    %v951 = vshrl.u32 %v950, 7
    %v952 = vsub.s32 4, %v951
    %v953 = vrot.slane %v39, %v952
    %v954 = vmul.f32 %v936, %v941
    %v955 = vmul.f32 %v935, %v945
    %v956 = vmul.f32 %v934, %v949
    %v957 = vmul.f32 %v937, %v953
    %s958 = scalar_lea.vmem %s2, 40
    %v959 = vld [vmem:[%s958] sm:$0xff]
    %v961 = vsel %vm115, %v959, 0
    %963 = vmatprep.subr.mxu0 0.0
    %964 = vmatpush1.msra.mxu0 0.0
    %965 = vmatprep.subr.mxu0 0.0
    %966 = vmatpush1.msra.mxu0 0.0
    %967 = vmatprep.subr.mxu0 0.0
    %968 = vmatpush1.msra.mxu0 0.0
    %969 = vmatprep.subr.mxu0 0.0
    %970 = vmatpush1.msra.mxu0 0.0
    %971 = vmatprep.subr.mxu0 0.0
    %972 = vmatpush1.msra.mxu0 0.0
    %973 = vmatprep.subr.mxu0 0.0
    %974 = vmatpush1.msra.mxu0 0.0
    %975 = vmatprep.subr.mxu0 0.0
    %976 = vmatpush1.msra.mxu0 0.0
    %977 = vmatprep.subr.mxu0 0.0
    %978 = vmatpush1.msra.mxu0 0.0
    %979 = vmatprep.subr.mxu0 0.0
    %980 = vmatpush1.msra.mxu0 0.0
    %981 = vmatprep.subr.mxu0 0.0
    %982 = vmatpush1.msra.mxu0 0.0
    %983 = vmatprep.subr.mxu0 0.0
    %984 = vmatpush1.msra.mxu0 0.0
    %985 = vmatprep.subr.mxu0 0.0
    %986 = vmatpush1.msra.mxu0 0.0
    %987 = vmatprep.subr.mxu0 0.0
    %988 = vmatpush1.msra.mxu0 0.0
    %989 = vmatprep.subr.mxu0 0.0
    %990 = vmatpush1.msra.mxu0 0.0
    %991 = vmatprep.subr.mxu0 0.0
    %992 = vmatpush1.msra.mxu0 0.0
    %993 = vmatprep.subr.mxu0 %v955
    %994 = vmatpush1.msra.mxu0 %v954
    %995 = vmatprep.subr.mxu0 0.0
    %996 = vmatpush2.msra.mxu0 0.0
    %997 = vmatprep.subr.mxu0 0.0
    %998 = vmatpush2.msra.mxu0 0.0
    %999 = vmatprep.subr.mxu0 0.0
    %1000 = vmatpush2.msra.mxu0 0.0
    %1001 = vmatprep.subr.mxu0 0.0
    %1002 = vmatpush2.msra.mxu0 0.0
    %1003 = vmatprep.subr.mxu0 0.0
    %1004 = vmatpush2.msra.mxu0 0.0
    %1005 = vmatprep.subr.mxu0 0.0
    %1006 = vmatpush2.msra.mxu0 0.0
    %1007 = vmatprep.subr.mxu0 0.0
    %1008 = vmatpush2.msra.mxu0 0.0
    %1009 = vmatprep.subr.mxu0 0.0
    %1010 = vmatpush2.msra.mxu0 0.0
    %1011 = vmatprep.subr.mxu0 0.0
    %1012 = vmatpush2.msra.mxu0 0.0
    %1013 = vmatprep.subr.mxu0 0.0
    %1014 = vmatpush2.msra.mxu0 0.0
    %1015 = vmatprep.subr.mxu0 0.0
    %1016 = vmatpush2.msra.mxu0 0.0
    %1017 = vmatprep.subr.mxu0 0.0
    %1018 = vmatpush2.msra.mxu0 0.0
    %1019 = vmatprep.subr.mxu0 0.0
    %1020 = vmatpush2.msra.mxu0 0.0
    %1021 = vmatprep.subr.mxu0 0.0
    %1022 = vmatpush2.msra.mxu0 0.0
    %1023 = vmatprep.subr.mxu0 0.0
    %1024 = vmatpush2.msra.mxu0 0.0
    %1025 = vmatprep.subr.mxu0 0.0
    %1026 = vmatpush2.msra.mxu0 0.0
    %1027 = vmatprep.mubr.f32.mxu0 0.0
    %1028 = vmatmul.mubr.f32.gmra.mxu0 %v961
    %v1029 = vpop.f32.mrf.mxu0
    %v1030 = vadd.f32 0.0, %v1029
    %v1031 = vpop.f32.mrf.mxu0
    %v1032 = vadd.f32 0.0, %v1031
    %1033 = vdwg.mxu0
    %1034 = vmatprep.subr.mxu0 0.0
    %1035 = vmatpush1.msra.mxu0 0.0
    %1036 = vmatprep.subr.mxu0 0.0
    %1037 = vmatpush1.msra.mxu0 0.0
    %1038 = vmatprep.subr.mxu0 0.0
    %1039 = vmatpush1.msra.mxu0 0.0
    %1040 = vmatprep.subr.mxu0 0.0
    %1041 = vmatpush1.msra.mxu0 0.0
    %1042 = vmatprep.subr.mxu0 0.0
    %1043 = vmatpush1.msra.mxu0 0.0
    %1044 = vmatprep.subr.mxu0 0.0
    %1045 = vmatpush1.msra.mxu0 0.0
    %1046 = vmatprep.subr.mxu0 0.0
    %1047 = vmatpush1.msra.mxu0 0.0
    %1048 = vmatprep.subr.mxu0 0.0
    %1049 = vmatpush1.msra.mxu0 0.0
    %1050 = vmatprep.subr.mxu0 0.0
    %1051 = vmatpush1.msra.mxu0 0.0
    %1052 = vmatprep.subr.mxu0 0.0
    %1053 = vmatpush1.msra.mxu0 0.0
    %1054 = vmatprep.subr.mxu0 0.0
    %1055 = vmatpush1.msra.mxu0 0.0
    %1056 = vmatprep.subr.mxu0 0.0
    %1057 = vmatpush1.msra.mxu0 0.0
    %1058 = vmatprep.subr.mxu0 0.0
    %1059 = vmatpush1.msra.mxu0 0.0
    %1060 = vmatprep.subr.mxu0 0.0
    %1061 = vmatpush1.msra.mxu0 0.0
    %1062 = vmatprep.subr.mxu0 0.0
    %1063 = vmatpush1.msra.mxu0 0.0
    %1064 = vmatprep.subr.mxu0 %v957
    %1065 = vmatpush1.msra.mxu0 %v956
    %1066 = vmatprep.subr.mxu0 0.0
    %1067 = vmatpush2.msra.mxu0 0.0
    %1068 = vmatprep.subr.mxu0 0.0
    %1069 = vmatpush2.msra.mxu0 0.0
    %1070 = vmatprep.subr.mxu0 0.0
    %1071 = vmatpush2.msra.mxu0 0.0
    %1072 = vmatprep.subr.mxu0 0.0
    %1073 = vmatpush2.msra.mxu0 0.0
    %1074 = vmatprep.subr.mxu0 0.0
    %1075 = vmatpush2.msra.mxu0 0.0
    %1076 = vmatprep.subr.mxu0 0.0
    %1077 = vmatpush2.msra.mxu0 0.0
    %1078 = vmatprep.subr.mxu0 0.0
    %1079 = vmatpush2.msra.mxu0 0.0
    %1080 = vmatprep.subr.mxu0 0.0
    %1081 = vmatpush2.msra.mxu0 0.0
    %1082 = vmatprep.subr.mxu0 0.0
    %1083 = vmatpush2.msra.mxu0 0.0
    %1084 = vmatprep.subr.mxu0 0.0
    %1085 = vmatpush2.msra.mxu0 0.0
    %1086 = vmatprep.subr.mxu0 0.0
    %1087 = vmatpush2.msra.mxu0 0.0
    %1088 = vmatprep.subr.mxu0 0.0
    %1089 = vmatpush2.msra.mxu0 0.0
    %1090 = vmatprep.subr.mxu0 0.0
    %1091 = vmatpush2.msra.mxu0 0.0
    %1092 = vmatprep.subr.mxu0 0.0
    %1093 = vmatpush2.msra.mxu0 0.0
    %1094 = vmatprep.subr.mxu0 0.0
    %1095 = vmatpush2.msra.mxu0 0.0
    %1096 = vmatprep.subr.mxu0 0.0
    %1097 = vmatpush2.msra.mxu0 0.0
    %1098 = vmatprep.mubr.f32.mxu0 0.0
    %1099 = vmatmul.mubr.f32.gmra.mxu0 %v961
    %v1100 = vpop.f32.mrf.mxu0
    %v1101 = vadd.f32 0.0, %v1100
    %v1102 = vpop.f32.mrf.mxu0
    %v1103 = vadd.f32 0.0, %v1102
    %1104 = vdwg.mxu0
    %v1105 = vadd.f32 %v921, %v1030
    %v1106 = vadd.f32 %v922, %v1032
    %v1107 = vadd.f32 %v923, %v1101
    %v1108 = vadd.f32 %v924, %v1103
    %1109 = vrot.lane.b32.xlu0 %v40, 113
    %v1110 = vpop.permute.xlu0 %1109
    %1111 = vrot.lane.b32.xlu0 %v41, 113
    %v1112 = vpop.permute.xlu0 %1111
    %1113 = vrot.lane.b32.xlu0 %v42, 113
    %v1114 = vpop.permute.xlu0 %1113
    %1115 = vrot.lane.b32.xlu0 %v43, 113
    %v1116 = vpop.permute.xlu0 %1115
    %vm1117 = vcmp.lt.s32.totalorder %v53, 113
    %v1118 = vsel %vm1117, %v1114, %v1116
    %v1119 = vsel %vm1117, %v1112, %v1114
    %v1120 = vsel %vm1117, %v1110, %v1112
    %v1121 = vsel %vm1117, %v1116, %v1110
    %v1122 = vlaneseq
    %v1123 = vshrl.u32 %v1122, 7
    %v1124 = vsub.s32 5, %v1123
    %v1125 = vrot.slane %v36, %v1124
    %v1126 = vlaneseq
    %v1127 = vshrl.u32 %v1126, 7
    %v1128 = vsub.s32 5, %v1127
    %v1129 = vrot.slane %v37, %v1128
    %v1130 = vlaneseq
    %v1131 = vshrl.u32 %v1130, 7
    %v1132 = vsub.s32 5, %v1131
    %v1133 = vrot.slane %v38, %v1132
    %v1134 = vlaneseq
    %v1135 = vshrl.u32 %v1134, 7
    %v1136 = vsub.s32 5, %v1135
    %v1137 = vrot.slane %v39, %v1136
    %v1138 = vmul.f32 %v1120, %v1125
    %v1139 = vmul.f32 %v1119, %v1129
    %v1140 = vmul.f32 %v1118, %v1133
    %v1141 = vmul.f32 %v1121, %v1137
    %s1142 = scalar_lea.vmem %s2, 48
    %v1143 = vld [vmem:[%s1142] sm:$0xff]
    %v1145 = vsel %vm115, %v1143, 0
    %1147 = vmatprep.subr.mxu0 0.0
    %1148 = vmatpush1.msra.mxu0 0.0
    %1149 = vmatprep.subr.mxu0 0.0
    %1150 = vmatpush1.msra.mxu0 0.0
    %1151 = vmatprep.subr.mxu0 0.0
    %1152 = vmatpush1.msra.mxu0 0.0
    %1153 = vmatprep.subr.mxu0 0.0
    %1154 = vmatpush1.msra.mxu0 0.0
    %1155 = vmatprep.subr.mxu0 0.0
    %1156 = vmatpush1.msra.mxu0 0.0
    %1157 = vmatprep.subr.mxu0 0.0
    %1158 = vmatpush1.msra.mxu0 0.0
    %1159 = vmatprep.subr.mxu0 0.0
    %1160 = vmatpush1.msra.mxu0 0.0
    %1161 = vmatprep.subr.mxu0 0.0
    %1162 = vmatpush1.msra.mxu0 0.0
    %1163 = vmatprep.subr.mxu0 0.0
    %1164 = vmatpush1.msra.mxu0 0.0
    %1165 = vmatprep.subr.mxu0 0.0
    %1166 = vmatpush1.msra.mxu0 0.0
    %1167 = vmatprep.subr.mxu0 0.0
    %1168 = vmatpush1.msra.mxu0 0.0
    %1169 = vmatprep.subr.mxu0 0.0
    %1170 = vmatpush1.msra.mxu0 0.0
    %1171 = vmatprep.subr.mxu0 0.0
    %1172 = vmatpush1.msra.mxu0 0.0
    %1173 = vmatprep.subr.mxu0 0.0
    %1174 = vmatpush1.msra.mxu0 0.0
    %1175 = vmatprep.subr.mxu0 0.0
    %1176 = vmatpush1.msra.mxu0 0.0
    %1177 = vmatprep.subr.mxu0 %v1139
    %1178 = vmatpush1.msra.mxu0 %v1138
    %1179 = vmatprep.subr.mxu0 0.0
    %1180 = vmatpush2.msra.mxu0 0.0
    %1181 = vmatprep.subr.mxu0 0.0
    %1182 = vmatpush2.msra.mxu0 0.0
    %1183 = vmatprep.subr.mxu0 0.0
    %1184 = vmatpush2.msra.mxu0 0.0
    %1185 = vmatprep.subr.mxu0 0.0
    %1186 = vmatpush2.msra.mxu0 0.0
    %1187 = vmatprep.subr.mxu0 0.0
    %1188 = vmatpush2.msra.mxu0 0.0
    %1189 = vmatprep.subr.mxu0 0.0
    %1190 = vmatpush2.msra.mxu0 0.0
    %1191 = vmatprep.subr.mxu0 0.0
    %1192 = vmatpush2.msra.mxu0 0.0
    %1193 = vmatprep.subr.mxu0 0.0
    %1194 = vmatpush2.msra.mxu0 0.0
    %1195 = vmatprep.subr.mxu0 0.0
    %1196 = vmatpush2.msra.mxu0 0.0
    %1197 = vmatprep.subr.mxu0 0.0
    %1198 = vmatpush2.msra.mxu0 0.0
    %1199 = vmatprep.subr.mxu0 0.0
    %1200 = vmatpush2.msra.mxu0 0.0
    %1201 = vmatprep.subr.mxu0 0.0
    %1202 = vmatpush2.msra.mxu0 0.0
    %1203 = vmatprep.subr.mxu0 0.0
    %1204 = vmatpush2.msra.mxu0 0.0
    %1205 = vmatprep.subr.mxu0 0.0
    %1206 = vmatpush2.msra.mxu0 0.0
    %1207 = vmatprep.subr.mxu0 0.0
    %1208 = vmatpush2.msra.mxu0 0.0
    %1209 = vmatprep.subr.mxu0 0.0
    %1210 = vmatpush2.msra.mxu0 0.0
    %1211 = vmatprep.mubr.f32.mxu0 0.0
    %1212 = vmatmul.mubr.f32.gmra.mxu0 %v1145
    %v1213 = vpop.f32.mrf.mxu0
    %v1214 = vadd.f32 0.0, %v1213
    %v1215 = vpop.f32.mrf.mxu0
    %v1216 = vadd.f32 0.0, %v1215
    %1217 = vdwg.mxu0
    %1218 = vmatprep.subr.mxu0 0.0
    %1219 = vmatpush1.msra.mxu0 0.0
    %1220 = vmatprep.subr.mxu0 0.0
    %1221 = vmatpush1.msra.mxu0 0.0
    %1222 = vmatprep.subr.mxu0 0.0
    %1223 = vmatpush1.msra.mxu0 0.0
    %1224 = vmatprep.subr.mxu0 0.0
    %1225 = vmatpush1.msra.mxu0 0.0
    %1226 = vmatprep.subr.mxu0 0.0
    %1227 = vmatpush1.msra.mxu0 0.0
    %1228 = vmatprep.subr.mxu0 0.0
    %1229 = vmatpush1.msra.mxu0 0.0
    %1230 = vmatprep.subr.mxu0 0.0
    %1231 = vmatpush1.msra.mxu0 0.0
    %1232 = vmatprep.subr.mxu0 0.0
    %1233 = vmatpush1.msra.mxu0 0.0
    %1234 = vmatprep.subr.mxu0 0.0
    %1235 = vmatpush1.msra.mxu0 0.0
    %1236 = vmatprep.subr.mxu0 0.0
    %1237 = vmatpush1.msra.mxu0 0.0
    %1238 = vmatprep.subr.mxu0 0.0
    %1239 = vmatpush1.msra.mxu0 0.0
    %1240 = vmatprep.subr.mxu0 0.0
    %1241 = vmatpush1.msra.mxu0 0.0
    %1242 = vmatprep.subr.mxu0 0.0
    %1243 = vmatpush1.msra.mxu0 0.0
    %1244 = vmatprep.subr.mxu0 0.0
    %1245 = vmatpush1.msra.mxu0 0.0
    %1246 = vmatprep.subr.mxu0 0.0
    %1247 = vmatpush1.msra.mxu0 0.0
    %1248 = vmatprep.subr.mxu0 %v1141
    %1249 = vmatpush1.msra.mxu0 %v1140
    %1250 = vmatprep.subr.mxu0 0.0
    %1251 = vmatpush2.msra.mxu0 0.0
    %1252 = vmatprep.subr.mxu0 0.0
    %1253 = vmatpush2.msra.mxu0 0.0
    %1254 = vmatprep.subr.mxu0 0.0
    %1255 = vmatpush2.msra.mxu0 0.0
    %1256 = vmatprep.subr.mxu0 0.0
    %1257 = vmatpush2.msra.mxu0 0.0
    %1258 = vmatprep.subr.mxu0 0.0
    %1259 = vmatpush2.msra.mxu0 0.0
    %1260 = vmatprep.subr.mxu0 0.0
    %1261 = vmatpush2.msra.mxu0 0.0
    %1262 = vmatprep.subr.mxu0 0.0
    %1263 = vmatpush2.msra.mxu0 0.0
    %1264 = vmatprep.subr.mxu0 0.0
    %1265 = vmatpush2.msra.mxu0 0.0
    %1266 = vmatprep.subr.mxu0 0.0
    %1267 = vmatpush2.msra.mxu0 0.0
    %1268 = vmatprep.subr.mxu0 0.0
    %1269 = vmatpush2.msra.mxu0 0.0
    %1270 = vmatprep.subr.mxu0 0.0
    %1271 = vmatpush2.msra.mxu0 0.0
    %1272 = vmatprep.subr.mxu0 0.0
    %1273 = vmatpush2.msra.mxu0 0.0
    %1274 = vmatprep.subr.mxu0 0.0
    %1275 = vmatpush2.msra.mxu0 0.0
    %1276 = vmatprep.subr.mxu0 0.0
    %1277 = vmatpush2.msra.mxu0 0.0
    %1278 = vmatprep.subr.mxu0 0.0
    %1279 = vmatpush2.msra.mxu0 0.0
    %1280 = vmatprep.subr.mxu0 0.0
    %1281 = vmatpush2.msra.mxu0 0.0
    %1282 = vmatprep.mubr.f32.mxu0 0.0
    %1283 = vmatmul.mubr.f32.gmra.mxu0 %v1145
    %v1284 = vpop.f32.mrf.mxu0
    %v1285 = vadd.f32 0.0, %v1284
    %v1286 = vpop.f32.mrf.mxu0
    %v1287 = vadd.f32 0.0, %v1286
    %1288 = vdwg.mxu0
    %v1289 = vadd.f32 %v1105, %v1214
    %v1290 = vadd.f32 %v1106, %v1216
    %v1291 = vadd.f32 %v1107, %v1285
    %v1292 = vadd.f32 %v1108, %v1287
    %1293 = vrot.lane.b32.xlu0 %v40, 112
    %v1294 = vpop.permute.xlu0 %1293
    %1295 = vrot.lane.b32.xlu0 %v41, 112
    %v1296 = vpop.permute.xlu0 %1295
    %1297 = vrot.lane.b32.xlu0 %v42, 112
    %v1298 = vpop.permute.xlu0 %1297
    %1299 = vrot.lane.b32.xlu0 %v43, 112
    %v1300 = vpop.permute.xlu0 %1299
    %vm1301 = vcmp.lt.s32.totalorder %v53, 112
    %v1302 = vsel %vm1301, %v1298, %v1300
    %v1303 = vsel %vm1301, %v1296, %v1298
    %v1304 = vsel %vm1301, %v1294, %v1296
    %v1305 = vsel %vm1301, %v1300, %v1294
    %v1306 = vlaneseq
    %v1307 = vshrl.u32 %v1306, 7
    %v1308 = vsub.s32 6, %v1307
    %v1309 = vrot.slane %v36, %v1308
    %v1310 = vlaneseq
    %v1311 = vshrl.u32 %v1310, 7
    %v1312 = vsub.s32 6, %v1311
    %v1313 = vrot.slane %v37, %v1312
    %v1314 = vlaneseq
    %v1315 = vshrl.u32 %v1314, 7
    %v1316 = vsub.s32 6, %v1315
    %v1317 = vrot.slane %v38, %v1316
    %v1318 = vlaneseq
    %v1319 = vshrl.u32 %v1318, 7
    %v1320 = vsub.s32 6, %v1319
    %v1321 = vrot.slane %v39, %v1320
    %v1322 = vmul.f32 %v1304, %v1309
    %v1323 = vmul.f32 %v1303, %v1313
    %v1324 = vmul.f32 %v1302, %v1317
    %v1325 = vmul.f32 %v1305, %v1321
    %s1326 = scalar_lea.vmem %s2, 56
    %v1327 = vld [vmem:[%s1326] sm:$0xff]
    %v1329 = vsel %vm115, %v1327, 0
    %1331 = vmatprep.subr.mxu0 0.0
    %1332 = vmatpush1.msra.mxu0 0.0
    %1333 = vmatprep.subr.mxu0 0.0
    %1334 = vmatpush1.msra.mxu0 0.0
    %1335 = vmatprep.subr.mxu0 0.0
    %1336 = vmatpush1.msra.mxu0 0.0
    %1337 = vmatprep.subr.mxu0 0.0
    %1338 = vmatpush1.msra.mxu0 0.0
    %1339 = vmatprep.subr.mxu0 0.0
    %1340 = vmatpush1.msra.mxu0 0.0
    %1341 = vmatprep.subr.mxu0 0.0
    %1342 = vmatpush1.msra.mxu0 0.0
    %1343 = vmatprep.subr.mxu0 0.0
    %1344 = vmatpush1.msra.mxu0 0.0
    %1345 = vmatprep.subr.mxu0 0.0
    %1346 = vmatpush1.msra.mxu0 0.0
    %1347 = vmatprep.subr.mxu0 0.0
    %1348 = vmatpush1.msra.mxu0 0.0
    %1349 = vmatprep.subr.mxu0 0.0
    %1350 = vmatpush1.msra.mxu0 0.0
    %1351 = vmatprep.subr.mxu0 0.0
    %1352 = vmatpush1.msra.mxu0 0.0
    %1353 = vmatprep.subr.mxu0 0.0
    %1354 = vmatpush1.msra.mxu0 0.0
    %1355 = vmatprep.subr.mxu0 0.0
    %1356 = vmatpush1.msra.mxu0 0.0
    %1357 = vmatprep.subr.mxu0 0.0
    %1358 = vmatpush1.msra.mxu0 0.0
    %1359 = vmatprep.subr.mxu0 0.0
    %1360 = vmatpush1.msra.mxu0 0.0
    %1361 = vmatprep.subr.mxu0 %v1323
    %1362 = vmatpush1.msra.mxu0 %v1322
    %1363 = vmatprep.subr.mxu0 0.0
    %1364 = vmatpush2.msra.mxu0 0.0
    %1365 = vmatprep.subr.mxu0 0.0
    %1366 = vmatpush2.msra.mxu0 0.0
    %1367 = vmatprep.subr.mxu0 0.0
    %1368 = vmatpush2.msra.mxu0 0.0
    %1369 = vmatprep.subr.mxu0 0.0
    %1370 = vmatpush2.msra.mxu0 0.0
    %1371 = vmatprep.subr.mxu0 0.0
    %1372 = vmatpush2.msra.mxu0 0.0
    %1373 = vmatprep.subr.mxu0 0.0
    %1374 = vmatpush2.msra.mxu0 0.0
    %1375 = vmatprep.subr.mxu0 0.0
    %1376 = vmatpush2.msra.mxu0 0.0
    %1377 = vmatprep.subr.mxu0 0.0
    %1378 = vmatpush2.msra.mxu0 0.0
    %1379 = vmatprep.subr.mxu0 0.0
    %1380 = vmatpush2.msra.mxu0 0.0
    %1381 = vmatprep.subr.mxu0 0.0
    %1382 = vmatpush2.msra.mxu0 0.0
    %1383 = vmatprep.subr.mxu0 0.0
    %1384 = vmatpush2.msra.mxu0 0.0
    %1385 = vmatprep.subr.mxu0 0.0
    %1386 = vmatpush2.msra.mxu0 0.0
    %1387 = vmatprep.subr.mxu0 0.0
    %1388 = vmatpush2.msra.mxu0 0.0
    %1389 = vmatprep.subr.mxu0 0.0
    %1390 = vmatpush2.msra.mxu0 0.0
    %1391 = vmatprep.subr.mxu0 0.0
    %1392 = vmatpush2.msra.mxu0 0.0
    %1393 = vmatprep.subr.mxu0 0.0
    %1394 = vmatpush2.msra.mxu0 0.0
    %1395 = vmatprep.mubr.f32.mxu0 0.0
    %1396 = vmatmul.mubr.f32.gmra.mxu0 %v1329
    %v1397 = vpop.f32.mrf.mxu0
    %v1398 = vadd.f32 0.0, %v1397
    %v1399 = vpop.f32.mrf.mxu0
    %v1400 = vadd.f32 0.0, %v1399
    %1401 = vdwg.mxu0
    %1402 = vmatprep.subr.mxu0 0.0
    %1403 = vmatpush1.msra.mxu0 0.0
    %1404 = vmatprep.subr.mxu0 0.0
    %1405 = vmatpush1.msra.mxu0 0.0
    %1406 = vmatprep.subr.mxu0 0.0
    %1407 = vmatpush1.msra.mxu0 0.0
    %1408 = vmatprep.subr.mxu0 0.0
    %1409 = vmatpush1.msra.mxu0 0.0
    %1410 = vmatprep.subr.mxu0 0.0
    %1411 = vmatpush1.msra.mxu0 0.0
    %1412 = vmatprep.subr.mxu0 0.0
    %1413 = vmatpush1.msra.mxu0 0.0
    %1414 = vmatprep.subr.mxu0 0.0
    %1415 = vmatpush1.msra.mxu0 0.0
    %1416 = vmatprep.subr.mxu0 0.0
    %1417 = vmatpush1.msra.mxu0 0.0
    %1418 = vmatprep.subr.mxu0 0.0
    %1419 = vmatpush1.msra.mxu0 0.0
    %1420 = vmatprep.subr.mxu0 0.0
    %1421 = vmatpush1.msra.mxu0 0.0
    %1422 = vmatprep.subr.mxu0 0.0
    %1423 = vmatpush1.msra.mxu0 0.0
    %1424 = vmatprep.subr.mxu0 0.0
    %1425 = vmatpush1.msra.mxu0 0.0
    %1426 = vmatprep.subr.mxu0 0.0
    %1427 = vmatpush1.msra.mxu0 0.0
    %1428 = vmatprep.subr.mxu0 0.0
    %1429 = vmatpush1.msra.mxu0 0.0
    %1430 = vmatprep.subr.mxu0 0.0
    %1431 = vmatpush1.msra.mxu0 0.0
    %1432 = vmatprep.subr.mxu0 %v1325
    %1433 = vmatpush1.msra.mxu0 %v1324
    %1434 = vmatprep.subr.mxu0 0.0
    %1435 = vmatpush2.msra.mxu0 0.0
    %1436 = vmatprep.subr.mxu0 0.0
    %1437 = vmatpush2.msra.mxu0 0.0
    %1438 = vmatprep.subr.mxu0 0.0
    %1439 = vmatpush2.msra.mxu0 0.0
    %1440 = vmatprep.subr.mxu0 0.0
    %1441 = vmatpush2.msra.mxu0 0.0
    %1442 = vmatprep.subr.mxu0 0.0
    %1443 = vmatpush2.msra.mxu0 0.0
    %1444 = vmatprep.subr.mxu0 0.0
    %1445 = vmatpush2.msra.mxu0 0.0
    %1446 = vmatprep.subr.mxu0 0.0
    %1447 = vmatpush2.msra.mxu0 0.0
    %1448 = vmatprep.subr.mxu0 0.0
    %1449 = vmatpush2.msra.mxu0 0.0
    %1450 = vmatprep.subr.mxu0 0.0
    %1451 = vmatpush2.msra.mxu0 0.0
    %1452 = vmatprep.subr.mxu0 0.0
    %1453 = vmatpush2.msra.mxu0 0.0
    %1454 = vmatprep.subr.mxu0 0.0
    %1455 = vmatpush2.msra.mxu0 0.0
    %1456 = vmatprep.subr.mxu0 0.0
    %1457 = vmatpush2.msra.mxu0 0.0
    %1458 = vmatprep.subr.mxu0 0.0
    %1459 = vmatpush2.msra.mxu0 0.0
    %1460 = vmatprep.subr.mxu0 0.0
    %1461 = vmatpush2.msra.mxu0 0.0
    %1462 = vmatprep.subr.mxu0 0.0
    %1463 = vmatpush2.msra.mxu0 0.0
    %1464 = vmatprep.subr.mxu0 0.0
    %1465 = vmatpush2.msra.mxu0 0.0
    %1466 = vmatprep.mubr.f32.mxu0 0.0
    %1467 = vmatmul.mubr.f32.gmra.mxu0 %v1329
    %v1468 = vpop.f32.mrf.mxu0
    %v1469 = vadd.f32 0.0, %v1468
    %v1470 = vpop.f32.mrf.mxu0
    %v1471 = vadd.f32 0.0, %v1470
    %1472 = vdwg.mxu0
    %v1473 = vadd.f32 %v1289, %v1398
    %v1474 = vadd.f32 %v1290, %v1400
    %v1475 = vadd.f32 %v1291, %v1469
    %v1476 = vadd.f32 %v1292, %v1471
    %1477 = vrot.lane.b32.xlu0 %v40, 111
    %v1478 = vpop.permute.xlu0 %1477
    %1479 = vrot.lane.b32.xlu0 %v41, 111
    %v1480 = vpop.permute.xlu0 %1479
    %1481 = vrot.lane.b32.xlu0 %v42, 111
    %v1482 = vpop.permute.xlu0 %1481
    %1483 = vrot.lane.b32.xlu0 %v43, 111
    %v1484 = vpop.permute.xlu0 %1483
    %vm1485 = vcmp.lt.s32.totalorder %v53, 111
    %v1486 = vsel %vm1485, %v1482, %v1484
    %v1487 = vsel %vm1485, %v1480, %v1482
    %v1488 = vsel %vm1485, %v1478, %v1480
    %v1489 = vsel %vm1485, %v1484, %v1478
    %v1490 = vlaneseq
    %v1491 = vshrl.u32 %v1490, 7
    %v1492 = vsub.s32 7, %v1491
    %v1493 = vrot.slane %v36, %v1492
    %v1494 = vlaneseq
    %v1495 = vshrl.u32 %v1494, 7
    %v1496 = vsub.s32 7, %v1495
    %v1497 = vrot.slane %v37, %v1496
    %v1498 = vlaneseq
    %v1499 = vshrl.u32 %v1498, 7
    %v1500 = vsub.s32 7, %v1499
    %v1501 = vrot.slane %v38, %v1500
    %v1502 = vlaneseq
    %v1503 = vshrl.u32 %v1502, 7
    %v1504 = vsub.s32 7, %v1503
    %v1505 = vrot.slane %v39, %v1504
    %v1506 = vmul.f32 %v1488, %v1493
    %v1507 = vmul.f32 %v1487, %v1497
    %v1508 = vmul.f32 %v1486, %v1501
    %v1509 = vmul.f32 %v1489, %v1505
    %s1510 = scalar_lea.vmem %s2, 64
    %v1511 = vld [vmem:[%s1510] sm:$0xff]
    %v1513 = vsel %vm115, %v1511, 0
    %1515 = vmatprep.subr.mxu0 0.0
    %1516 = vmatpush1.msra.mxu0 0.0
    %1517 = vmatprep.subr.mxu0 0.0
    %1518 = vmatpush1.msra.mxu0 0.0
    %1519 = vmatprep.subr.mxu0 0.0
    %1520 = vmatpush1.msra.mxu0 0.0
    %1521 = vmatprep.subr.mxu0 0.0
    %1522 = vmatpush1.msra.mxu0 0.0
    %1523 = vmatprep.subr.mxu0 0.0
    %1524 = vmatpush1.msra.mxu0 0.0
    %1525 = vmatprep.subr.mxu0 0.0
    %1526 = vmatpush1.msra.mxu0 0.0
    %1527 = vmatprep.subr.mxu0 0.0
    %1528 = vmatpush1.msra.mxu0 0.0
    %1529 = vmatprep.subr.mxu0 0.0
    %1530 = vmatpush1.msra.mxu0 0.0
    %1531 = vmatprep.subr.mxu0 0.0
    %1532 = vmatpush1.msra.mxu0 0.0
    %1533 = vmatprep.subr.mxu0 0.0
    %1534 = vmatpush1.msra.mxu0 0.0
    %1535 = vmatprep.subr.mxu0 0.0
    %1536 = vmatpush1.msra.mxu0 0.0
    %1537 = vmatprep.subr.mxu0 0.0
    %1538 = vmatpush1.msra.mxu0 0.0
    %1539 = vmatprep.subr.mxu0 0.0
    %1540 = vmatpush1.msra.mxu0 0.0
    %1541 = vmatprep.subr.mxu0 0.0
    %1542 = vmatpush1.msra.mxu0 0.0
    %1543 = vmatprep.subr.mxu0 0.0
    %1544 = vmatpush1.msra.mxu0 0.0
    %1545 = vmatprep.subr.mxu0 %v1507
    %1546 = vmatpush1.msra.mxu0 %v1506
    %1547 = vmatprep.subr.mxu0 0.0
    %1548 = vmatpush2.msra.mxu0 0.0
    %1549 = vmatprep.subr.mxu0 0.0
    %1550 = vmatpush2.msra.mxu0 0.0
    %1551 = vmatprep.subr.mxu0 0.0
    %1552 = vmatpush2.msra.mxu0 0.0
    %1553 = vmatprep.subr.mxu0 0.0
    %1554 = vmatpush2.msra.mxu0 0.0
    %1555 = vmatprep.subr.mxu0 0.0
    %1556 = vmatpush2.msra.mxu0 0.0
    %1557 = vmatprep.subr.mxu0 0.0
    %1558 = vmatpush2.msra.mxu0 0.0
    %1559 = vmatprep.subr.mxu0 0.0
    %1560 = vmatpush2.msra.mxu0 0.0
    %1561 = vmatprep.subr.mxu0 0.0
    %1562 = vmatpush2.msra.mxu0 0.0
    %1563 = vmatprep.subr.mxu0 0.0
    %1564 = vmatpush2.msra.mxu0 0.0
    %1565 = vmatprep.subr.mxu0 0.0
    %1566 = vmatpush2.msra.mxu0 0.0
    %1567 = vmatprep.subr.mxu0 0.0
    %1568 = vmatpush2.msra.mxu0 0.0
    %1569 = vmatprep.subr.mxu0 0.0
    %1570 = vmatpush2.msra.mxu0 0.0
    %1571 = vmatprep.subr.mxu0 0.0
    %1572 = vmatpush2.msra.mxu0 0.0
    %1573 = vmatprep.subr.mxu0 0.0
    %1574 = vmatpush2.msra.mxu0 0.0
    %1575 = vmatprep.subr.mxu0 0.0
    %1576 = vmatpush2.msra.mxu0 0.0
    %1577 = vmatprep.subr.mxu0 0.0
    %1578 = vmatpush2.msra.mxu0 0.0
    %1579 = vmatprep.mubr.f32.mxu0 0.0
    %1580 = vmatmul.mubr.f32.gmra.mxu0 %v1513
    %v1581 = vpop.f32.mrf.mxu0
    %v1582 = vadd.f32 0.0, %v1581
    %v1583 = vpop.f32.mrf.mxu0
    %v1584 = vadd.f32 0.0, %v1583
    %1585 = vdwg.mxu0
    %1586 = vmatprep.subr.mxu0 0.0
    %1587 = vmatpush1.msra.mxu0 0.0
    %1588 = vmatprep.subr.mxu0 0.0
    %1589 = vmatpush1.msra.mxu0 0.0
    %1590 = vmatprep.subr.mxu0 0.0
    %1591 = vmatpush1.msra.mxu0 0.0
    %1592 = vmatprep.subr.mxu0 0.0
    %1593 = vmatpush1.msra.mxu0 0.0
    %1594 = vmatprep.subr.mxu0 0.0
    %1595 = vmatpush1.msra.mxu0 0.0
    %1596 = vmatprep.subr.mxu0 0.0
    %1597 = vmatpush1.msra.mxu0 0.0
    %1598 = vmatprep.subr.mxu0 0.0
    %1599 = vmatpush1.msra.mxu0 0.0
    %1600 = vmatprep.subr.mxu0 0.0
    %1601 = vmatpush1.msra.mxu0 0.0
    %1602 = vmatprep.subr.mxu0 0.0
    %1603 = vmatpush1.msra.mxu0 0.0
    %1604 = vmatprep.subr.mxu0 0.0
    %1605 = vmatpush1.msra.mxu0 0.0
    %1606 = vmatprep.subr.mxu0 0.0
    %1607 = vmatpush1.msra.mxu0 0.0
    %1608 = vmatprep.subr.mxu0 0.0
    %1609 = vmatpush1.msra.mxu0 0.0
    %1610 = vmatprep.subr.mxu0 0.0
    %1611 = vmatpush1.msra.mxu0 0.0
    %1612 = vmatprep.subr.mxu0 0.0
    %1613 = vmatpush1.msra.mxu0 0.0
    %1614 = vmatprep.subr.mxu0 0.0
    %1615 = vmatpush1.msra.mxu0 0.0
    %1616 = vmatprep.subr.mxu0 %v1509
    %1617 = vmatpush1.msra.mxu0 %v1508
    %1618 = vmatprep.subr.mxu0 0.0
    %1619 = vmatpush2.msra.mxu0 0.0
    %1620 = vmatprep.subr.mxu0 0.0
    %1621 = vmatpush2.msra.mxu0 0.0
    %1622 = vmatprep.subr.mxu0 0.0
    %1623 = vmatpush2.msra.mxu0 0.0
    %1624 = vmatprep.subr.mxu0 0.0
    %1625 = vmatpush2.msra.mxu0 0.0
    %1626 = vmatprep.subr.mxu0 0.0
    %1627 = vmatpush2.msra.mxu0 0.0
    %1628 = vmatprep.subr.mxu0 0.0
    %1629 = vmatpush2.msra.mxu0 0.0
    %1630 = vmatprep.subr.mxu0 0.0
    %1631 = vmatpush2.msra.mxu0 0.0
    %1632 = vmatprep.subr.mxu0 0.0
    %1633 = vmatpush2.msra.mxu0 0.0
    %1634 = vmatprep.subr.mxu0 0.0
    %1635 = vmatpush2.msra.mxu0 0.0
    %1636 = vmatprep.subr.mxu0 0.0
    %1637 = vmatpush2.msra.mxu0 0.0
    %1638 = vmatprep.subr.mxu0 0.0
    %1639 = vmatpush2.msra.mxu0 0.0
    %1640 = vmatprep.subr.mxu0 0.0
    %1641 = vmatpush2.msra.mxu0 0.0
    %1642 = vmatprep.subr.mxu0 0.0
    %1643 = vmatpush2.msra.mxu0 0.0
    %1644 = vmatprep.subr.mxu0 0.0
    %1645 = vmatpush2.msra.mxu0 0.0
    %1646 = vmatprep.subr.mxu0 0.0
    %1647 = vmatpush2.msra.mxu0 0.0
    %1648 = vmatprep.subr.mxu0 0.0
    %1649 = vmatpush2.msra.mxu0 0.0
    %1650 = vmatprep.mubr.f32.mxu0 0.0
    %1651 = vmatmul.mubr.f32.gmra.mxu0 %v1513
    %v1652 = vpop.f32.mrf.mxu0
    %v1653 = vadd.f32 0.0, %v1652
    %v1654 = vpop.f32.mrf.mxu0
    %v1655 = vadd.f32 0.0, %v1654
    %1656 = vdwg.mxu0
    %v1657 = vadd.f32 %v1473, %v1582
    %v1658 = vadd.f32 %v1474, %v1584
    %v1659 = vadd.f32 %v1475, %v1653
    %v1660 = vadd.f32 %v1476, %v1655
    %v1661 = vld [vmem:[%s3] sm:$0xff]
    %1663 = vset.pattern.permute.xlu0 0
    %1664 = vperm.xlu0 %1663, %v1661
    %v1665 = vpop.permute.xlu0 %1664
    %v1667 = vadd.f32 %v1657, %v1665
    %v1668 = vadd.f32 %v1658, %v1665
    %v1669 = vadd.f32 %v1659, %v1665
    %v1670 = vadd.f32 %v1660, %v1665
    %v1671 = vadd.f32 %v1667, %v1668
    %v1672 = vadd.f32 %v1671, %v1669
    %v1673 = vadd.f32 %v1672, %v1670
    %1674 = vadd.xlane.f32.xlu0 %v1673
    %v1675 = vpop.xlane.xlu0 %1674
    %v1676 = vmul.f32 %v1667, %v1667
    %v1677 = vmul.f32 %v1668, %v1668
    %v1678 = vmul.f32 %v1669, %v1669
    %v1679 = vmul.f32 %v1670, %v1670
    %v1680 = vadd.f32 %v1676, %v1677
    %v1681 = vadd.f32 %v1680, %v1678
    %v1682 = vadd.f32 %v1681, %v1679
    %1683 = vadd.xlane.f32.xlu0 %v1682
    %v1684 = vpop.xlane.xlu0 %1683
    %v1685 = vmul.f32 %v1675, 0.001953125
    %v1686 = vmul.f32 %v1684, 0.001953125
    %v1687 = vmul.f32 %v1685, %v1685
    %v1688 = vsub.f32 %v1686, %v1687
    %v1689 = vadd.f32 %v1688, 1e-05
    %v1690 = vrsqrt.pop %v1689
    %v1691 = vld [vmem:[%s4] sm:$0xff]
    %v1692 = vsub.f32 %v1667, %v1685
    %v1693 = vsub.f32 %v1668, %v1685
    %v1694 = vsub.f32 %v1669, %v1685
    %v1695 = vsub.f32 %v1670, %v1685
    %1697 = vset.pattern.permute.xlu0 0
    %1698 = vperm.xlu0 %1697, %v1691
    %v1699 = vpop.permute.xlu0 %1698
    %v1701 = vmul.f32 %v1699, %v1692
    %v1702 = vmul.f32 %v1699, %v1693
    %v1703 = vmul.f32 %v1699, %v1694
    %v1704 = vmul.f32 %v1699, %v1695
    %v1705 = vmul.f32 %v1701, %v1690
    %v1706 = vmul.f32 %v1702, %v1690
    %v1707 = vmul.f32 %v1703, %v1690
    %v1708 = vmul.f32 %v1704, %v1690
    %v1709 = vld [vmem:[%s5] sm:$0xff]
    %1711 = vset.pattern.permute.xlu0 0
    %1712 = vperm.xlu0 %1711, %v1709
    %v1713 = vpop.permute.xlu0 %1712
    %v1715 = vadd.f32 %v1705, %v1713
    %v1716 = vadd.f32 %v1706, %v1713
    %v1717 = vadd.f32 %v1707, %v1713
    %v1718 = vadd.f32 %v1708, %v1713
    %v1719 = vmax.f32 %v1715, 0.0
    %v1720 = vmax.f32 %v1716, 0.0
    %v1721 = vmax.f32 %v1717, 0.0
    %v1722 = vmax.f32 %v1718, 0.0
    %1723 = vrot.lane.b32.xlu0 %v1719, 17
    %v1724 = vpop.permute.xlu0 %1723
    %1725 = vrot.lane.b32.xlu0 %v1720, 17
    %v1726 = vpop.permute.xlu0 %1725
    %1727 = vrot.lane.b32.xlu0 %v1721, 17
    %v1728 = vpop.permute.xlu0 %1727
    %1729 = vrot.lane.b32.xlu0 %v1722, 17
    %v1730 = vpop.permute.xlu0 %1729
    %v1731 = vsel %vm54, %v1728, %v1730
    %v1732 = vsel %vm54, %v1726, %v1728
    %v1733 = vsel %vm54, %v1724, %v1726
    %v1734 = vsel %vm54, %v1730, %v1724
    %v1735 = vmul.f32 %v1734, %v62
    %v1736 = vmul.f32 %v1733, %v66
    %v1737 = vmul.f32 %v1732, %v70
    %v1738 = vmul.f32 %v1731, %v74
    %v1739 = vld [vmem:[%s6] sm:$0xff]
    %1740 = vrot.lane.b32.xlu0 %v1719, 16
    %v1741 = vpop.permute.xlu0 %1740
    %1742 = vrot.lane.b32.xlu0 %v1720, 16
    %v1743 = vpop.permute.xlu0 %1742
    %1744 = vrot.lane.b32.xlu0 %v1721, 16
    %v1745 = vpop.permute.xlu0 %1744
    %1746 = vrot.lane.b32.xlu0 %v1722, 16
    %v1747 = vpop.permute.xlu0 %1746
    %v1748 = vsel %vm88, %v1745, %v1747
    %v1749 = vsel %vm88, %v1743, %v1745
    %v1750 = vsel %vm88, %v1741, %v1743
    %v1751 = vsel %vm88, %v1747, %v1741
    %v1752 = vmul.f32 %v1751, %v96
    %v1753 = vmul.f32 %v1750, %v100
    %v1754 = vmul.f32 %v1749, %v104
    %v1755 = vmul.f32 %v1748, %v108
    %s1756 = scalar_lea.vmem %s6, 8
    %v1757 = vld [vmem:[%s1756] sm:$0xff]
    %v1759 = vsel %vm115, %v1757, 0
    %1761 = vmatprep.subr.mxu0 0.0
    %1762 = vmatpush1.msra.mxu0 0.0
    %1763 = vmatprep.subr.mxu0 0.0
    %1764 = vmatpush1.msra.mxu0 0.0
    %1765 = vmatprep.subr.mxu0 0.0
    %1766 = vmatpush1.msra.mxu0 0.0
    %1767 = vmatprep.subr.mxu0 0.0
    %1768 = vmatpush1.msra.mxu0 0.0
    %1769 = vmatprep.subr.mxu0 0.0
    %1770 = vmatpush1.msra.mxu0 0.0
    %1771 = vmatprep.subr.mxu0 0.0
    %1772 = vmatpush1.msra.mxu0 0.0
    %1773 = vmatprep.subr.mxu0 0.0
    %1774 = vmatpush1.msra.mxu0 0.0
    %1775 = vmatprep.subr.mxu0 0.0
    %1776 = vmatpush1.msra.mxu0 0.0
    %1777 = vmatprep.subr.mxu0 0.0
    %1778 = vmatpush1.msra.mxu0 0.0
    %1779 = vmatprep.subr.mxu0 0.0
    %1780 = vmatpush1.msra.mxu0 0.0
    %1781 = vmatprep.subr.mxu0 0.0
    %1782 = vmatpush1.msra.mxu0 0.0
    %1783 = vmatprep.subr.mxu0 0.0
    %1784 = vmatpush1.msra.mxu0 0.0
    %1785 = vmatprep.subr.mxu0 0.0
    %1786 = vmatpush1.msra.mxu0 0.0
    %1787 = vmatprep.subr.mxu0 0.0
    %1788 = vmatpush1.msra.mxu0 0.0
    %1789 = vmatprep.subr.mxu0 0.0
    %1790 = vmatpush1.msra.mxu0 0.0
    %1791 = vmatprep.subr.mxu0 %v1753
    %1792 = vmatpush1.msra.mxu0 %v1752
    %1793 = vmatprep.subr.mxu0 0.0
    %1794 = vmatpush2.msra.mxu0 0.0
    %1795 = vmatprep.subr.mxu0 0.0
    %1796 = vmatpush2.msra.mxu0 0.0
    %1797 = vmatprep.subr.mxu0 0.0
    %1798 = vmatpush2.msra.mxu0 0.0
    %1799 = vmatprep.subr.mxu0 0.0
    %1800 = vmatpush2.msra.mxu0 0.0
    %1801 = vmatprep.subr.mxu0 0.0
    %1802 = vmatpush2.msra.mxu0 0.0
    %1803 = vmatprep.subr.mxu0 0.0
    %1804 = vmatpush2.msra.mxu0 0.0
    %1805 = vmatprep.subr.mxu0 0.0
    %1806 = vmatpush2.msra.mxu0 0.0
    %1807 = vmatprep.subr.mxu0 0.0
    %1808 = vmatpush2.msra.mxu0 0.0
    %1809 = vmatprep.subr.mxu0 0.0
    %1810 = vmatpush2.msra.mxu0 0.0
    %1811 = vmatprep.subr.mxu0 0.0
    %1812 = vmatpush2.msra.mxu0 0.0
    %1813 = vmatprep.subr.mxu0 0.0
    %1814 = vmatpush2.msra.mxu0 0.0
    %1815 = vmatprep.subr.mxu0 0.0
    %1816 = vmatpush2.msra.mxu0 0.0
    %1817 = vmatprep.subr.mxu0 0.0
    %1818 = vmatpush2.msra.mxu0 0.0
    %1819 = vmatprep.subr.mxu0 0.0
    %1820 = vmatpush2.msra.mxu0 0.0
    %1821 = vmatprep.subr.mxu0 0.0
    %1822 = vmatpush2.msra.mxu0 0.0
    %1823 = vmatprep.subr.mxu0 0.0
    %1824 = vmatpush2.msra.mxu0 0.0
    %1825 = vmatprep.mubr.f32.mxu0 0.0
    %1826 = vmatmul.mubr.f32.gmra.mxu0 %v1759
    %v1827 = vpop.f32.mrf.mxu0
    %v1828 = vadd.f32 0.0, %v1827
    %v1829 = vpop.f32.mrf.mxu0
    %v1830 = vadd.f32 0.0, %v1829
    %1831 = vdwg.mxu0
    %1832 = vmatprep.subr.mxu0 0.0
    %1833 = vmatpush1.msra.mxu0 0.0
    %1834 = vmatprep.subr.mxu0 0.0
    %1835 = vmatpush1.msra.mxu0 0.0
    %1836 = vmatprep.subr.mxu0 0.0
    %1837 = vmatpush1.msra.mxu0 0.0
    %1838 = vmatprep.subr.mxu0 0.0
    %1839 = vmatpush1.msra.mxu0 0.0
    %1840 = vmatprep.subr.mxu0 0.0
    %1841 = vmatpush1.msra.mxu0 0.0
    %1842 = vmatprep.subr.mxu0 0.0
    %1843 = vmatpush1.msra.mxu0 0.0
    %1844 = vmatprep.subr.mxu0 0.0
    %1845 = vmatpush1.msra.mxu0 0.0
    %1846 = vmatprep.subr.mxu0 0.0
    %1847 = vmatpush1.msra.mxu0 0.0
    %1848 = vmatprep.subr.mxu0 0.0
    %1849 = vmatpush1.msra.mxu0 0.0
    %1850 = vmatprep.subr.mxu0 0.0
    %1851 = vmatpush1.msra.mxu0 0.0
    %1852 = vmatprep.subr.mxu0 0.0
    %1853 = vmatpush1.msra.mxu0 0.0
    %1854 = vmatprep.subr.mxu0 0.0
    %1855 = vmatpush1.msra.mxu0 0.0
    %1856 = vmatprep.subr.mxu0 0.0
    %1857 = vmatpush1.msra.mxu0 0.0
    %1858 = vmatprep.subr.mxu0 0.0
    %1859 = vmatpush1.msra.mxu0 0.0
    %1860 = vmatprep.subr.mxu0 0.0
    %1861 = vmatpush1.msra.mxu0 0.0
    %1862 = vmatprep.subr.mxu0 %v1755
    %1863 = vmatpush1.msra.mxu0 %v1754
    %1864 = vmatprep.subr.mxu0 0.0
    %1865 = vmatpush2.msra.mxu0 0.0
    %1866 = vmatprep.subr.mxu0 0.0
    %1867 = vmatpush2.msra.mxu0 0.0
    %1868 = vmatprep.subr.mxu0 0.0
    %1869 = vmatpush2.msra.mxu0 0.0
    %1870 = vmatprep.subr.mxu0 0.0
    %1871 = vmatpush2.msra.mxu0 0.0
    %1872 = vmatprep.subr.mxu0 0.0
    %1873 = vmatpush2.msra.mxu0 0.0
    %1874 = vmatprep.subr.mxu0 0.0
    %1875 = vmatpush2.msra.mxu0 0.0
    %1876 = vmatprep.subr.mxu0 0.0
    %1877 = vmatpush2.msra.mxu0 0.0
    %1878 = vmatprep.subr.mxu0 0.0
    %1879 = vmatpush2.msra.mxu0 0.0
    %1880 = vmatprep.subr.mxu0 0.0
    %1881 = vmatpush2.msra.mxu0 0.0
    %1882 = vmatprep.subr.mxu0 0.0
    %1883 = vmatpush2.msra.mxu0 0.0
    %1884 = vmatprep.subr.mxu0 0.0
    %1885 = vmatpush2.msra.mxu0 0.0
    %1886 = vmatprep.subr.mxu0 0.0
    %1887 = vmatpush2.msra.mxu0 0.0
    %1888 = vmatprep.subr.mxu0 0.0
    %1889 = vmatpush2.msra.mxu0 0.0
    %1890 = vmatprep.subr.mxu0 0.0
    %1891 = vmatpush2.msra.mxu0 0.0
    %1892 = vmatprep.subr.mxu0 0.0
    %1893 = vmatpush2.msra.mxu0 0.0
    %1894 = vmatprep.subr.mxu0 0.0
    %1895 = vmatpush2.msra.mxu0 0.0
    %1896 = vmatprep.mubr.f32.mxu0 0.0
    %1897 = vmatmul.mubr.f32.gmra.mxu0 %v1759
    %v1898 = vpop.f32.mrf.mxu0
    %v1899 = vadd.f32 0.0, %v1898
    %v1900 = vpop.f32.mrf.mxu0
    %v1901 = vadd.f32 0.0, %v1900
    %1902 = vdwg.mxu0
    %v1904 = vsel %vm115, %v1739, 0
    %1906 = vmatprep.subr.mxu0 0.0
    %1907 = vmatpush1.msra.mxu0 0.0
    %1908 = vmatprep.subr.mxu0 0.0
    %1909 = vmatpush1.msra.mxu0 0.0
    %1910 = vmatprep.subr.mxu0 0.0
    %1911 = vmatpush1.msra.mxu0 0.0
    %1912 = vmatprep.subr.mxu0 0.0
    %1913 = vmatpush1.msra.mxu0 0.0
    %1914 = vmatprep.subr.mxu0 0.0
    %1915 = vmatpush1.msra.mxu0 0.0
    %1916 = vmatprep.subr.mxu0 0.0
    %1917 = vmatpush1.msra.mxu0 0.0
    %1918 = vmatprep.subr.mxu0 0.0
    %1919 = vmatpush1.msra.mxu0 0.0
    %1920 = vmatprep.subr.mxu0 0.0
    %1921 = vmatpush1.msra.mxu0 0.0
    %1922 = vmatprep.subr.mxu0 0.0
    %1923 = vmatpush1.msra.mxu0 0.0
    %1924 = vmatprep.subr.mxu0 0.0
    %1925 = vmatpush1.msra.mxu0 0.0
    %1926 = vmatprep.subr.mxu0 0.0
    %1927 = vmatpush1.msra.mxu0 0.0
    %1928 = vmatprep.subr.mxu0 0.0
    %1929 = vmatpush1.msra.mxu0 0.0
    %1930 = vmatprep.subr.mxu0 0.0
    %1931 = vmatpush1.msra.mxu0 0.0
    %1932 = vmatprep.subr.mxu0 0.0
    %1933 = vmatpush1.msra.mxu0 0.0
    %1934 = vmatprep.subr.mxu0 0.0
    %1935 = vmatpush1.msra.mxu0 0.0
    %1936 = vmatprep.subr.mxu0 %v1736
    %1937 = vmatpush1.msra.mxu0 %v1735
    %1938 = vmatprep.subr.mxu0 0.0
    %1939 = vmatpush2.msra.mxu0 0.0
    %1940 = vmatprep.subr.mxu0 0.0
    %1941 = vmatpush2.msra.mxu0 0.0
    %1942 = vmatprep.subr.mxu0 0.0
    %1943 = vmatpush2.msra.mxu0 0.0
    %1944 = vmatprep.subr.mxu0 0.0
    %1945 = vmatpush2.msra.mxu0 0.0
    %1946 = vmatprep.subr.mxu0 0.0
    %1947 = vmatpush2.msra.mxu0 0.0
    %1948 = vmatprep.subr.mxu0 0.0
    %1949 = vmatpush2.msra.mxu0 0.0
    %1950 = vmatprep.subr.mxu0 0.0
    %1951 = vmatpush2.msra.mxu0 0.0
    %1952 = vmatprep.subr.mxu0 0.0
    %1953 = vmatpush2.msra.mxu0 0.0
    %1954 = vmatprep.subr.mxu0 0.0
    %1955 = vmatpush2.msra.mxu0 0.0
    %1956 = vmatprep.subr.mxu0 0.0
    %1957 = vmatpush2.msra.mxu0 0.0
    %1958 = vmatprep.subr.mxu0 0.0
    %1959 = vmatpush2.msra.mxu0 0.0
    %1960 = vmatprep.subr.mxu0 0.0
    %1961 = vmatpush2.msra.mxu0 0.0
    %1962 = vmatprep.subr.mxu0 0.0
    %1963 = vmatpush2.msra.mxu0 0.0
    %1964 = vmatprep.subr.mxu0 0.0
    %1965 = vmatpush2.msra.mxu0 0.0
    %1966 = vmatprep.subr.mxu0 0.0
    %1967 = vmatpush2.msra.mxu0 0.0
    %1968 = vmatprep.subr.mxu0 0.0
    %1969 = vmatpush2.msra.mxu0 0.0
    %1970 = vmatprep.mubr.f32.mxu0 0.0
    %1971 = vmatmul.mubr.f32.gmra.mxu0 %v1904
    %v1972 = vpop.f32.mrf.mxu0
    %v1973 = vadd.f32 %v1828, %v1972
    %v1974 = vpop.f32.mrf.mxu0
    %v1975 = vadd.f32 %v1830, %v1974
    %1976 = vdwg.mxu0
    %1977 = vmatprep.subr.mxu0 0.0
    %1978 = vmatpush1.msra.mxu0 0.0
    %1979 = vmatprep.subr.mxu0 0.0
    %1980 = vmatpush1.msra.mxu0 0.0
    %1981 = vmatprep.subr.mxu0 0.0
    %1982 = vmatpush1.msra.mxu0 0.0
    %1983 = vmatprep.subr.mxu0 0.0
    %1984 = vmatpush1.msra.mxu0 0.0
    %1985 = vmatprep.subr.mxu0 0.0
    %1986 = vmatpush1.msra.mxu0 0.0
    %1987 = vmatprep.subr.mxu0 0.0
    %1988 = vmatpush1.msra.mxu0 0.0
    %1989 = vmatprep.subr.mxu0 0.0
    %1990 = vmatpush1.msra.mxu0 0.0
    %1991 = vmatprep.subr.mxu0 0.0
    %1992 = vmatpush1.msra.mxu0 0.0
    %1993 = vmatprep.subr.mxu0 0.0
    %1994 = vmatpush1.msra.mxu0 0.0
    %1995 = vmatprep.subr.mxu0 0.0
    %1996 = vmatpush1.msra.mxu0 0.0
    %1997 = vmatprep.subr.mxu0 0.0
    %1998 = vmatpush1.msra.mxu0 0.0
    %1999 = vmatprep.subr.mxu0 0.0
    %2000 = vmatpush1.msra.mxu0 0.0
    %2001 = vmatprep.subr.mxu0 0.0
    %2002 = vmatpush1.msra.mxu0 0.0
    %2003 = vmatprep.subr.mxu0 0.0
    %2004 = vmatpush1.msra.mxu0 0.0
    %2005 = vmatprep.subr.mxu0 0.0
    %2006 = vmatpush1.msra.mxu0 0.0
    %2007 = vmatprep.subr.mxu0 %v1738
    %2008 = vmatpush1.msra.mxu0 %v1737
    %2009 = vmatprep.subr.mxu0 0.0
    %2010 = vmatpush2.msra.mxu0 0.0
    %2011 = vmatprep.subr.mxu0 0.0
    %2012 = vmatpush2.msra.mxu0 0.0
    %2013 = vmatprep.subr.mxu0 0.0
    %2014 = vmatpush2.msra.mxu0 0.0
    %2015 = vmatprep.subr.mxu0 0.0
    %2016 = vmatpush2.msra.mxu0 0.0
    %2017 = vmatprep.subr.mxu0 0.0
    %2018 = vmatpush2.msra.mxu0 0.0
    %2019 = vmatprep.subr.mxu0 0.0
    %2020 = vmatpush2.msra.mxu0 0.0
    %2021 = vmatprep.subr.mxu0 0.0
    %2022 = vmatpush2.msra.mxu0 0.0
    %2023 = vmatprep.subr.mxu0 0.0
    %2024 = vmatpush2.msra.mxu0 0.0
    %2025 = vmatprep.subr.mxu0 0.0
    %2026 = vmatpush2.msra.mxu0 0.0
    %2027 = vmatprep.subr.mxu0 0.0
    %2028 = vmatpush2.msra.mxu0 0.0
    %2029 = vmatprep.subr.mxu0 0.0
    %2030 = vmatpush2.msra.mxu0 0.0
    %2031 = vmatprep.subr.mxu0 0.0
    %2032 = vmatpush2.msra.mxu0 0.0
    %2033 = vmatprep.subr.mxu0 0.0
    %2034 = vmatpush2.msra.mxu0 0.0
    %2035 = vmatprep.subr.mxu0 0.0
    %2036 = vmatpush2.msra.mxu0 0.0
    %2037 = vmatprep.subr.mxu0 0.0
    %2038 = vmatpush2.msra.mxu0 0.0
    %2039 = vmatprep.subr.mxu0 0.0
    %2040 = vmatpush2.msra.mxu0 0.0
    %2041 = vmatprep.mubr.f32.mxu0 0.0
    %2042 = vmatmul.mubr.f32.gmra.mxu0 %v1904
    %v2043 = vpop.f32.mrf.mxu0
    %v2044 = vadd.f32 %v1899, %v2043
    %v2045 = vpop.f32.mrf.mxu0
    %v2046 = vadd.f32 %v1901, %v2045
    %2047 = vdwg.mxu0
    %2048 = vrot.lane.b32.xlu0 %v1719, 15
    %v2049 = vpop.permute.xlu0 %2048
    %2050 = vrot.lane.b32.xlu0 %v1720, 15
    %v2051 = vpop.permute.xlu0 %2050
    %2052 = vrot.lane.b32.xlu0 %v1721, 15
    %v2053 = vpop.permute.xlu0 %2052
    %2054 = vrot.lane.b32.xlu0 %v1722, 15
    %v2055 = vpop.permute.xlu0 %2054
    %v2056 = vsel %vm414, %v2053, %v2055
    %v2057 = vsel %vm414, %v2051, %v2053
    %v2058 = vsel %vm414, %v2049, %v2051
    %v2059 = vsel %vm414, %v2055, %v2049
    %v2060 = vmul.f32 %v2059, %v422
    %v2061 = vmul.f32 %v2058, %v426
    %v2062 = vmul.f32 %v2057, %v430
    %v2063 = vmul.f32 %v2056, %v434
    %s2064 = scalar_lea.vmem %s6, 16
    %v2065 = vld [vmem:[%s2064] sm:$0xff]
    %v2067 = vsel %vm115, %v2065, 0
    %2069 = vmatprep.subr.mxu0 0.0
    %2070 = vmatpush1.msra.mxu0 0.0
    %2071 = vmatprep.subr.mxu0 0.0
    %2072 = vmatpush1.msra.mxu0 0.0
    %2073 = vmatprep.subr.mxu0 0.0
    %2074 = vmatpush1.msra.mxu0 0.0
    %2075 = vmatprep.subr.mxu0 0.0
    %2076 = vmatpush1.msra.mxu0 0.0
    %2077 = vmatprep.subr.mxu0 0.0
    %2078 = vmatpush1.msra.mxu0 0.0
    %2079 = vmatprep.subr.mxu0 0.0
    %2080 = vmatpush1.msra.mxu0 0.0
    %2081 = vmatprep.subr.mxu0 0.0
    %2082 = vmatpush1.msra.mxu0 0.0
    %2083 = vmatprep.subr.mxu0 0.0
    %2084 = vmatpush1.msra.mxu0 0.0
    %2085 = vmatprep.subr.mxu0 0.0
    %2086 = vmatpush1.msra.mxu0 0.0
    %2087 = vmatprep.subr.mxu0 0.0
    %2088 = vmatpush1.msra.mxu0 0.0
    %2089 = vmatprep.subr.mxu0 0.0
    %2090 = vmatpush1.msra.mxu0 0.0
    %2091 = vmatprep.subr.mxu0 0.0
    %2092 = vmatpush1.msra.mxu0 0.0
    %2093 = vmatprep.subr.mxu0 0.0
    %2094 = vmatpush1.msra.mxu0 0.0
    %2095 = vmatprep.subr.mxu0 0.0
    %2096 = vmatpush1.msra.mxu0 0.0
    %2097 = vmatprep.subr.mxu0 0.0
    %2098 = vmatpush1.msra.mxu0 0.0
    %2099 = vmatprep.subr.mxu0 %v2061
    %2100 = vmatpush1.msra.mxu0 %v2060
    %2101 = vmatprep.subr.mxu0 0.0
    %2102 = vmatpush2.msra.mxu0 0.0
    %2103 = vmatprep.subr.mxu0 0.0
    %2104 = vmatpush2.msra.mxu0 0.0
    %2105 = vmatprep.subr.mxu0 0.0
    %2106 = vmatpush2.msra.mxu0 0.0
    %2107 = vmatprep.subr.mxu0 0.0
    %2108 = vmatpush2.msra.mxu0 0.0
    %2109 = vmatprep.subr.mxu0 0.0
    %2110 = vmatpush2.msra.mxu0 0.0
    %2111 = vmatprep.subr.mxu0 0.0
    %2112 = vmatpush2.msra.mxu0 0.0
    %2113 = vmatprep.subr.mxu0 0.0
    %2114 = vmatpush2.msra.mxu0 0.0
    %2115 = vmatprep.subr.mxu0 0.0
    %2116 = vmatpush2.msra.mxu0 0.0
    %2117 = vmatprep.subr.mxu0 0.0
    %2118 = vmatpush2.msra.mxu0 0.0
    %2119 = vmatprep.subr.mxu0 0.0
    %2120 = vmatpush2.msra.mxu0 0.0
    %2121 = vmatprep.subr.mxu0 0.0
    %2122 = vmatpush2.msra.mxu0 0.0
    %2123 = vmatprep.subr.mxu0 0.0
    %2124 = vmatpush2.msra.mxu0 0.0
    %2125 = vmatprep.subr.mxu0 0.0
    %2126 = vmatpush2.msra.mxu0 0.0
    %2127 = vmatprep.subr.mxu0 0.0
    %2128 = vmatpush2.msra.mxu0 0.0
    %2129 = vmatprep.subr.mxu0 0.0
    %2130 = vmatpush2.msra.mxu0 0.0
    %2131 = vmatprep.subr.mxu0 0.0
    %2132 = vmatpush2.msra.mxu0 0.0
    %2133 = vmatprep.mubr.f32.mxu0 0.0
    %2134 = vmatmul.mubr.f32.gmra.mxu0 %v2067
    %v2135 = vpop.f32.mrf.mxu0
    %v2136 = vadd.f32 0.0, %v2135
    %v2137 = vpop.f32.mrf.mxu0
    %v2138 = vadd.f32 0.0, %v2137
    %2139 = vdwg.mxu0
    %2140 = vmatprep.subr.mxu0 0.0
    %2141 = vmatpush1.msra.mxu0 0.0
    %2142 = vmatprep.subr.mxu0 0.0
    %2143 = vmatpush1.msra.mxu0 0.0
    %2144 = vmatprep.subr.mxu0 0.0
    %2145 = vmatpush1.msra.mxu0 0.0
    %2146 = vmatprep.subr.mxu0 0.0
    %2147 = vmatpush1.msra.mxu0 0.0
    %2148 = vmatprep.subr.mxu0 0.0
    %2149 = vmatpush1.msra.mxu0 0.0
    %2150 = vmatprep.subr.mxu0 0.0
    %2151 = vmatpush1.msra.mxu0 0.0
    %2152 = vmatprep.subr.mxu0 0.0
    %2153 = vmatpush1.msra.mxu0 0.0
    %2154 = vmatprep.subr.mxu0 0.0
    %2155 = vmatpush1.msra.mxu0 0.0
    %2156 = vmatprep.subr.mxu0 0.0
    %2157 = vmatpush1.msra.mxu0 0.0
    %2158 = vmatprep.subr.mxu0 0.0
    %2159 = vmatpush1.msra.mxu0 0.0
    %2160 = vmatprep.subr.mxu0 0.0
    %2161 = vmatpush1.msra.mxu0 0.0
    %2162 = vmatprep.subr.mxu0 0.0
    %2163 = vmatpush1.msra.mxu0 0.0
    %2164 = vmatprep.subr.mxu0 0.0
    %2165 = vmatpush1.msra.mxu0 0.0
    %2166 = vmatprep.subr.mxu0 0.0
    %2167 = vmatpush1.msra.mxu0 0.0
    %2168 = vmatprep.subr.mxu0 0.0
    %2169 = vmatpush1.msra.mxu0 0.0
    %2170 = vmatprep.subr.mxu0 %v2063
    %2171 = vmatpush1.msra.mxu0 %v2062
    %2172 = vmatprep.subr.mxu0 0.0
    %2173 = vmatpush2.msra.mxu0 0.0
    %2174 = vmatprep.subr.mxu0 0.0
    %2175 = vmatpush2.msra.mxu0 0.0
    %2176 = vmatprep.subr.mxu0 0.0
    %2177 = vmatpush2.msra.mxu0 0.0
    %2178 = vmatprep.subr.mxu0 0.0
    %2179 = vmatpush2.msra.mxu0 0.0
    %2180 = vmatprep.subr.mxu0 0.0
    %2181 = vmatpush2.msra.mxu0 0.0
    %2182 = vmatprep.subr.mxu0 0.0
    %2183 = vmatpush2.msra.mxu0 0.0
    %2184 = vmatprep.subr.mxu0 0.0
    %2185 = vmatpush2.msra.mxu0 0.0
    %2186 = vmatprep.subr.mxu0 0.0
    %2187 = vmatpush2.msra.mxu0 0.0
    %2188 = vmatprep.subr.mxu0 0.0
    %2189 = vmatpush2.msra.mxu0 0.0
    %2190 = vmatprep.subr.mxu0 0.0
    %2191 = vmatpush2.msra.mxu0 0.0
    %2192 = vmatprep.subr.mxu0 0.0
    %2193 = vmatpush2.msra.mxu0 0.0
    %2194 = vmatprep.subr.mxu0 0.0
    %2195 = vmatpush2.msra.mxu0 0.0
    %2196 = vmatprep.subr.mxu0 0.0
    %2197 = vmatpush2.msra.mxu0 0.0
    %2198 = vmatprep.subr.mxu0 0.0
    %2199 = vmatpush2.msra.mxu0 0.0
    %2200 = vmatprep.subr.mxu0 0.0
    %2201 = vmatpush2.msra.mxu0 0.0
    %2202 = vmatprep.subr.mxu0 0.0
    %2203 = vmatpush2.msra.mxu0 0.0
    %2204 = vmatprep.mubr.f32.mxu0 0.0
    %2205 = vmatmul.mubr.f32.gmra.mxu0 %v2067
    %v2206 = vpop.f32.mrf.mxu0
    %v2207 = vadd.f32 0.0, %v2206
    %v2208 = vpop.f32.mrf.mxu0
    %v2209 = vadd.f32 0.0, %v2208
    %2210 = vdwg.mxu0
    %v2211 = vadd.f32 %v1973, %v2136
    %v2212 = vadd.f32 %v1975, %v2138
    %v2213 = vadd.f32 %v2044, %v2207
    %v2214 = vadd.f32 %v2046, %v2209
    %2215 = vrot.lane.b32.xlu0 %v1719, 1
    %v2216 = vpop.permute.xlu0 %2215
    %2217 = vrot.lane.b32.xlu0 %v1720, 1
    %v2218 = vpop.permute.xlu0 %2217
    %2219 = vrot.lane.b32.xlu0 %v1721, 1
    %v2220 = vpop.permute.xlu0 %2219
    %2221 = vrot.lane.b32.xlu0 %v1722, 1
    %v2222 = vpop.permute.xlu0 %2221
    %v2223 = vsel %vm598, %v2220, %v2222
    %v2224 = vsel %vm598, %v2218, %v2220
    %v2225 = vsel %vm598, %v2216, %v2218
    %v2226 = vsel %vm598, %v2222, %v2216
    %v2227 = vmul.f32 %v2226, %v606
    %v2228 = vmul.f32 %v2225, %v610
    %v2229 = vmul.f32 %v2224, %v614
    %v2230 = vmul.f32 %v2223, %v618
    %s2231 = scalar_lea.vmem %s6, 24
    %v2232 = vld [vmem:[%s2231] sm:$0xff]
    %v2234 = vsel %vm115, %v2232, 0
    %2236 = vmatprep.subr.mxu0 0.0
    %2237 = vmatpush1.msra.mxu0 0.0
    %2238 = vmatprep.subr.mxu0 0.0
    %2239 = vmatpush1.msra.mxu0 0.0
    %2240 = vmatprep.subr.mxu0 0.0
    %2241 = vmatpush1.msra.mxu0 0.0
    %2242 = vmatprep.subr.mxu0 0.0
    %2243 = vmatpush1.msra.mxu0 0.0
    %2244 = vmatprep.subr.mxu0 0.0
    %2245 = vmatpush1.msra.mxu0 0.0
    %2246 = vmatprep.subr.mxu0 0.0
    %2247 = vmatpush1.msra.mxu0 0.0
    %2248 = vmatprep.subr.mxu0 0.0
    %2249 = vmatpush1.msra.mxu0 0.0
    %2250 = vmatprep.subr.mxu0 0.0
    %2251 = vmatpush1.msra.mxu0 0.0
    %2252 = vmatprep.subr.mxu0 0.0
    %2253 = vmatpush1.msra.mxu0 0.0
    %2254 = vmatprep.subr.mxu0 0.0
    %2255 = vmatpush1.msra.mxu0 0.0
    %2256 = vmatprep.subr.mxu0 0.0
    %2257 = vmatpush1.msra.mxu0 0.0
    %2258 = vmatprep.subr.mxu0 0.0
    %2259 = vmatpush1.msra.mxu0 0.0
    %2260 = vmatprep.subr.mxu0 0.0
    %2261 = vmatpush1.msra.mxu0 0.0
    %2262 = vmatprep.subr.mxu0 0.0
    %2263 = vmatpush1.msra.mxu0 0.0
    %2264 = vmatprep.subr.mxu0 0.0
    %2265 = vmatpush1.msra.mxu0 0.0
    %2266 = vmatprep.subr.mxu0 %v2228
    %2267 = vmatpush1.msra.mxu0 %v2227
    %2268 = vmatprep.subr.mxu0 0.0
    %2269 = vmatpush2.msra.mxu0 0.0
    %2270 = vmatprep.subr.mxu0 0.0
    %2271 = vmatpush2.msra.mxu0 0.0
    %2272 = vmatprep.subr.mxu0 0.0
    %2273 = vmatpush2.msra.mxu0 0.0
    %2274 = vmatprep.subr.mxu0 0.0
    %2275 = vmatpush2.msra.mxu0 0.0
    %2276 = vmatprep.subr.mxu0 0.0
    %2277 = vmatpush2.msra.mxu0 0.0
    %2278 = vmatprep.subr.mxu0 0.0
    %2279 = vmatpush2.msra.mxu0 0.0
    %2280 = vmatprep.subr.mxu0 0.0
    %2281 = vmatpush2.msra.mxu0 0.0
    %2282 = vmatprep.subr.mxu0 0.0
    %2283 = vmatpush2.msra.mxu0 0.0
    %2284 = vmatprep.subr.mxu0 0.0
    %2285 = vmatpush2.msra.mxu0 0.0
    %2286 = vmatprep.subr.mxu0 0.0
    %2287 = vmatpush2.msra.mxu0 0.0
    %2288 = vmatprep.subr.mxu0 0.0
    %2289 = vmatpush2.msra.mxu0 0.0
    %2290 = vmatprep.subr.mxu0 0.0
    %2291 = vmatpush2.msra.mxu0 0.0
    %2292 = vmatprep.subr.mxu0 0.0
    %2293 = vmatpush2.msra.mxu0 0.0
    %2294 = vmatprep.subr.mxu0 0.0
    %2295 = vmatpush2.msra.mxu0 0.0
    %2296 = vmatprep.subr.mxu0 0.0
    %2297 = vmatpush2.msra.mxu0 0.0
    %2298 = vmatprep.subr.mxu0 0.0
    %2299 = vmatpush2.msra.mxu0 0.0
    %2300 = vmatprep.mubr.f32.mxu0 0.0
    %2301 = vmatmul.mubr.f32.gmra.mxu0 %v2234
    %v2302 = vpop.f32.mrf.mxu0
    %v2303 = vadd.f32 0.0, %v2302
    %v2304 = vpop.f32.mrf.mxu0
    %v2305 = vadd.f32 0.0, %v2304
    %2306 = vdwg.mxu0
    %2307 = vmatprep.subr.mxu0 0.0
    %2308 = vmatpush1.msra.mxu0 0.0
    %2309 = vmatprep.subr.mxu0 0.0
    %2310 = vmatpush1.msra.mxu0 0.0
    %2311 = vmatprep.subr.mxu0 0.0
    %2312 = vmatpush1.msra.mxu0 0.0
    %2313 = vmatprep.subr.mxu0 0.0
    %2314 = vmatpush1.msra.mxu0 0.0
    %2315 = vmatprep.subr.mxu0 0.0
    %2316 = vmatpush1.msra.mxu0 0.0
    %2317 = vmatprep.subr.mxu0 0.0
    %2318 = vmatpush1.msra.mxu0 0.0
    %2319 = vmatprep.subr.mxu0 0.0
    %2320 = vmatpush1.msra.mxu0 0.0
    %2321 = vmatprep.subr.mxu0 0.0
    %2322 = vmatpush1.msra.mxu0 0.0
    %2323 = vmatprep.subr.mxu0 0.0
    %2324 = vmatpush1.msra.mxu0 0.0
    %2325 = vmatprep.subr.mxu0 0.0
    %2326 = vmatpush1.msra.mxu0 0.0
    %2327 = vmatprep.subr.mxu0 0.0
    %2328 = vmatpush1.msra.mxu0 0.0
    %2329 = vmatprep.subr.mxu0 0.0
    %2330 = vmatpush1.msra.mxu0 0.0
    %2331 = vmatprep.subr.mxu0 0.0
    %2332 = vmatpush1.msra.mxu0 0.0
    %2333 = vmatprep.subr.mxu0 0.0
    %2334 = vmatpush1.msra.mxu0 0.0
    %2335 = vmatprep.subr.mxu0 0.0
    %2336 = vmatpush1.msra.mxu0 0.0
    %2337 = vmatprep.subr.mxu0 %v2230
    %2338 = vmatpush1.msra.mxu0 %v2229
    %2339 = vmatprep.subr.mxu0 0.0
    %2340 = vmatpush2.msra.mxu0 0.0
    %2341 = vmatprep.subr.mxu0 0.0
    %2342 = vmatpush2.msra.mxu0 0.0
    %2343 = vmatprep.subr.mxu0 0.0
    %2344 = vmatpush2.msra.mxu0 0.0
    %2345 = vmatprep.subr.mxu0 0.0
    %2346 = vmatpush2.msra.mxu0 0.0
    %2347 = vmatprep.subr.mxu0 0.0
    %2348 = vmatpush2.msra.mxu0 0.0
    %2349 = vmatprep.subr.mxu0 0.0
    %2350 = vmatpush2.msra.mxu0 0.0
    %2351 = vmatprep.subr.mxu0 0.0
    %2352 = vmatpush2.msra.mxu0 0.0
    %2353 = vmatprep.subr.mxu0 0.0
    %2354 = vmatpush2.msra.mxu0 0.0
    %2355 = vmatprep.subr.mxu0 0.0
    %2356 = vmatpush2.msra.mxu0 0.0
    %2357 = vmatprep.subr.mxu0 0.0
    %2358 = vmatpush2.msra.mxu0 0.0
    %2359 = vmatprep.subr.mxu0 0.0
    %2360 = vmatpush2.msra.mxu0 0.0
    %2361 = vmatprep.subr.mxu0 0.0
    %2362 = vmatpush2.msra.mxu0 0.0
    %2363 = vmatprep.subr.mxu0 0.0
    %2364 = vmatpush2.msra.mxu0 0.0
    %2365 = vmatprep.subr.mxu0 0.0
    %2366 = vmatpush2.msra.mxu0 0.0
    %2367 = vmatprep.subr.mxu0 0.0
    %2368 = vmatpush2.msra.mxu0 0.0
    %2369 = vmatprep.subr.mxu0 0.0
    %2370 = vmatpush2.msra.mxu0 0.0
    %2371 = vmatprep.mubr.f32.mxu0 0.0
    %2372 = vmatmul.mubr.f32.gmra.mxu0 %v2234
    %v2373 = vpop.f32.mrf.mxu0
    %v2374 = vadd.f32 0.0, %v2373
    %v2375 = vpop.f32.mrf.mxu0
    %v2376 = vadd.f32 0.0, %v2375
    %2377 = vdwg.mxu0
    %v2378 = vadd.f32 %v2211, %v2303
    %v2379 = vadd.f32 %v2212, %v2305
    %v2380 = vadd.f32 %v2213, %v2374
    %v2381 = vadd.f32 %v2214, %v2376
    %s2382 = scalar_lea.vmem %s6, 32
    %v2383 = vld [vmem:[%s2382] sm:$0xff]
    %v2385 = vsel %vm115, %v2383, 0
    %2387 = vmatprep.subr.mxu0 0.0
    %2388 = vmatpush1.msra.mxu0 0.0
    %2389 = vmatprep.subr.mxu0 0.0
    %2390 = vmatpush1.msra.mxu0 0.0
    %2391 = vmatprep.subr.mxu0 0.0
    %2392 = vmatpush1.msra.mxu0 0.0
    %2393 = vmatprep.subr.mxu0 0.0
    %2394 = vmatpush1.msra.mxu0 0.0
    %2395 = vmatprep.subr.mxu0 0.0
    %2396 = vmatpush1.msra.mxu0 0.0
    %2397 = vmatprep.subr.mxu0 0.0
    %2398 = vmatpush1.msra.mxu0 0.0
    %2399 = vmatprep.subr.mxu0 0.0
    %2400 = vmatpush1.msra.mxu0 0.0
    %2401 = vmatprep.subr.mxu0 0.0
    %2402 = vmatpush1.msra.mxu0 0.0
    %2403 = vmatprep.subr.mxu0 0.0
    %2404 = vmatpush1.msra.mxu0 0.0
    %2405 = vmatprep.subr.mxu0 0.0
    %2406 = vmatpush1.msra.mxu0 0.0
    %2407 = vmatprep.subr.mxu0 0.0
    %2408 = vmatpush1.msra.mxu0 0.0
    %2409 = vmatprep.subr.mxu0 0.0
    %2410 = vmatpush1.msra.mxu0 0.0
    %2411 = vmatprep.subr.mxu0 0.0
    %2412 = vmatpush1.msra.mxu0 0.0
    %2413 = vmatprep.subr.mxu0 0.0
    %2414 = vmatpush1.msra.mxu0 0.0
    %2415 = vmatprep.subr.mxu0 0.0
    %2416 = vmatpush1.msra.mxu0 0.0
    %2417 = vmatprep.subr.mxu0 %v1720
    %2418 = vmatpush1.msra.mxu0 %v1719
    %2419 = vmatprep.subr.mxu0 0.0
    %2420 = vmatpush2.msra.mxu0 0.0
    %2421 = vmatprep.subr.mxu0 0.0
    %2422 = vmatpush2.msra.mxu0 0.0
    %2423 = vmatprep.subr.mxu0 0.0
    %2424 = vmatpush2.msra.mxu0 0.0
    %2425 = vmatprep.subr.mxu0 0.0
    %2426 = vmatpush2.msra.mxu0 0.0
    %2427 = vmatprep.subr.mxu0 0.0
    %2428 = vmatpush2.msra.mxu0 0.0
    %2429 = vmatprep.subr.mxu0 0.0
    %2430 = vmatpush2.msra.mxu0 0.0
    %2431 = vmatprep.subr.mxu0 0.0
    %2432 = vmatpush2.msra.mxu0 0.0
    %2433 = vmatprep.subr.mxu0 0.0
    %2434 = vmatpush2.msra.mxu0 0.0
    %2435 = vmatprep.subr.mxu0 0.0
    %2436 = vmatpush2.msra.mxu0 0.0
    %2437 = vmatprep.subr.mxu0 0.0
    %2438 = vmatpush2.msra.mxu0 0.0
    %2439 = vmatprep.subr.mxu0 0.0
    %2440 = vmatpush2.msra.mxu0 0.0
    %2441 = vmatprep.subr.mxu0 0.0
    %2442 = vmatpush2.msra.mxu0 0.0
    %2443 = vmatprep.subr.mxu0 0.0
    %2444 = vmatpush2.msra.mxu0 0.0
    %2445 = vmatprep.subr.mxu0 0.0
    %2446 = vmatpush2.msra.mxu0 0.0
    %2447 = vmatprep.subr.mxu0 0.0
    %2448 = vmatpush2.msra.mxu0 0.0
    %2449 = vmatprep.subr.mxu0 0.0
    %2450 = vmatpush2.msra.mxu0 0.0
    %2451 = vmatprep.mubr.f32.mxu0 0.0
    %2452 = vmatmul.mubr.f32.gmra.mxu0 %v2385
    %v2453 = vpop.f32.mrf.mxu0
    %v2454 = vadd.f32 0.0, %v2453
    %v2455 = vpop.f32.mrf.mxu0
    %v2456 = vadd.f32 0.0, %v2455
    %2457 = vdwg.mxu0
    %2458 = vmatprep.subr.mxu0 0.0
    %2459 = vmatpush1.msra.mxu0 0.0
    %2460 = vmatprep.subr.mxu0 0.0
    %2461 = vmatpush1.msra.mxu0 0.0
    %2462 = vmatprep.subr.mxu0 0.0
    %2463 = vmatpush1.msra.mxu0 0.0
    %2464 = vmatprep.subr.mxu0 0.0
    %2465 = vmatpush1.msra.mxu0 0.0
    %2466 = vmatprep.subr.mxu0 0.0
    %2467 = vmatpush1.msra.mxu0 0.0
    %2468 = vmatprep.subr.mxu0 0.0
    %2469 = vmatpush1.msra.mxu0 0.0
    %2470 = vmatprep.subr.mxu0 0.0
    %2471 = vmatpush1.msra.mxu0 0.0
    %2472 = vmatprep.subr.mxu0 0.0
    %2473 = vmatpush1.msra.mxu0 0.0
    %2474 = vmatprep.subr.mxu0 0.0
    %2475 = vmatpush1.msra.mxu0 0.0
    %2476 = vmatprep.subr.mxu0 0.0
    %2477 = vmatpush1.msra.mxu0 0.0
    %2478 = vmatprep.subr.mxu0 0.0
    %2479 = vmatpush1.msra.mxu0 0.0
    %2480 = vmatprep.subr.mxu0 0.0
    %2481 = vmatpush1.msra.mxu0 0.0
    %2482 = vmatprep.subr.mxu0 0.0
    %2483 = vmatpush1.msra.mxu0 0.0
    %2484 = vmatprep.subr.mxu0 0.0
    %2485 = vmatpush1.msra.mxu0 0.0
    %2486 = vmatprep.subr.mxu0 0.0
    %2487 = vmatpush1.msra.mxu0 0.0
    %2488 = vmatprep.subr.mxu0 %v1722
    %2489 = vmatpush1.msra.mxu0 %v1721
    %2490 = vmatprep.subr.mxu0 0.0
    %2491 = vmatpush2.msra.mxu0 0.0
    %2492 = vmatprep.subr.mxu0 0.0
    %2493 = vmatpush2.msra.mxu0 0.0
    %2494 = vmatprep.subr.mxu0 0.0
    %2495 = vmatpush2.msra.mxu0 0.0
    %2496 = vmatprep.subr.mxu0 0.0
    %2497 = vmatpush2.msra.mxu0 0.0
    %2498 = vmatprep.subr.mxu0 0.0
    %2499 = vmatpush2.msra.mxu0 0.0
    %2500 = vmatprep.subr.mxu0 0.0
    %2501 = vmatpush2.msra.mxu0 0.0
    %2502 = vmatprep.subr.mxu0 0.0
    %2503 = vmatpush2.msra.mxu0 0.0
    %2504 = vmatprep.subr.mxu0 0.0
    %2505 = vmatpush2.msra.mxu0 0.0
    %2506 = vmatprep.subr.mxu0 0.0
    %2507 = vmatpush2.msra.mxu0 0.0
    %2508 = vmatprep.subr.mxu0 0.0
    %2509 = vmatpush2.msra.mxu0 0.0
    %2510 = vmatprep.subr.mxu0 0.0
    %2511 = vmatpush2.msra.mxu0 0.0
    %2512 = vmatprep.subr.mxu0 0.0
    %2513 = vmatpush2.msra.mxu0 0.0
    %2514 = vmatprep.subr.mxu0 0.0
    %2515 = vmatpush2.msra.mxu0 0.0
    %2516 = vmatprep.subr.mxu0 0.0
    %2517 = vmatpush2.msra.mxu0 0.0
    %2518 = vmatprep.subr.mxu0 0.0
    %2519 = vmatpush2.msra.mxu0 0.0
    %2520 = vmatprep.subr.mxu0 0.0
    %2521 = vmatpush2.msra.mxu0 0.0
    %2522 = vmatprep.mubr.f32.mxu0 0.0
    %2523 = vmatmul.mubr.f32.gmra.mxu0 %v2385
    %v2524 = vpop.f32.mrf.mxu0
    %v2525 = vadd.f32 0.0, %v2524
    %v2526 = vpop.f32.mrf.mxu0
    %v2527 = vadd.f32 0.0, %v2526
    %2528 = vdwg.mxu0
    %v2529 = vadd.f32 %v2378, %v2454
    %v2530 = vadd.f32 %v2379, %v2456
    %v2531 = vadd.f32 %v2380, %v2525
    %v2532 = vadd.f32 %v2381, %v2527
    %2533 = vrot.lane.b32.xlu0 %v1719, 127
    %v2534 = vpop.permute.xlu0 %2533
    %2535 = vrot.lane.b32.xlu0 %v1720, 127
    %v2536 = vpop.permute.xlu0 %2535
    %2537 = vrot.lane.b32.xlu0 %v1721, 127
    %v2538 = vpop.permute.xlu0 %2537
    %2539 = vrot.lane.b32.xlu0 %v1722, 127
    %v2540 = vpop.permute.xlu0 %2539
    %v2541 = vsel %vm933, %v2538, %v2540
    %v2542 = vsel %vm933, %v2536, %v2538
    %v2543 = vsel %vm933, %v2534, %v2536
    %v2544 = vsel %vm933, %v2540, %v2534
    %v2545 = vmul.f32 %v2543, %v941
    %v2546 = vmul.f32 %v2542, %v945
    %v2547 = vmul.f32 %v2541, %v949
    %v2548 = vmul.f32 %v2544, %v953
    %s2549 = scalar_lea.vmem %s6, 40
    %v2550 = vld [vmem:[%s2549] sm:$0xff]
    %v2552 = vsel %vm115, %v2550, 0
    %2554 = vmatprep.subr.mxu0 0.0
    %2555 = vmatpush1.msra.mxu0 0.0
    %2556 = vmatprep.subr.mxu0 0.0
    %2557 = vmatpush1.msra.mxu0 0.0
    %2558 = vmatprep.subr.mxu0 0.0
    %2559 = vmatpush1.msra.mxu0 0.0
    %2560 = vmatprep.subr.mxu0 0.0
    %2561 = vmatpush1.msra.mxu0 0.0
    %2562 = vmatprep.subr.mxu0 0.0
    %2563 = vmatpush1.msra.mxu0 0.0
    %2564 = vmatprep.subr.mxu0 0.0
    %2565 = vmatpush1.msra.mxu0 0.0
    %2566 = vmatprep.subr.mxu0 0.0
    %2567 = vmatpush1.msra.mxu0 0.0
    %2568 = vmatprep.subr.mxu0 0.0
    %2569 = vmatpush1.msra.mxu0 0.0
    %2570 = vmatprep.subr.mxu0 0.0
    %2571 = vmatpush1.msra.mxu0 0.0
    %2572 = vmatprep.subr.mxu0 0.0
    %2573 = vmatpush1.msra.mxu0 0.0
    %2574 = vmatprep.subr.mxu0 0.0
    %2575 = vmatpush1.msra.mxu0 0.0
    %2576 = vmatprep.subr.mxu0 0.0
    %2577 = vmatpush1.msra.mxu0 0.0
    %2578 = vmatprep.subr.mxu0 0.0
    %2579 = vmatpush1.msra.mxu0 0.0
    %2580 = vmatprep.subr.mxu0 0.0
    %2581 = vmatpush1.msra.mxu0 0.0
    %2582 = vmatprep.subr.mxu0 0.0
    %2583 = vmatpush1.msra.mxu0 0.0
    %2584 = vmatprep.subr.mxu0 %v2546
    %2585 = vmatpush1.msra.mxu0 %v2545
    %2586 = vmatprep.subr.mxu0 0.0
    %2587 = vmatpush2.msra.mxu0 0.0
    %2588 = vmatprep.subr.mxu0 0.0
    %2589 = vmatpush2.msra.mxu0 0.0
    %2590 = vmatprep.subr.mxu0 0.0
    %2591 = vmatpush2.msra.mxu0 0.0
    %2592 = vmatprep.subr.mxu0 0.0
    %2593 = vmatpush2.msra.mxu0 0.0
    %2594 = vmatprep.subr.mxu0 0.0
    %2595 = vmatpush2.msra.mxu0 0.0
    %2596 = vmatprep.subr.mxu0 0.0
    %2597 = vmatpush2.msra.mxu0 0.0
    %2598 = vmatprep.subr.mxu0 0.0
    %2599 = vmatpush2.msra.mxu0 0.0
    %2600 = vmatprep.subr.mxu0 0.0
    %2601 = vmatpush2.msra.mxu0 0.0
    %2602 = vmatprep.subr.mxu0 0.0
    %2603 = vmatpush2.msra.mxu0 0.0
    %2604 = vmatprep.subr.mxu0 0.0
    %2605 = vmatpush2.msra.mxu0 0.0
    %2606 = vmatprep.subr.mxu0 0.0
    %2607 = vmatpush2.msra.mxu0 0.0
    %2608 = vmatprep.subr.mxu0 0.0
    %2609 = vmatpush2.msra.mxu0 0.0
    %2610 = vmatprep.subr.mxu0 0.0
    %2611 = vmatpush2.msra.mxu0 0.0
    %2612 = vmatprep.subr.mxu0 0.0
    %2613 = vmatpush2.msra.mxu0 0.0
    %2614 = vmatprep.subr.mxu0 0.0
    %2615 = vmatpush2.msra.mxu0 0.0
    %2616 = vmatprep.subr.mxu0 0.0
    %2617 = vmatpush2.msra.mxu0 0.0
    %2618 = vmatprep.mubr.f32.mxu0 0.0
    %2619 = vmatmul.mubr.f32.gmra.mxu0 %v2552
    %v2620 = vpop.f32.mrf.mxu0
    %v2621 = vadd.f32 0.0, %v2620
    %v2622 = vpop.f32.mrf.mxu0
    %v2623 = vadd.f32 0.0, %v2622
    %2624 = vdwg.mxu0
    %2625 = vmatprep.subr.mxu0 0.0
    %2626 = vmatpush1.msra.mxu0 0.0
    %2627 = vmatprep.subr.mxu0 0.0
    %2628 = vmatpush1.msra.mxu0 0.0
    %2629 = vmatprep.subr.mxu0 0.0
    %2630 = vmatpush1.msra.mxu0 0.0
    %2631 = vmatprep.subr.mxu0 0.0
    %2632 = vmatpush1.msra.mxu0 0.0
    %2633 = vmatprep.subr.mxu0 0.0
    %2634 = vmatpush1.msra.mxu0 0.0
    %2635 = vmatprep.subr.mxu0 0.0
    %2636 = vmatpush1.msra.mxu0 0.0
    %2637 = vmatprep.subr.mxu0 0.0
    %2638 = vmatpush1.msra.mxu0 0.0
    %2639 = vmatprep.subr.mxu0 0.0
    %2640 = vmatpush1.msra.mxu0 0.0
    %2641 = vmatprep.subr.mxu0 0.0
    %2642 = vmatpush1.msra.mxu0 0.0
    %2643 = vmatprep.subr.mxu0 0.0
    %2644 = vmatpush1.msra.mxu0 0.0
    %2645 = vmatprep.subr.mxu0 0.0
    %2646 = vmatpush1.msra.mxu0 0.0
    %2647 = vmatprep.subr.mxu0 0.0
    %2648 = vmatpush1.msra.mxu0 0.0
    %2649 = vmatprep.subr.mxu0 0.0
    %2650 = vmatpush1.msra.mxu0 0.0
    %2651 = vmatprep.subr.mxu0 0.0
    %2652 = vmatpush1.msra.mxu0 0.0
    %2653 = vmatprep.subr.mxu0 0.0
    %2654 = vmatpush1.msra.mxu0 0.0
    %2655 = vmatprep.subr.mxu0 %v2548
    %2656 = vmatpush1.msra.mxu0 %v2547
    %2657 = vmatprep.subr.mxu0 0.0
    %2658 = vmatpush2.msra.mxu0 0.0
    %2659 = vmatprep.subr.mxu0 0.0
    %2660 = vmatpush2.msra.mxu0 0.0
    %2661 = vmatprep.subr.mxu0 0.0
    %2662 = vmatpush2.msra.mxu0 0.0
    %2663 = vmatprep.subr.mxu0 0.0
    %2664 = vmatpush2.msra.mxu0 0.0
    %2665 = vmatprep.subr.mxu0 0.0
    %2666 = vmatpush2.msra.mxu0 0.0
    %2667 = vmatprep.subr.mxu0 0.0
    %2668 = vmatpush2.msra.mxu0 0.0
    %2669 = vmatprep.subr.mxu0 0.0
    %2670 = vmatpush2.msra.mxu0 0.0
    %2671 = vmatprep.subr.mxu0 0.0
    %2672 = vmatpush2.msra.mxu0 0.0
    %2673 = vmatprep.subr.mxu0 0.0
    %2674 = vmatpush2.msra.mxu0 0.0
    %2675 = vmatprep.subr.mxu0 0.0
    %2676 = vmatpush2.msra.mxu0 0.0
    %2677 = vmatprep.subr.mxu0 0.0
    %2678 = vmatpush2.msra.mxu0 0.0
    %2679 = vmatprep.subr.mxu0 0.0
    %2680 = vmatpush2.msra.mxu0 0.0
    %2681 = vmatprep.subr.mxu0 0.0
    %2682 = vmatpush2.msra.mxu0 0.0
    %2683 = vmatprep.subr.mxu0 0.0
    %2684 = vmatpush2.msra.mxu0 0.0
    %2685 = vmatprep.subr.mxu0 0.0
    %2686 = vmatpush2.msra.mxu0 0.0
    %2687 = vmatprep.subr.mxu0 0.0
    %2688 = vmatpush2.msra.mxu0 0.0
    %2689 = vmatprep.mubr.f32.mxu0 0.0
    %2690 = vmatmul.mubr.f32.gmra.mxu0 %v2552
    %v2691 = vpop.f32.mrf.mxu0
    %v2692 = vadd.f32 0.0, %v2691
    %v2693 = vpop.f32.mrf.mxu0
    %v2694 = vadd.f32 0.0, %v2693
    %2695 = vdwg.mxu0
    %v2696 = vadd.f32 %v2529, %v2621
    %v2697 = vadd.f32 %v2530, %v2623
    %v2698 = vadd.f32 %v2531, %v2692
    %v2699 = vadd.f32 %v2532, %v2694
    %2700 = vrot.lane.b32.xlu0 %v1719, 113
    %v2701 = vpop.permute.xlu0 %2700
    %2702 = vrot.lane.b32.xlu0 %v1720, 113
    %v2703 = vpop.permute.xlu0 %2702
    %2704 = vrot.lane.b32.xlu0 %v1721, 113
    %v2705 = vpop.permute.xlu0 %2704
    %2706 = vrot.lane.b32.xlu0 %v1722, 113
    %v2707 = vpop.permute.xlu0 %2706
    %v2708 = vsel %vm1117, %v2705, %v2707
    %v2709 = vsel %vm1117, %v2703, %v2705
    %v2710 = vsel %vm1117, %v2701, %v2703
    %v2711 = vsel %vm1117, %v2707, %v2701
    %v2712 = vmul.f32 %v2710, %v1125
    %v2713 = vmul.f32 %v2709, %v1129
    %v2714 = vmul.f32 %v2708, %v1133
    %v2715 = vmul.f32 %v2711, %v1137
    %s2716 = scalar_lea.vmem %s6, 48
    %v2717 = vld [vmem:[%s2716] sm:$0xff]
    %v2719 = vsel %vm115, %v2717, 0
    %2721 = vmatprep.subr.mxu0 0.0
    %2722 = vmatpush1.msra.mxu0 0.0
    %2723 = vmatprep.subr.mxu0 0.0
    %2724 = vmatpush1.msra.mxu0 0.0
    %2725 = vmatprep.subr.mxu0 0.0
    %2726 = vmatpush1.msra.mxu0 0.0
    %2727 = vmatprep.subr.mxu0 0.0
    %2728 = vmatpush1.msra.mxu0 0.0
    %2729 = vmatprep.subr.mxu0 0.0
    %2730 = vmatpush1.msra.mxu0 0.0
    %2731 = vmatprep.subr.mxu0 0.0
    %2732 = vmatpush1.msra.mxu0 0.0
    %2733 = vmatprep.subr.mxu0 0.0
    %2734 = vmatpush1.msra.mxu0 0.0
    %2735 = vmatprep.subr.mxu0 0.0
    %2736 = vmatpush1.msra.mxu0 0.0
    %2737 = vmatprep.subr.mxu0 0.0
    %2738 = vmatpush1.msra.mxu0 0.0
    %2739 = vmatprep.subr.mxu0 0.0
    %2740 = vmatpush1.msra.mxu0 0.0
    %2741 = vmatprep.subr.mxu0 0.0
    %2742 = vmatpush1.msra.mxu0 0.0
    %2743 = vmatprep.subr.mxu0 0.0
    %2744 = vmatpush1.msra.mxu0 0.0
    %2745 = vmatprep.subr.mxu0 0.0
    %2746 = vmatpush1.msra.mxu0 0.0
    %2747 = vmatprep.subr.mxu0 0.0
    %2748 = vmatpush1.msra.mxu0 0.0
    %2749 = vmatprep.subr.mxu0 0.0
    %2750 = vmatpush1.msra.mxu0 0.0
    %2751 = vmatprep.subr.mxu0 %v2713
    %2752 = vmatpush1.msra.mxu0 %v2712
    %2753 = vmatprep.subr.mxu0 0.0
    %2754 = vmatpush2.msra.mxu0 0.0
    %2755 = vmatprep.subr.mxu0 0.0
    %2756 = vmatpush2.msra.mxu0 0.0
    %2757 = vmatprep.subr.mxu0 0.0
    %2758 = vmatpush2.msra.mxu0 0.0
    %2759 = vmatprep.subr.mxu0 0.0
    %2760 = vmatpush2.msra.mxu0 0.0
    %2761 = vmatprep.subr.mxu0 0.0
    %2762 = vmatpush2.msra.mxu0 0.0
    %2763 = vmatprep.subr.mxu0 0.0
    %2764 = vmatpush2.msra.mxu0 0.0
    %2765 = vmatprep.subr.mxu0 0.0
    %2766 = vmatpush2.msra.mxu0 0.0
    %2767 = vmatprep.subr.mxu0 0.0
    %2768 = vmatpush2.msra.mxu0 0.0
    %2769 = vmatprep.subr.mxu0 0.0
    %2770 = vmatpush2.msra.mxu0 0.0
    %2771 = vmatprep.subr.mxu0 0.0
    %2772 = vmatpush2.msra.mxu0 0.0
    %2773 = vmatprep.subr.mxu0 0.0
    %2774 = vmatpush2.msra.mxu0 0.0
    %2775 = vmatprep.subr.mxu0 0.0
    %2776 = vmatpush2.msra.mxu0 0.0
    %2777 = vmatprep.subr.mxu0 0.0
    %2778 = vmatpush2.msra.mxu0 0.0
    %2779 = vmatprep.subr.mxu0 0.0
    %2780 = vmatpush2.msra.mxu0 0.0
    %2781 = vmatprep.subr.mxu0 0.0
    %2782 = vmatpush2.msra.mxu0 0.0
    %2783 = vmatprep.subr.mxu0 0.0
    %2784 = vmatpush2.msra.mxu0 0.0
    %2785 = vmatprep.mubr.f32.mxu0 0.0
    %2786 = vmatmul.mubr.f32.gmra.mxu0 %v2719
    %v2787 = vpop.f32.mrf.mxu0
    %v2788 = vadd.f32 0.0, %v2787
    %v2789 = vpop.f32.mrf.mxu0
    %v2790 = vadd.f32 0.0, %v2789
    %2791 = vdwg.mxu0
    %2792 = vmatprep.subr.mxu0 0.0
    %2793 = vmatpush1.msra.mxu0 0.0
    %2794 = vmatprep.subr.mxu0 0.0
    %2795 = vmatpush1.msra.mxu0 0.0
    %2796 = vmatprep.subr.mxu0 0.0
    %2797 = vmatpush1.msra.mxu0 0.0
    %2798 = vmatprep.subr.mxu0 0.0
    %2799 = vmatpush1.msra.mxu0 0.0
    %2800 = vmatprep.subr.mxu0 0.0
    %2801 = vmatpush1.msra.mxu0 0.0
    %2802 = vmatprep.subr.mxu0 0.0
    %2803 = vmatpush1.msra.mxu0 0.0
    %2804 = vmatprep.subr.mxu0 0.0
    %2805 = vmatpush1.msra.mxu0 0.0
    %2806 = vmatprep.subr.mxu0 0.0
    %2807 = vmatpush1.msra.mxu0 0.0
    %2808 = vmatprep.subr.mxu0 0.0
    %2809 = vmatpush1.msra.mxu0 0.0
    %2810 = vmatprep.subr.mxu0 0.0
    %2811 = vmatpush1.msra.mxu0 0.0
    %2812 = vmatprep.subr.mxu0 0.0
    %2813 = vmatpush1.msra.mxu0 0.0
    %2814 = vmatprep.subr.mxu0 0.0
    %2815 = vmatpush1.msra.mxu0 0.0
    %2816 = vmatprep.subr.mxu0 0.0
    %2817 = vmatpush1.msra.mxu0 0.0
    %2818 = vmatprep.subr.mxu0 0.0
    %2819 = vmatpush1.msra.mxu0 0.0
    %2820 = vmatprep.subr.mxu0 0.0
    %2821 = vmatpush1.msra.mxu0 0.0
    %2822 = vmatprep.subr.mxu0 %v2715
    %2823 = vmatpush1.msra.mxu0 %v2714
    %2824 = vmatprep.subr.mxu0 0.0
    %2825 = vmatpush2.msra.mxu0 0.0
    %2826 = vmatprep.subr.mxu0 0.0
    %2827 = vmatpush2.msra.mxu0 0.0
    %2828 = vmatprep.subr.mxu0 0.0
    %2829 = vmatpush2.msra.mxu0 0.0
    %2830 = vmatprep.subr.mxu0 0.0
    %2831 = vmatpush2.msra.mxu0 0.0
    %2832 = vmatprep.subr.mxu0 0.0
    %2833 = vmatpush2.msra.mxu0 0.0
    %2834 = vmatprep.subr.mxu0 0.0
    %2835 = vmatpush2.msra.mxu0 0.0
    %2836 = vmatprep.subr.mxu0 0.0
    %2837 = vmatpush2.msra.mxu0 0.0
    %2838 = vmatprep.subr.mxu0 0.0
    %2839 = vmatpush2.msra.mxu0 0.0
    %2840 = vmatprep.subr.mxu0 0.0
    %2841 = vmatpush2.msra.mxu0 0.0
    %2842 = vmatprep.subr.mxu0 0.0
    %2843 = vmatpush2.msra.mxu0 0.0
    %2844 = vmatprep.subr.mxu0 0.0
    %2845 = vmatpush2.msra.mxu0 0.0
    %2846 = vmatprep.subr.mxu0 0.0
    %2847 = vmatpush2.msra.mxu0 0.0
    %2848 = vmatprep.subr.mxu0 0.0
    %2849 = vmatpush2.msra.mxu0 0.0
    %2850 = vmatprep.subr.mxu0 0.0
    %2851 = vmatpush2.msra.mxu0 0.0
    %2852 = vmatprep.subr.mxu0 0.0
    %2853 = vmatpush2.msra.mxu0 0.0
    %2854 = vmatprep.subr.mxu0 0.0
    %2855 = vmatpush2.msra.mxu0 0.0
    %2856 = vmatprep.mubr.f32.mxu0 0.0
    %2857 = vmatmul.mubr.f32.gmra.mxu0 %v2719
    %v2858 = vpop.f32.mrf.mxu0
    %v2859 = vadd.f32 0.0, %v2858
    %v2860 = vpop.f32.mrf.mxu0
    %v2861 = vadd.f32 0.0, %v2860
    %2862 = vdwg.mxu0
    %v2863 = vadd.f32 %v2696, %v2788
    %v2864 = vadd.f32 %v2697, %v2790
    %v2865 = vadd.f32 %v2698, %v2859
    %v2866 = vadd.f32 %v2699, %v2861
    %2867 = vrot.lane.b32.xlu0 %v1719, 112
    %v2868 = vpop.permute.xlu0 %2867
    %2869 = vrot.lane.b32.xlu0 %v1720, 112
    %v2870 = vpop.permute.xlu0 %2869
    %2871 = vrot.lane.b32.xlu0 %v1721, 112
    %v2872 = vpop.permute.xlu0 %2871
    %2873 = vrot.lane.b32.xlu0 %v1722, 112
    %v2874 = vpop.permute.xlu0 %2873
    %v2875 = vsel %vm1301, %v2872, %v2874
    %v2876 = vsel %vm1301, %v2870, %v2872
    %v2877 = vsel %vm1301, %v2868, %v2870
    %v2878 = vsel %vm1301, %v2874, %v2868
    %v2879 = vmul.f32 %v2877, %v1309
    %v2880 = vmul.f32 %v2876, %v1313
    %v2881 = vmul.f32 %v2875, %v1317
    %v2882 = vmul.f32 %v2878, %v1321
    %s2883 = scalar_lea.vmem %s6, 56
    %v2884 = vld [vmem:[%s2883] sm:$0xff]
    %v2886 = vsel %vm115, %v2884, 0
    %2888 = vmatprep.subr.mxu0 0.0
    %2889 = vmatpush1.msra.mxu0 0.0
    %2890 = vmatprep.subr.mxu0 0.0
    %2891 = vmatpush1.msra.mxu0 0.0
    %2892 = vmatprep.subr.mxu0 0.0
    %2893 = vmatpush1.msra.mxu0 0.0
    %2894 = vmatprep.subr.mxu0 0.0
    %2895 = vmatpush1.msra.mxu0 0.0
    %2896 = vmatprep.subr.mxu0 0.0
    %2897 = vmatpush1.msra.mxu0 0.0
    %2898 = vmatprep.subr.mxu0 0.0
    %2899 = vmatpush1.msra.mxu0 0.0
    %2900 = vmatprep.subr.mxu0 0.0
    %2901 = vmatpush1.msra.mxu0 0.0
    %2902 = vmatprep.subr.mxu0 0.0
    %2903 = vmatpush1.msra.mxu0 0.0
    %2904 = vmatprep.subr.mxu0 0.0
    %2905 = vmatpush1.msra.mxu0 0.0
    %2906 = vmatprep.subr.mxu0 0.0
    %2907 = vmatpush1.msra.mxu0 0.0
    %2908 = vmatprep.subr.mxu0 0.0
    %2909 = vmatpush1.msra.mxu0 0.0
    %2910 = vmatprep.subr.mxu0 0.0
    %2911 = vmatpush1.msra.mxu0 0.0
    %2912 = vmatprep.subr.mxu0 0.0
    %2913 = vmatpush1.msra.mxu0 0.0
    %2914 = vmatprep.subr.mxu0 0.0
    %2915 = vmatpush1.msra.mxu0 0.0
    %2916 = vmatprep.subr.mxu0 0.0
    %2917 = vmatpush1.msra.mxu0 0.0
    %2918 = vmatprep.subr.mxu0 %v2880
    %2919 = vmatpush1.msra.mxu0 %v2879
    %2920 = vmatprep.subr.mxu0 0.0
    %2921 = vmatpush2.msra.mxu0 0.0
    %2922 = vmatprep.subr.mxu0 0.0
    %2923 = vmatpush2.msra.mxu0 0.0
    %2924 = vmatprep.subr.mxu0 0.0
    %2925 = vmatpush2.msra.mxu0 0.0
    %2926 = vmatprep.subr.mxu0 0.0
    %2927 = vmatpush2.msra.mxu0 0.0
    %2928 = vmatprep.subr.mxu0 0.0
    %2929 = vmatpush2.msra.mxu0 0.0
    %2930 = vmatprep.subr.mxu0 0.0
    %2931 = vmatpush2.msra.mxu0 0.0
    %2932 = vmatprep.subr.mxu0 0.0
    %2933 = vmatpush2.msra.mxu0 0.0
    %2934 = vmatprep.subr.mxu0 0.0
    %2935 = vmatpush2.msra.mxu0 0.0
    %2936 = vmatprep.subr.mxu0 0.0
    %2937 = vmatpush2.msra.mxu0 0.0
    %2938 = vmatprep.subr.mxu0 0.0
    %2939 = vmatpush2.msra.mxu0 0.0
    %2940 = vmatprep.subr.mxu0 0.0
    %2941 = vmatpush2.msra.mxu0 0.0
    %2942 = vmatprep.subr.mxu0 0.0
    %2943 = vmatpush2.msra.mxu0 0.0
    %2944 = vmatprep.subr.mxu0 0.0
    %2945 = vmatpush2.msra.mxu0 0.0
    %2946 = vmatprep.subr.mxu0 0.0
    %2947 = vmatpush2.msra.mxu0 0.0
    %2948 = vmatprep.subr.mxu0 0.0
    %2949 = vmatpush2.msra.mxu0 0.0
    %2950 = vmatprep.subr.mxu0 0.0
    %2951 = vmatpush2.msra.mxu0 0.0
    %2952 = vmatprep.mubr.f32.mxu0 0.0
    %2953 = vmatmul.mubr.f32.gmra.mxu0 %v2886
    %v2954 = vpop.f32.mrf.mxu0
    %v2955 = vadd.f32 0.0, %v2954
    %v2956 = vpop.f32.mrf.mxu0
    %v2957 = vadd.f32 0.0, %v2956
    %2958 = vdwg.mxu0
    %2959 = vmatprep.subr.mxu0 0.0
    %2960 = vmatpush1.msra.mxu0 0.0
    %2961 = vmatprep.subr.mxu0 0.0
    %2962 = vmatpush1.msra.mxu0 0.0
    %2963 = vmatprep.subr.mxu0 0.0
    %2964 = vmatpush1.msra.mxu0 0.0
    %2965 = vmatprep.subr.mxu0 0.0
    %2966 = vmatpush1.msra.mxu0 0.0
    %2967 = vmatprep.subr.mxu0 0.0
    %2968 = vmatpush1.msra.mxu0 0.0
    %2969 = vmatprep.subr.mxu0 0.0
    %2970 = vmatpush1.msra.mxu0 0.0
    %2971 = vmatprep.subr.mxu0 0.0
    %2972 = vmatpush1.msra.mxu0 0.0
    %2973 = vmatprep.subr.mxu0 0.0
    %2974 = vmatpush1.msra.mxu0 0.0
    %2975 = vmatprep.subr.mxu0 0.0
    %2976 = vmatpush1.msra.mxu0 0.0
    %2977 = vmatprep.subr.mxu0 0.0
    %2978 = vmatpush1.msra.mxu0 0.0
    %2979 = vmatprep.subr.mxu0 0.0
    %2980 = vmatpush1.msra.mxu0 0.0
    %2981 = vmatprep.subr.mxu0 0.0
    %2982 = vmatpush1.msra.mxu0 0.0
    %2983 = vmatprep.subr.mxu0 0.0
    %2984 = vmatpush1.msra.mxu0 0.0
    %2985 = vmatprep.subr.mxu0 0.0
    %2986 = vmatpush1.msra.mxu0 0.0
    %2987 = vmatprep.subr.mxu0 0.0
    %2988 = vmatpush1.msra.mxu0 0.0
    %2989 = vmatprep.subr.mxu0 %v2882
    %2990 = vmatpush1.msra.mxu0 %v2881
    %2991 = vmatprep.subr.mxu0 0.0
    %2992 = vmatpush2.msra.mxu0 0.0
    %2993 = vmatprep.subr.mxu0 0.0
    %2994 = vmatpush2.msra.mxu0 0.0
    %2995 = vmatprep.subr.mxu0 0.0
    %2996 = vmatpush2.msra.mxu0 0.0
    %2997 = vmatprep.subr.mxu0 0.0
    %2998 = vmatpush2.msra.mxu0 0.0
    %2999 = vmatprep.subr.mxu0 0.0
    %3000 = vmatpush2.msra.mxu0 0.0
    %3001 = vmatprep.subr.mxu0 0.0
    %3002 = vmatpush2.msra.mxu0 0.0
    %3003 = vmatprep.subr.mxu0 0.0
    %3004 = vmatpush2.msra.mxu0 0.0
    %3005 = vmatprep.subr.mxu0 0.0
    %3006 = vmatpush2.msra.mxu0 0.0
    %3007 = vmatprep.subr.mxu0 0.0
    %3008 = vmatpush2.msra.mxu0 0.0
    %3009 = vmatprep.subr.mxu0 0.0
    %3010 = vmatpush2.msra.mxu0 0.0
    %3011 = vmatprep.subr.mxu0 0.0
    %3012 = vmatpush2.msra.mxu0 0.0
    %3013 = vmatprep.subr.mxu0 0.0
    %3014 = vmatpush2.msra.mxu0 0.0
    %3015 = vmatprep.subr.mxu0 0.0
    %3016 = vmatpush2.msra.mxu0 0.0
    %3017 = vmatprep.subr.mxu0 0.0
    %3018 = vmatpush2.msra.mxu0 0.0
    %3019 = vmatprep.subr.mxu0 0.0
    %3020 = vmatpush2.msra.mxu0 0.0
    %3021 = vmatprep.subr.mxu0 0.0
    %3022 = vmatpush2.msra.mxu0 0.0
    %3023 = vmatprep.mubr.f32.mxu0 0.0
    %3024 = vmatmul.mubr.f32.gmra.mxu0 %v2886
    %v3025 = vpop.f32.mrf.mxu0
    %v3026 = vadd.f32 0.0, %v3025
    %v3027 = vpop.f32.mrf.mxu0
    %v3028 = vadd.f32 0.0, %v3027
    %3029 = vdwg.mxu0
    %v3030 = vadd.f32 %v2863, %v2955
    %v3031 = vadd.f32 %v2864, %v2957
    %v3032 = vadd.f32 %v2865, %v3026
    %v3033 = vadd.f32 %v2866, %v3028
    %3034 = vrot.lane.b32.xlu0 %v1719, 111
    %v3035 = vpop.permute.xlu0 %3034
    %3036 = vrot.lane.b32.xlu0 %v1720, 111
    %v3037 = vpop.permute.xlu0 %3036
    %3038 = vrot.lane.b32.xlu0 %v1721, 111
    %v3039 = vpop.permute.xlu0 %3038
    %3040 = vrot.lane.b32.xlu0 %v1722, 111
    %v3041 = vpop.permute.xlu0 %3040
    %v3042 = vsel %vm1485, %v3039, %v3041
    %v3043 = vsel %vm1485, %v3037, %v3039
    %v3044 = vsel %vm1485, %v3035, %v3037
    %v3045 = vsel %vm1485, %v3041, %v3035
    %v3046 = vmul.f32 %v3044, %v1493
    %v3047 = vmul.f32 %v3043, %v1497
    %v3048 = vmul.f32 %v3042, %v1501
    %v3049 = vmul.f32 %v3045, %v1505
    %s3050 = scalar_lea.vmem %s6, 64
    %v3051 = vld [vmem:[%s3050] sm:$0xff]
    %v3053 = vsel %vm115, %v3051, 0
    %3055 = vmatprep.subr.mxu0 0.0
    %3056 = vmatpush1.msra.mxu0 0.0
    %3057 = vmatprep.subr.mxu0 0.0
    %3058 = vmatpush1.msra.mxu0 0.0
    %3059 = vmatprep.subr.mxu0 0.0
    %3060 = vmatpush1.msra.mxu0 0.0
    %3061 = vmatprep.subr.mxu0 0.0
    %3062 = vmatpush1.msra.mxu0 0.0
    %3063 = vmatprep.subr.mxu0 0.0
    %3064 = vmatpush1.msra.mxu0 0.0
    %3065 = vmatprep.subr.mxu0 0.0
    %3066 = vmatpush1.msra.mxu0 0.0
    %3067 = vmatprep.subr.mxu0 0.0
    %3068 = vmatpush1.msra.mxu0 0.0
    %3069 = vmatprep.subr.mxu0 0.0
    %3070 = vmatpush1.msra.mxu0 0.0
    %3071 = vmatprep.subr.mxu0 0.0
    %3072 = vmatpush1.msra.mxu0 0.0
    %3073 = vmatprep.subr.mxu0 0.0
    %3074 = vmatpush1.msra.mxu0 0.0
    %3075 = vmatprep.subr.mxu0 0.0
    %3076 = vmatpush1.msra.mxu0 0.0
    %3077 = vmatprep.subr.mxu0 0.0
    %3078 = vmatpush1.msra.mxu0 0.0
    %3079 = vmatprep.subr.mxu0 0.0
    %3080 = vmatpush1.msra.mxu0 0.0
    %3081 = vmatprep.subr.mxu0 0.0
    %3082 = vmatpush1.msra.mxu0 0.0
    %3083 = vmatprep.subr.mxu0 0.0
    %3084 = vmatpush1.msra.mxu0 0.0
    %3085 = vmatprep.subr.mxu0 %v3047
    %3086 = vmatpush1.msra.mxu0 %v3046
    %3087 = vmatprep.subr.mxu0 0.0
    %3088 = vmatpush2.msra.mxu0 0.0
    %3089 = vmatprep.subr.mxu0 0.0
    %3090 = vmatpush2.msra.mxu0 0.0
    %3091 = vmatprep.subr.mxu0 0.0
    %3092 = vmatpush2.msra.mxu0 0.0
    %3093 = vmatprep.subr.mxu0 0.0
    %3094 = vmatpush2.msra.mxu0 0.0
    %3095 = vmatprep.subr.mxu0 0.0
    %3096 = vmatpush2.msra.mxu0 0.0
    %3097 = vmatprep.subr.mxu0 0.0
    %3098 = vmatpush2.msra.mxu0 0.0
    %3099 = vmatprep.subr.mxu0 0.0
    %3100 = vmatpush2.msra.mxu0 0.0
    %3101 = vmatprep.subr.mxu0 0.0
    %3102 = vmatpush2.msra.mxu0 0.0
    %3103 = vmatprep.subr.mxu0 0.0
    %3104 = vmatpush2.msra.mxu0 0.0
    %3105 = vmatprep.subr.mxu0 0.0
    %3106 = vmatpush2.msra.mxu0 0.0
    %3107 = vmatprep.subr.mxu0 0.0
    %3108 = vmatpush2.msra.mxu0 0.0
    %3109 = vmatprep.subr.mxu0 0.0
    %3110 = vmatpush2.msra.mxu0 0.0
    %3111 = vmatprep.subr.mxu0 0.0
    %3112 = vmatpush2.msra.mxu0 0.0
    %3113 = vmatprep.subr.mxu0 0.0
    %3114 = vmatpush2.msra.mxu0 0.0
    %3115 = vmatprep.subr.mxu0 0.0
    %3116 = vmatpush2.msra.mxu0 0.0
    %3117 = vmatprep.subr.mxu0 0.0
    %3118 = vmatpush2.msra.mxu0 0.0
    %3119 = vmatprep.mubr.f32.mxu0 0.0
    %3120 = vmatmul.mubr.f32.gmra.mxu0 %v3053
    %v3121 = vpop.f32.mrf.mxu0
    %v3122 = vadd.f32 0.0, %v3121
    %v3123 = vpop.f32.mrf.mxu0
    %v3124 = vadd.f32 0.0, %v3123
    %3125 = vdwg.mxu0
    %3126 = vmatprep.subr.mxu0 0.0
    %3127 = vmatpush1.msra.mxu0 0.0
    %3128 = vmatprep.subr.mxu0 0.0
    %3129 = vmatpush1.msra.mxu0 0.0
    %3130 = vmatprep.subr.mxu0 0.0
    %3131 = vmatpush1.msra.mxu0 0.0
    %3132 = vmatprep.subr.mxu0 0.0
    %3133 = vmatpush1.msra.mxu0 0.0
    %3134 = vmatprep.subr.mxu0 0.0
    %3135 = vmatpush1.msra.mxu0 0.0
    %3136 = vmatprep.subr.mxu0 0.0
    %3137 = vmatpush1.msra.mxu0 0.0
    %3138 = vmatprep.subr.mxu0 0.0
    %3139 = vmatpush1.msra.mxu0 0.0
    %3140 = vmatprep.subr.mxu0 0.0
    %3141 = vmatpush1.msra.mxu0 0.0
    %3142 = vmatprep.subr.mxu0 0.0
    %3143 = vmatpush1.msra.mxu0 0.0
    %3144 = vmatprep.subr.mxu0 0.0
    %3145 = vmatpush1.msra.mxu0 0.0
    %3146 = vmatprep.subr.mxu0 0.0
    %3147 = vmatpush1.msra.mxu0 0.0
    %3148 = vmatprep.subr.mxu0 0.0
    %3149 = vmatpush1.msra.mxu0 0.0
    %3150 = vmatprep.subr.mxu0 0.0
    %3151 = vmatpush1.msra.mxu0 0.0
    %3152 = vmatprep.subr.mxu0 0.0
    %3153 = vmatpush1.msra.mxu0 0.0
    %3154 = vmatprep.subr.mxu0 0.0
    %3155 = vmatpush1.msra.mxu0 0.0
    %3156 = vmatprep.subr.mxu0 %v3049
    %3157 = vmatpush1.msra.mxu0 %v3048
    %3158 = vmatprep.subr.mxu0 0.0
    %3159 = vmatpush2.msra.mxu0 0.0
    %3160 = vmatprep.subr.mxu0 0.0
    %3161 = vmatpush2.msra.mxu0 0.0
    %3162 = vmatprep.subr.mxu0 0.0
    %3163 = vmatpush2.msra.mxu0 0.0
    %3164 = vmatprep.subr.mxu0 0.0
    %3165 = vmatpush2.msra.mxu0 0.0
    %3166 = vmatprep.subr.mxu0 0.0
    %3167 = vmatpush2.msra.mxu0 0.0
    %3168 = vmatprep.subr.mxu0 0.0
    %3169 = vmatpush2.msra.mxu0 0.0
    %3170 = vmatprep.subr.mxu0 0.0
    %3171 = vmatpush2.msra.mxu0 0.0
    %3172 = vmatprep.subr.mxu0 0.0
    %3173 = vmatpush2.msra.mxu0 0.0
    %3174 = vmatprep.subr.mxu0 0.0
    %3175 = vmatpush2.msra.mxu0 0.0
    %3176 = vmatprep.subr.mxu0 0.0
    %3177 = vmatpush2.msra.mxu0 0.0
    %3178 = vmatprep.subr.mxu0 0.0
    %3179 = vmatpush2.msra.mxu0 0.0
    %3180 = vmatprep.subr.mxu0 0.0
    %3181 = vmatpush2.msra.mxu0 0.0
    %3182 = vmatprep.subr.mxu0 0.0
    %3183 = vmatpush2.msra.mxu0 0.0
    %3184 = vmatprep.subr.mxu0 0.0
    %3185 = vmatpush2.msra.mxu0 0.0
    %3186 = vmatprep.subr.mxu0 0.0
    %3187 = vmatpush2.msra.mxu0 0.0
    %3188 = vmatprep.subr.mxu0 0.0
    %3189 = vmatpush2.msra.mxu0 0.0
    %3190 = vmatprep.mubr.f32.mxu0 0.0
    %3191 = vmatmul.mubr.f32.gmra.mxu0 %v3053
    %v3192 = vpop.f32.mrf.mxu0
    %v3193 = vadd.f32 0.0, %v3192
    %v3194 = vpop.f32.mrf.mxu0
    %v3195 = vadd.f32 0.0, %v3194
    %3196 = vdwg.mxu0
    %v3197 = vadd.f32 %v3030, %v3122
    %v3198 = vadd.f32 %v3031, %v3124
    %v3199 = vadd.f32 %v3032, %v3193
    %v3200 = vadd.f32 %v3033, %v3195
    %v3201 = vld [vmem:[%s7] sm:$0xff]
    %3203 = vset.pattern.permute.xlu0 0
    %3204 = vperm.xlu0 %3203, %v3201
    %v3205 = vpop.permute.xlu0 %3204
    %v3207 = vadd.f32 %v3197, %v3205
    %v3208 = vadd.f32 %v3198, %v3205
    %v3209 = vadd.f32 %v3199, %v3205
    %v3210 = vadd.f32 %v3200, %v3205
    %v3211 = vadd.f32 %v3207, %v3208
    %v3212 = vadd.f32 %v3211, %v3209
    %v3213 = vadd.f32 %v3212, %v3210
    %3214 = vadd.xlane.f32.xlu0 %v3213
    %v3215 = vpop.xlane.xlu0 %3214
    %v3216 = vmul.f32 %v3207, %v3207
    %v3217 = vmul.f32 %v3208, %v3208
    %v3218 = vmul.f32 %v3209, %v3209
    %v3219 = vmul.f32 %v3210, %v3210
    %v3220 = vadd.f32 %v3216, %v3217
    %v3221 = vadd.f32 %v3220, %v3218
    %v3222 = vadd.f32 %v3221, %v3219
    %3223 = vadd.xlane.f32.xlu0 %v3222
    %v3224 = vpop.xlane.xlu0 %3223
    %v3225 = vmul.f32 %v3215, 0.001953125
    %v3226 = vmul.f32 %v3224, 0.001953125
    %v3227 = vmul.f32 %v3225, %v3225
    %v3228 = vsub.f32 %v3226, %v3227
    %v3229 = vadd.f32 %v3228, 1e-05
    %v3230 = vrsqrt.pop %v3229
    %v3231 = vld [vmem:[%s8] sm:$0xff]
    %v3232 = vsub.f32 %v3207, %v3225
    %v3233 = vsub.f32 %v3208, %v3225
    %v3234 = vsub.f32 %v3209, %v3225
    %v3235 = vsub.f32 %v3210, %v3225
    %3237 = vset.pattern.permute.xlu0 0
    %3238 = vperm.xlu0 %3237, %v3231
    %v3239 = vpop.permute.xlu0 %3238
    %v3241 = vmul.f32 %v3239, %v3232
    %v3242 = vmul.f32 %v3239, %v3233
    %v3243 = vmul.f32 %v3239, %v3234
    %v3244 = vmul.f32 %v3239, %v3235
    %v3245 = vmul.f32 %v3241, %v3230
    %v3246 = vmul.f32 %v3242, %v3230
    %v3247 = vmul.f32 %v3243, %v3230
    %v3248 = vmul.f32 %v3244, %v3230
    %v3249 = vld [vmem:[%s9] sm:$0xff]
    %3251 = vset.pattern.permute.xlu0 0
    %3252 = vperm.xlu0 %3251, %v3249
    %v3253 = vpop.permute.xlu0 %3252
    %v3255 = vadd.f32 %v3245, %v3253
    %v3256 = vadd.f32 %v3246, %v3253
    %v3257 = vadd.f32 %v3247, %v3253
    %v3258 = vadd.f32 %v3248, %v3253
    %v3259 = vmax.f32 %v3255, 0.0
    %v3260 = vmax.f32 %v3256, 0.0
    %v3261 = vmax.f32 %v3257, 0.0
    %v3262 = vmax.f32 %v3258, 0.0
    %3263 = vst [vmem:[#allocation2] sm:$0xff] %v3259
    %3264 = vst [vmem:[#allocation2 + $0x8] sm:$0xff] %v3260
    %3265 = vst [vmem:[#allocation2 + $0x10] sm:$0xff] %v3261
    %3266 = vst [vmem:[#allocation2 + $0x18] sm:$0xff] %v3262
    // Predicated region
    $region42: #{tpu_custom_call.1} parent=1 // pred_check
      _
    $region43: #{tpu_custom_call.1} parent=1 // pred_check_branch
      %3268 = sbr.rel (0) target = $region45
    $region44: #{tpu_custom_call.1} parent=1 // pred_region
      %s3270 = ssub.s32 512, 512
      %3271 = vsyncadd [#allocation3], %s3270
      %s3273 = sshll.u32 [#allocation2], 4
      %s3274 = int_to_ptr.vmem [resolvable:$true] %s3273
      %3276 = dma.vmem_to_hbm [thread:$0]  %s3274, 512, %s10, [#allocation3]
    $region45: #{tpu_custom_call.1} parent=1 // pred_fallthru
      _
    // Predicated region
    $region46: #{tpu_custom_call.1} parent=1 // pred_check
      _
    $region47: #{tpu_custom_call.1} parent=1 // pred_check_branch
      %3278 = sbr.rel (0) target = $region49
    $region48: #{tpu_custom_call.1} parent=1 // pred_region
      %3279 = dma.done [#allocation3], 512
    $region49: #{tpu_custom_call.1} parent=1 // pred_fallthru
      _
    %3280 = vsyncpa [#allocation3], 1

</llo_original>
